<compile_context>
chip_gen: v7x
topology: tpu7x:2x2x1
jax: 0.10.0
libtpu: 0.0.40
codegen_flags: <defaults>
</compile_context>

<pallas_src>
import functools

import jax
import jax.numpy as jnp
from jax import lax
from jax.experimental import pallas as pl
from jax.experimental.pallas import tpu as pltpu


# ----------------------------------------------------------------------------
# helpers
# ----------------------------------------------------------------------------
def _round_up(v, m):
    return ((v + m - 1) // m) * m


def _vmem_limit_bytes():
    """~3/4 of physical VMEM (96 MiB v5e/v6e, 48 MiB v7x); safe fallback."""
    try:
        cap = int(pltpu.get_tpu_info().vmem_capacity_bytes)
        return int(min(cap * 3 // 4, 100 * 1024 * 1024))
    except Exception:
        return 48 * 1024 * 1024


def _compiler_params():
    return pltpu.CompilerParams(
        dimension_semantics=("parallel", "parallel"),
        vmem_limit_bytes=_vmem_limit_bytes())


def _pick_row_tile(n, batch, per_row_bytes, fixed_bytes,
                   budget_bytes=16 * 1024 * 1024, max_rows=256):
    """Row tile (multiple of 8, or full n) whose working set fits the budget."""
    if n <= 8:
        return n
    avail = max(budget_bytes - fixed_bytes, 8 * per_row_bytes)
    tm = int(min(max_rows, max(8, avail // max(per_row_bytes, 1))))
    tm = max(8, (tm // 8) * 8)
    if tm >= n:
        tm = n
    # guarantee >= 2 grid blocks so both v7x TensorCores get work
    if batch * ((n + tm - 1) // tm) < 2:
        half = _round_up((n + 1) // 2, 8)
        if half < n:
            tm = half
    return tm


def _ln_relu(y, g, beta, d_actual):
    """LayerNorm(d_actual) + ReLU on a lane-padded (tm, Dp) tile.

    Padded lanes of y are exactly 0 (weights / bias zero-padded) and padded
    gamma/beta are 0, so padded output lanes stay 0 after the affine + ReLU.
    """
    tm, dp = y.shape
    inv_d = 1.0 / float(d_actual)
    mu = jnp.sum(y, axis=-1, keepdims=True) * inv_d
    lane = lax.broadcasted_iota(jnp.int32, (tm, dp), 1)
    diff = jnp.where(lane < d_actual, y - mu, 0.0)
    var = jnp.sum(diff * diff, axis=-1, keepdims=True) * inv_d
    yn = diff * lax.rsqrt(var + 1e-5)
    return jnp.maximum(yn * g + beta, 0.0)


# ----------------------------------------------------------------------------
# Kernel A: pairwise dist rows -> (unscaled) dist-FC, block max, kNN indices
# ----------------------------------------------------------------------------
def _pdist_fc_topk_kernel(xf_ref, xt_ref, w_ref, yd_ref, m_ref, idx_ref, *, k_nn):
    xf = xf_ref[0]                                                  # (N, C)
    xt = xt_ref[0]                                                  # (TM, C)
    w = w_ref[...]                                                  # (N, Dp) bf16
    tm = xt.shape[0]
    n = xf.shape[0]

    sq_f = jnp.sum(xf * xf, axis=-1, keepdims=True)                 # (N, 1)
    sq_t = jnp.sum(xt * xt, axis=-1, keepdims=True)                 # (TM, 1)
    gram = lax.dot_general(xt, xf, (((1,), (1,)), ((), ())),
                           preferred_element_type=jnp.float32)      # (TM, N)
    i0 = pl.program_id(1) * tm
    row = lax.broadcasted_iota(jnp.int32, (tm, n), 0) + i0
    col = lax.broadcasted_iota(jnp.int32, (tm, n), 1)
    d = jnp.sqrt(jnp.maximum(sq_t + jnp.transpose(sq_f) - 2.0 * gram, 0.0))
    d = jnp.where(row == col, 0.0, d)           # exact zeros on the diagonal

    # per-block max over valid rows only (partial edge tiles masked)
    m_ref[0, 0] = jnp.full((8, 128), jnp.max(jnp.where(row < n, d, 0.0)),
                           dtype=jnp.float32)

    # unscaled DistanceEncoder FC; 1/max(dist) is applied post-matmul later.
    yd_ref[0] = jnp.dot(d.astype(jnp.bfloat16), w,
                        preferred_element_type=jnp.float32)

    # k nearest neighbours (self excluded) via k masked argmin passes.
    work = jnp.where(row == col, jnp.inf, d)
    cols = []
    for _ in range(k_nn):                                           # k_nn tiny (3)
        vmin = jnp.min(work, axis=-1, keepdims=True)                # (TM, 1)
        sel = jnp.where(work == vmin, col, n)
        idx_k = jnp.min(sel, axis=-1, keepdims=True)                # (TM, 1) int32
        cols.append(idx_k)
        work = jnp.where(col == idx_k, jnp.inf, work)
    idx_ref[0] = jnp.concatenate(cols, axis=-1)


def pdist_fc_topk(x, w_dist_bf16, k_nn):
    B, N, C = x.shape
    Dp = w_dist_bf16.shape[1]
    tm = _pick_row_tile(N, B,
                        per_row_bytes=28 * N + 8 * Dp + 64,
                        fixed_bytes=2 * (N * C * 4 + N * Dp * 2))
    n_i = pl.cdiv(N, tm)
    kern = functools.partial(_pdist_fc_topk_kernel, k_nn=k_nn)
    return pl.pallas_call(
        kern,
        out_shape=(
            jax.ShapeDtypeStruct((B, N, Dp), jnp.float32),
            jax.ShapeDtypeStruct((B, n_i, 8, 128), jnp.float32),
            jax.ShapeDtypeStruct((B, N, k_nn), jnp.int32),
        ),
        grid=(B, n_i),
        in_specs=[
            pl.BlockSpec((1, N, C), lambda b, i: (b, 0, 0)),
            pl.BlockSpec((1, tm, C), lambda b, i: (b, i, 0)),
            pl.BlockSpec((N, Dp), lambda b, i: (0, 0)),
        ],
        out_specs=(
            pl.BlockSpec((1, tm, Dp), lambda b, i: (b, i, 0)),
            pl.BlockSpec((1, 1, 8, 128), lambda b, i: (b, i, 0, 0)),
            pl.BlockSpec((1, tm, k_nn), lambda b, i: (b, i, 0)),
        ),
        compiler_params=_compiler_params(),
    )(x, x, w_dist_bf16)


# ----------------------------------------------------------------------------
# Kernel B: fused AngleEncoder + DistanceEncoder finalize + sum
# ----------------------------------------------------------------------------
def _angle_dist_kernel(xf_ref, xt_ref, v1_ref, yd_ref, sc_ref,
                       wa_ref, ba_ref, ga_ref, bta_ref,
                       bd_ref, gd_ref, btd_ref, o_ref, *, d_actual, k_nn):
    xf = xf_ref[0]                                                  # (N, C)
    xt = xt_ref[0]                                                  # (TM, C)
    wa = wa_ref[...]                                                # (N, Dp) bf16
    ba = ba_ref[...]
    ga = ga_ref[...]
    bta = bta_ref[...]
    tm = xt.shape[0]
    n = xf.shape[0]
    dp = wa.shape[1]

    # Recompute the (TM, N) distance rows from coordinates: a depth-3 matmul
    # plus a few VPU ops, far cheaper than re-reading B*N*N f32 from HBM.
    sq_f = jnp.sum(xf * xf, axis=-1, keepdims=True)
    sq_t = jnp.sum(xt * xt, axis=-1, keepdims=True)
    gram = lax.dot_general(xt, xf, (((1,), (1,)), ((), ())),
                           preferred_element_type=jnp.float32)
    i0 = pl.program_id(1) * tm
    row = lax.broadcasted_iota(jnp.int32, (tm, n), 0) + i0
    col = lax.broadcasted_iota(jnp.int32, (tm, n), 1)
    diag = row == col
    dist = jnp.sqrt(jnp.maximum(sq_t + jnp.transpose(sq_f) - 2.0 * gram, 0.0))
    dist = jnp.where(diag, 0.0, dist)
    # K-invariant reciprocal hoisted out of the K loop (single EUP pass).
    inv_dist = pl.reciprocal(dist + 1e-8, approx=True)

    def body(k, acc):
        v1k = v1_ref[k][0]                                          # (TM, C)
        dots = lax.dot_general(v1k, xf, (((1,), (1,)), ((), ())),
                               preferred_element_type=jnp.float32)  # (TM, N)
        dots = dots - jnp.sum(v1k * xt, axis=-1, keepdims=True)
        dots = jnp.where(diag, 0.0, dots)        # exact zero cosine to itself
        inv_n1 = lax.rsqrt(jnp.sum(v1k * v1k, axis=-1, keepdims=True) + 1e-16)
        cos = dots * inv_dist * inv_n1
        # F.normalize(..., dim=-1): per-row scalar commutes with the FC, so it
        # is applied to the (TM, Dp) matmul result instead of the (TM, N) tile.
        s = lax.rsqrt(jnp.maximum(jnp.sum(cos * cos, axis=-1, keepdims=True),
                                  1e-24))
        z = jnp.dot(cos.astype(jnp.bfloat16), wa,
                    preferred_element_type=jnp.float32)
        y = z * s + ba
        return jnp.maximum(acc, _ln_relu(y, ga, bta, d_actual))

    acc = lax.fori_loop(0, k_nn, body,
                        jnp.full((tm, dp), -jnp.inf, dtype=jnp.float32),
                        unroll=True)

    # DistanceEncoder finalize: (dist @ W) * (1/max) + b -> LN -> ReLU, then sum.
    yd = yd_ref[0] * sc_ref[...] + bd_ref[...]
    o_ref[0] = acc + _ln_relu(yd, gd_ref[...], btd_ref[...], d_actual)


def angle_dist_fused(x, v1, yd, scale_row, wa, ba, ga, bta, bd, gd, btd, d_actual):
    B, N, C = x.shape
    K = v1.shape[0]
    Dp = wa.shape[1]
    tm = _pick_row_tile(N, B,
                        per_row_bytes=26 * N + 16 * Dp + 128,
                        fixed_bytes=2 * (N * C * 4 + N * Dp * 2))
    n_i = pl.cdiv(N, tm)
    kern = functools.partial(_angle_dist_kernel, d_actual=d_actual, k_nn=K)
    row_spec = pl.BlockSpec((1, Dp), lambda b, i: (0, 0))
    return pl.pallas_call(
        kern,
        out_shape=jax.ShapeDtypeStruct((B, N, Dp), jnp.float32),
        grid=(B, n_i),
        in_specs=[
            pl.BlockSpec((1, N, C), lambda b, i: (b, 0, 0)),
            pl.BlockSpec((1, tm, C), lambda b, i: (b, i, 0)),
            pl.BlockSpec((K, 1, tm, C), lambda b, i: (0, b, i, 0)),
            pl.BlockSpec((1, tm, Dp), lambda b, i: (b, i, 0)),
            row_spec,                                    # scale row (1/max)
            pl.BlockSpec((N, Dp), lambda b, i: (0, 0)),  # angle FC weight
            row_spec, row_spec, row_spec,                # angle b / gamma / beta
            row_spec, row_spec, row_spec,                # dist  b / gamma / beta
        ],
        out_specs=pl.BlockSpec((1, tm, Dp), lambda b, i: (b, i, 0)),
        compiler_params=_compiler_params(),
    )(x, x, v1, yd, scale_row, wa, ba, ga, bta, bd, gd, btd)


# ----------------------------------------------------------------------------
# GeoEncoder forward (default branch: DistanceEncoder(x) + AngleEncoder(x))
# ----------------------------------------------------------------------------
def init_geo_encoder_params(key, num_element, element_dim):
    k1, k2, k3, k4 = jax.random.split(key, 4)
    bound = 1.0 / jnp.sqrt(float(num_element))      # PyTorch Linear default init
    u = lambda k, s: jax.random.uniform(k, s, jnp.float32, -bound, bound)
    return {
        # DistanceEncoder.fc
        "dist_w": u(k1, (num_element, element_dim)),
        "dist_b": u(k2, (1, element_dim)),
        "dist_g": jnp.ones((1, element_dim), jnp.float32),
        "dist_beta": jnp.zeros((1, element_dim), jnp.float32),
        # AngleEncoder.fc
        "ang_w": u(k3, (num_element, element_dim)),
        "ang_b": u(k4, (1, element_dim)),
        "ang_g": jnp.ones((1, element_dim), jnp.float32),
        "ang_beta": jnp.zeros((1, element_dim), jnp.float32),
    }


def geo_encoder_forward(x, params, angle_k=3):
    """x: (B, N, 3) float32 -> (B, N, element_dim)."""
    B, N, _ = x.shape
    D = params["dist_w"].shape[1]
    Dp = _round_up(D, 128)                          # lane-dense FC outputs

    def pad_cols(a):                                # zero-pad last dim to Dp
        return a if a.shape[-1] == Dp else jnp.pad(a, ((0, 0), (0, Dp - a.shape[-1])))

    wd = pad_cols(params["dist_w"]).astype(jnp.bfloat16)     # pre-cast to bf16
    wa = pad_cols(params["ang_w"]).astype(jnp.bfloat16)
    bd, gd, btd = (pad_cols(params["dist_b"]), pad_cols(params["dist_g"]),
                   pad_cols(params["dist_beta"]))
    ba, ga, bta = (pad_cols(params["ang_b"]), pad_cols(params["ang_g"]),
                   pad_cols(params["ang_beta"]))

    # Single fused pass over the N^2 pairwise structure. Pairwise distances are
    # translation invariant, so this equals nn_dist(x - mean(x, 1)).
    yd, blockmax, idx = pdist_fc_topk(x, wd, angle_k)

    # global max over the whole batch (matches torch dist.max()); guard /0.
    max_d = jnp.maximum(jnp.max(blockmax), 1e-12)
    scale_row = jnp.full((1, Dp), 1.0 / max_d, dtype=jnp.float32)

    # tiny (B, N, K, 3) gather in XLA: v1[k, b, i] = x[b, nbr_k(i)] - x[b, i]
    nbr = jax.vmap(lambda xb, ib: xb[ib])(x, idx)               # (B, N, K, 3)
    v1 = jnp.transpose(nbr - x[:, :, None, :], (2, 0, 1, 3))    # (K, B, N, 3)

    out = angle_dist_fused(x, v1, yd, scale_row, wa, ba, ga, bta,
                           bd, gd, btd, D)                      # (B, N, Dp)
    return out[..., :D]


# ----------------------------------------------------------------------------
if __name__ == "__main__":
    B, N, C = 2, 16, 3          # batch, num_element, coord dim
    D = 32                      # element_dim
    K = 3                       # angle_k

    key = jax.random.PRNGKey(0)
    kx, kp = jax.random.split(key)
    x = jax.random.normal(kx, (B, N, C), dtype=jnp.float32)
    params = init_geo_encoder_params(kp, num_element=N, element_dim=D)

    fwd = jax.jit(functools.partial(geo_encoder_forward, angle_k=K))
    out = fwd(x, params)
    out = jax.block_until_ready(out)

    assert out.shape == (B, N, D), out.shape
    assert bool(jnp.all(jnp.isfinite(out)))
    print("KERNEL_OK")
</pallas_src>

<mosaic_0001>
module attributes {stable_mosaic.version = 11 : i64} {
  func.func @_angle_dist_kernel(%arg0: i32, %arg1: i32, %arg2: memref<1x16x3xf32, #tpu.memory_space<vmem>>, %arg3: memref<1x16x3xf32, #tpu.memory_space<vmem>>, %arg4: memref<3x1x16x3xf32, #tpu.memory_space<vmem>>, %arg5: memref<1x16x128xf32, #tpu.memory_space<vmem>>, %arg6: memref<1x128xf32, #tpu.memory_space<vmem>>, %arg7: memref<16x128xbf16, #tpu.memory_space<vmem>>, %arg8: memref<1x128xf32, #tpu.memory_space<vmem>>, %arg9: memref<1x128xf32, #tpu.memory_space<vmem>>, %arg10: memref<1x128xf32, #tpu.memory_space<vmem>>, %arg11: memref<1x128xf32, #tpu.memory_space<vmem>>, %arg12: memref<1x128xf32, #tpu.memory_space<vmem>>, %arg13: memref<1x128xf32, #tpu.memory_space<vmem>>, %arg14: memref<1x16x128xf32, #tpu.memory_space<vmem>>) attributes {dimension_semantics = [#tpu.dimension_semantics<parallel>, #tpu.dimension_semantics<parallel>], iteration_bounds = array<i64: 2, 1>, scalar_prefetch = 0 : i64, scratch_operands = 0 : i64, tpu.core_type = #tpu.core_type<tc>, window_params = [{transform_indices = @transform_0, window_bounds = array<i64: 1, 16, 3>}, {transform_indices = @transform_1, window_bounds = array<i64: 1, 16, 3>}, {transform_indices = @transform_2, window_bounds = array<i64: 3, 1, 16, 3>}, {transform_indices = @transform_3, window_bounds = array<i64: 1, 16, 128>}, {pipeline_mode = #tpu.pipeline_mode<synchronous>, transform_indices = @transform_4, window_bounds = array<i64: 1, 128>}, {pipeline_mode = #tpu.pipeline_mode<synchronous>, transform_indices = @transform_5, window_bounds = array<i64: 16, 128>}, {pipeline_mode = #tpu.pipeline_mode<synchronous>, transform_indices = @transform_6, window_bounds = array<i64: 1, 128>}, {pipeline_mode = #tpu.pipeline_mode<synchronous>, transform_indices = @transform_7, window_bounds = array<i64: 1, 128>}, {pipeline_mode = #tpu.pipeline_mode<synchronous>, transform_indices = @transform_8, window_bounds = array<i64: 1, 128>}, {pipeline_mode = #tpu.pipeline_mode<synchronous>, transform_indices = @transform_9, window_bounds = array<i64: 1, 128>}, {pipeline_mode = #tpu.pipeline_mode<synchronous>, transform_indices = @transform_10, window_bounds = array<i64: 1, 128>}, {pipeline_mode = #tpu.pipeline_mode<synchronous>, transform_indices = @transform_11, window_bounds = array<i64: 1, 128>}, {transform_indices = @transform_12, window_bounds = array<i64: 1, 16, 128>}]} {
    %c0 = arith.constant 0 : index
    %c0_0 = arith.constant 0 : index
    %c0_1 = arith.constant 0 : index
    %0 = vector.load %arg2[%c0, %c0_0, %c0_1] : memref<1x16x3xf32, #tpu.memory_space<vmem>>, vector<1x16x3xf32>
    %1 = vector.shape_cast %0 : vector<1x16x3xf32> to vector<16x3xf32>
    %c0_2 = arith.constant 0 : index
    %c0_3 = arith.constant 0 : index
    %c0_4 = arith.constant 0 : index
    %2 = vector.load %arg3[%c0_2, %c0_3, %c0_4] : memref<1x16x3xf32, #tpu.memory_space<vmem>>, vector<1x16x3xf32>
    %3 = vector.shape_cast %2 : vector<1x16x3xf32> to vector<16x3xf32>
    %c0_5 = arith.constant 0 : index
    %c0_6 = arith.constant 0 : index
    %4 = vector.load %arg7[%c0_5, %c0_6] : memref<16x128xbf16, #tpu.memory_space<vmem>>, vector<16x128xbf16>
    %c0_7 = arith.constant 0 : index
    %c0_8 = arith.constant 0 : index
    %5 = vector.load %arg8[%c0_7, %c0_8] : memref<1x128xf32, #tpu.memory_space<vmem>>, vector<1x128xf32>
    %c0_9 = arith.constant 0 : index
    %c0_10 = arith.constant 0 : index
    %6 = vector.load %arg9[%c0_9, %c0_10] : memref<1x128xf32, #tpu.memory_space<vmem>>, vector<1x128xf32>
    %c0_11 = arith.constant 0 : index
    %c0_12 = arith.constant 0 : index
    %7 = vector.load %arg10[%c0_11, %c0_12] : memref<1x128xf32, #tpu.memory_space<vmem>>, vector<1x128xf32>
    %8 = arith.mulf %1, %1 : vector<16x3xf32>
    %cst = arith.constant dense<0.000000e+00> : vector<16xf32>
    %9 = vector.multi_reduction <add>, %8, %cst [1] : vector<16x3xf32> to vector<16xf32>
    %10 = vector.shape_cast %9 : vector<16xf32> to vector<16x1xf32>
    %11 = arith.mulf %3, %3 : vector<16x3xf32>
    %cst_13 = arith.constant dense<0.000000e+00> : vector<16xf32>
    %12 = vector.multi_reduction <add>, %11, %cst_13 [1] : vector<16x3xf32> to vector<16xf32>
    %13 = vector.shape_cast %12 : vector<16xf32> to vector<16x1xf32>
    %cst_14 = arith.constant dense<0.000000e+00> : vector<16x16xf32>
    %14 = tpu.matmul %3, %1, %cst_14 {dimension_numbers = #tpu.dot_dimension_numbers<[1], [1], [0], [0], [0, 0, 1, 0], [], []>} : vector<16x3xf32>, vector<16x3xf32>, vector<16x16xf32> -> vector<16x16xf32>
    %c16_i32 = arith.constant 16 : i32
    %15 = arith.muli %arg1, %c16_i32 : i32
    %16 = tpu.iota {dimensions = array<i32: 0>} : vector<16x16xi32>
    %17 = vector.broadcast %15 : i32 to vector<16x16xi32>
    %18 = arith.addi %16, %17 : vector<16x16xi32>
    %19 = tpu.iota {dimensions = array<i32: 1>} : vector<16x16xi32>
    %20 = arith.cmpi eq, %18, %19 : vector<16x16xi32>
    %21 = tpu.transpose %10, [1, 0] : vector<16x1xf32> -> vector<1x16xf32>
    %22 = vector.broadcast %13 : vector<16x1xf32> to vector<16x16xf32>
    %23 = vector.broadcast %21 : vector<1x16xf32> to vector<16x16xf32>
    %24 = arith.addf %22, %23 : vector<16x16xf32>
    %cst_15 = arith.constant 2.000000e+00 : f32
    %25 = vector.broadcast %cst_15 : f32 to vector<16x16xf32>
    %26 = arith.mulf %25, %14 : vector<16x16xf32>
    %27 = arith.subf %24, %26 : vector<16x16xf32>
    %cst_16 = arith.constant 0.000000e+00 : f32
    %28 = vector.broadcast %cst_16 : f32 to vector<16x16xf32>
    %29 = arith.maximumf %27, %28 : vector<16x16xf32>
    %30 = math.sqrt %29 : vector<16x16xf32>
    %cst_17 = arith.constant 0.000000e+00 : f32
    %31 = vector.broadcast %cst_17 : f32 to vector<16x16xf32>
    %32 = arith.select %20, %31, %30 : vector<16x16xi1>, vector<16x16xf32>
    %cst_18 = arith.constant 9.99999993E-9 : f32
    %33 = vector.broadcast %cst_18 : f32 to vector<16x16xf32>
    %34 = arith.addf %32, %33 : vector<16x16xf32>
    %35 = tpu.reciprocal %34 {approx = true} : vector<16x16xf32> -> vector<16x16xf32>
    %cst_19 = arith.constant 0xFF800000 : f32
    %36 = vector.broadcast %cst_19 : f32 to vector<16x128xf32>
    %c0_i32 = arith.constant 0 : i32
    %37 = arith.index_cast %c0_i32 : i32 to index
    %c0_20 = arith.constant 0 : index
    %c0_21 = arith.constant 0 : index
    %c0_22 = arith.constant 0 : index
    %38 = vector.load %arg4[%37, %c0_20, %c0_21, %c0_22] : memref<3x1x16x3xf32, #tpu.memory_space<vmem>>, vector<1x1x16x3xf32>
    %39 = vector.shape_cast %38 : vector<1x1x16x3xf32> to vector<1x16x3xf32>
    %40 = vector.shape_cast %39 : vector<1x16x3xf32> to vector<16x3xf32>
    %cst_23 = arith.constant dense<0.000000e+00> : vector<16x16xf32>
    %41 = tpu.matmul %40, %1, %cst_23 {dimension_numbers = #tpu.dot_dimension_numbers<[1], [1], [0], [0], [0, 0, 1, 0], [], []>} : vector<16x3xf32>, vector<16x3xf32>, vector<16x16xf32> -> vector<16x16xf32>
    %42 = arith.mulf %40, %3 : vector<16x3xf32>
    %cst_24 = arith.constant dense<0.000000e+00> : vector<16xf32>
    %43 = vector.multi_reduction <add>, %42, %cst_24 [1] : vector<16x3xf32> to vector<16xf32>
    %44 = vector.shape_cast %43 : vector<16xf32> to vector<16x1xf32>
    %45 = vector.broadcast %44 : vector<16x1xf32> to vector<16x16xf32>
    %46 = arith.subf %41, %45 : vector<16x16xf32>
    %cst_25 = arith.constant 0.000000e+00 : f32
    %47 = vector.broadcast %cst_25 : f32 to vector<16x16xf32>
    %48 = arith.select %20, %47, %46 : vector<16x16xi1>, vector<16x16xf32>
    %49 = arith.mulf %40, %40 : vector<16x3xf32>
    %cst_26 = arith.constant dense<0.000000e+00> : vector<16xf32>
    %50 = vector.multi_reduction <add>, %49, %cst_26 [1] : vector<16x3xf32> to vector<16xf32>
    %51 = vector.shape_cast %50 : vector<16xf32> to vector<16x1xf32>
    %cst_27 = arith.constant 1.000000e-16 : f32
    %52 = vector.broadcast %cst_27 : f32 to vector<16x1xf32>
    %53 = arith.addf %51, %52 : vector<16x1xf32>
    %54 = math.rsqrt %53 : vector<16x1xf32>
    %55 = arith.mulf %48, %35 : vector<16x16xf32>
    %56 = vector.broadcast %54 : vector<16x1xf32> to vector<16x16xf32>
    %57 = arith.mulf %55, %56 : vector<16x16xf32>
    %58 = arith.mulf %57, %57 : vector<16x16xf32>
    %cst_28 = arith.constant dense<0.000000e+00> : vector<16xf32>
    %59 = vector.multi_reduction <add>, %58, %cst_28 [1] : vector<16x16xf32> to vector<16xf32>
    %60 = vector.shape_cast %59 : vector<16xf32> to vector<16x1xf32>
    %cst_29 = arith.constant 1.000000e-24 : f32
    %61 = vector.broadcast %cst_29 : f32 to vector<16x1xf32>
    %62 = arith.maximumf %60, %61 : vector<16x1xf32>
    %63 = math.rsqrt %62 : vector<16x1xf32>
    %64 = arith.truncf %57 : vector<16x16xf32> to vector<16x16xbf16>
    %cst_30 = arith.constant dense<0.000000e+00> : vector<16x128xf32>
    %65 = tpu.matmul %64, %4, %cst_30 {dimension_numbers = #tpu.dot_dimension_numbers<[1], [0], [0], [1], [0, 0, 1, 1], [], []>} : vector<16x16xbf16>, vector<16x128xbf16>, vector<16x128xf32> -> vector<16x128xf32>
    %66 = vector.broadcast %63 : vector<16x1xf32> to vector<16x128xf32>
    %67 = arith.mulf %65, %66 : vector<16x128xf32>
    %68 = vector.broadcast %5 : vector<1x128xf32> to vector<16x128xf32>
    %69 = arith.addf %67, %68 : vector<16x128xf32>
    %cst_31 = arith.constant dense<0.000000e+00> : vector<16xf32>
    %70 = vector.multi_reduction <add>, %69, %cst_31 [1] : vector<16x128xf32> to vector<16xf32>
    %71 = vector.shape_cast %70 : vector<16xf32> to vector<16x1xf32>
    %cst_32 = arith.constant 3.125000e-02 : f32
    %72 = vector.broadcast %cst_32 : f32 to vector<16x1xf32>
    %73 = arith.mulf %71, %72 : vector<16x1xf32>
    %74 = tpu.iota {dimensions = array<i32: 1>} : vector<16x128xi32>
    %c32_i32 = arith.constant 32 : i32
    %75 = vector.broadcast %c32_i32 : i32 to vector<16x128xi32>
    %76 = arith.cmpi slt, %74, %75 : vector<16x128xi32>
    %77 = vector.broadcast %73 : vector<16x1xf32> to vector<16x128xf32>
    %78 = arith.subf %69, %77 : vector<16x128xf32>
    %cst_33 = arith.constant 0.000000e+00 : f32
    %79 = vector.broadcast %cst_33 : f32 to vector<16x128xf32>
    %80 = arith.select %76, %78, %79 : vector<16x128xi1>, vector<16x128xf32>
    %81 = arith.mulf %80, %80 : vector<16x128xf32>
    %cst_34 = arith.constant dense<0.000000e+00> : vector<16xf32>
    %82 = vector.multi_reduction <add>, %81, %cst_34 [1] : vector<16x128xf32> to vector<16xf32>
    %83 = vector.shape_cast %82 : vector<16xf32> to vector<16x1xf32>
    %cst_35 = arith.constant 3.125000e-02 : f32
    %84 = vector.broadcast %cst_35 : f32 to vector<16x1xf32>
    %85 = arith.mulf %83, %84 : vector<16x1xf32>
    %cst_36 = arith.constant 9.99999974E-6 : f32
    %86 = vector.broadcast %cst_36 : f32 to vector<16x1xf32>
    %87 = arith.addf %85, %86 : vector<16x1xf32>
    %88 = math.rsqrt %87 : vector<16x1xf32>
    %89 = vector.broadcast %88 : vector<16x1xf32> to vector<16x128xf32>
    %90 = arith.mulf %80, %89 : vector<16x128xf32>
    %91 = vector.broadcast %6 : vector<1x128xf32> to vector<16x128xf32>
    %92 = arith.mulf %90, %91 : vector<16x128xf32>
    %93 = vector.broadcast %7 : vector<1x128xf32> to vector<16x128xf32>
    %94 = arith.addf %92, %93 : vector<16x128xf32>
    %cst_37 = arith.constant 0.000000e+00 : f32
    %95 = vector.broadcast %cst_37 : f32 to vector<16x128xf32>
    %96 = arith.maximumf %94, %95 : vector<16x128xf32>
    %97 = arith.maximumf %36, %96 : vector<16x128xf32>
    %c1_i32 = arith.constant 1 : i32
    %98 = arith.index_cast %c1_i32 : i32 to index
    %c0_38 = arith.constant 0 : index
    %c0_39 = arith.constant 0 : index
    %c0_40 = arith.constant 0 : index
    %99 = vector.load %arg4[%98, %c0_38, %c0_39, %c0_40] : memref<3x1x16x3xf32, #tpu.memory_space<vmem>>, vector<1x1x16x3xf32>
    %100 = vector.shape_cast %99 : vector<1x1x16x3xf32> to vector<1x16x3xf32>
    %101 = vector.shape_cast %100 : vector<1x16x3xf32> to vector<16x3xf32>
    %cst_41 = arith.constant dense<0.000000e+00> : vector<16x16xf32>
    %102 = tpu.matmul %101, %1, %cst_41 {dimension_numbers = #tpu.dot_dimension_numbers<[1], [1], [0], [0], [0, 0, 1, 0], [], []>} : vector<16x3xf32>, vector<16x3xf32>, vector<16x16xf32> -> vector<16x16xf32>
    %103 = arith.mulf %101, %3 : vector<16x3xf32>
    %cst_42 = arith.constant dense<0.000000e+00> : vector<16xf32>
    %104 = vector.multi_reduction <add>, %103, %cst_42 [1] : vector<16x3xf32> to vector<16xf32>
    %105 = vector.shape_cast %104 : vector<16xf32> to vector<16x1xf32>
    %106 = vector.broadcast %105 : vector<16x1xf32> to vector<16x16xf32>
    %107 = arith.subf %102, %106 : vector<16x16xf32>
    %cst_43 = arith.constant 0.000000e+00 : f32
    %108 = vector.broadcast %cst_43 : f32 to vector<16x16xf32>
    %109 = arith.select %20, %108, %107 : vector<16x16xi1>, vector<16x16xf32>
    %110 = arith.mulf %101, %101 : vector<16x3xf32>
    %cst_44 = arith.constant dense<0.000000e+00> : vector<16xf32>
    %111 = vector.multi_reduction <add>, %110, %cst_44 [1] : vector<16x3xf32> to vector<16xf32>
    %112 = vector.shape_cast %111 : vector<16xf32> to vector<16x1xf32>
    %cst_45 = arith.constant 1.000000e-16 : f32
    %113 = vector.broadcast %cst_45 : f32 to vector<16x1xf32>
    %114 = arith.addf %112, %113 : vector<16x1xf32>
    %115 = math.rsqrt %114 : vector<16x1xf32>
    %116 = arith.mulf %109, %35 : vector<16x16xf32>
    %117 = vector.broadcast %115 : vector<16x1xf32> to vector<16x16xf32>
    %118 = arith.mulf %116, %117 : vector<16x16xf32>
    %119 = arith.mulf %118, %118 : vector<16x16xf32>
    %cst_46 = arith.constant dense<0.000000e+00> : vector<16xf32>
    %120 = vector.multi_reduction <add>, %119, %cst_46 [1] : vector<16x16xf32> to vector<16xf32>
    %121 = vector.shape_cast %120 : vector<16xf32> to vector<16x1xf32>
    %cst_47 = arith.constant 1.000000e-24 : f32
    %122 = vector.broadcast %cst_47 : f32 to vector<16x1xf32>
    %123 = arith.maximumf %121, %122 : vector<16x1xf32>
    %124 = math.rsqrt %123 : vector<16x1xf32>
    %125 = arith.truncf %118 : vector<16x16xf32> to vector<16x16xbf16>
    %cst_48 = arith.constant dense<0.000000e+00> : vector<16x128xf32>
    %126 = tpu.matmul %125, %4, %cst_48 {dimension_numbers = #tpu.dot_dimension_numbers<[1], [0], [0], [1], [0, 0, 1, 1], [], []>} : vector<16x16xbf16>, vector<16x128xbf16>, vector<16x128xf32> -> vector<16x128xf32>
    %127 = vector.broadcast %124 : vector<16x1xf32> to vector<16x128xf32>
    %128 = arith.mulf %126, %127 : vector<16x128xf32>
    %129 = vector.broadcast %5 : vector<1x128xf32> to vector<16x128xf32>
    %130 = arith.addf %128, %129 : vector<16x128xf32>
    %cst_49 = arith.constant dense<0.000000e+00> : vector<16xf32>
    %131 = vector.multi_reduction <add>, %130, %cst_49 [1] : vector<16x128xf32> to vector<16xf32>
    %132 = vector.shape_cast %131 : vector<16xf32> to vector<16x1xf32>
    %cst_50 = arith.constant 3.125000e-02 : f32
    %133 = vector.broadcast %cst_50 : f32 to vector<16x1xf32>
    %134 = arith.mulf %132, %133 : vector<16x1xf32>
    %135 = tpu.iota {dimensions = array<i32: 1>} : vector<16x128xi32>
    %c32_i32_51 = arith.constant 32 : i32
    %136 = vector.broadcast %c32_i32_51 : i32 to vector<16x128xi32>
    %137 = arith.cmpi slt, %135, %136 : vector<16x128xi32>
    %138 = vector.broadcast %134 : vector<16x1xf32> to vector<16x128xf32>
    %139 = arith.subf %130, %138 : vector<16x128xf32>
    %cst_52 = arith.constant 0.000000e+00 : f32
    %140 = vector.broadcast %cst_52 : f32 to vector<16x128xf32>
    %141 = arith.select %137, %139, %140 : vector<16x128xi1>, vector<16x128xf32>
    %142 = arith.mulf %141, %141 : vector<16x128xf32>
    %cst_53 = arith.constant dense<0.000000e+00> : vector<16xf32>
    %143 = vector.multi_reduction <add>, %142, %cst_53 [1] : vector<16x128xf32> to vector<16xf32>
    %144 = vector.shape_cast %143 : vector<16xf32> to vector<16x1xf32>
    %cst_54 = arith.constant 3.125000e-02 : f32
    %145 = vector.broadcast %cst_54 : f32 to vector<16x1xf32>
    %146 = arith.mulf %144, %145 : vector<16x1xf32>
    %cst_55 = arith.constant 9.99999974E-6 : f32
    %147 = vector.broadcast %cst_55 : f32 to vector<16x1xf32>
    %148 = arith.addf %146, %147 : vector<16x1xf32>
    %149 = math.rsqrt %148 : vector<16x1xf32>
    %150 = vector.broadcast %149 : vector<16x1xf32> to vector<16x128xf32>
    %151 = arith.mulf %141, %150 : vector<16x128xf32>
    %152 = vector.broadcast %6 : vector<1x128xf32> to vector<16x128xf32>
    %153 = arith.mulf %151, %152 : vector<16x128xf32>
    %154 = vector.broadcast %7 : vector<1x128xf32> to vector<16x128xf32>
    %155 = arith.addf %153, %154 : vector<16x128xf32>
    %cst_56 = arith.constant 0.000000e+00 : f32
    %156 = vector.broadcast %cst_56 : f32 to vector<16x128xf32>
    %157 = arith.maximumf %155, %156 : vector<16x128xf32>
    %158 = arith.maximumf %97, %157 : vector<16x128xf32>
    %c2_i32 = arith.constant 2 : i32
    %159 = arith.index_cast %c2_i32 : i32 to index
    %c0_57 = arith.constant 0 : index
    %c0_58 = arith.constant 0 : index
    %c0_59 = arith.constant 0 : index
    %160 = vector.load %arg4[%159, %c0_57, %c0_58, %c0_59] : memref<3x1x16x3xf32, #tpu.memory_space<vmem>>, vector<1x1x16x3xf32>
    %161 = vector.shape_cast %160 : vector<1x1x16x3xf32> to vector<1x16x3xf32>
    %162 = vector.shape_cast %161 : vector<1x16x3xf32> to vector<16x3xf32>
    %cst_60 = arith.constant dense<0.000000e+00> : vector<16x16xf32>
    %163 = tpu.matmul %162, %1, %cst_60 {dimension_numbers = #tpu.dot_dimension_numbers<[1], [1], [0], [0], [0, 0, 1, 0], [], []>} : vector<16x3xf32>, vector<16x3xf32>, vector<16x16xf32> -> vector<16x16xf32>
    %164 = arith.mulf %162, %3 : vector<16x3xf32>
    %cst_61 = arith.constant dense<0.000000e+00> : vector<16xf32>
    %165 = vector.multi_reduction <add>, %164, %cst_61 [1] : vector<16x3xf32> to vector<16xf32>
    %166 = vector.shape_cast %165 : vector<16xf32> to vector<16x1xf32>
    %167 = vector.broadcast %166 : vector<16x1xf32> to vector<16x16xf32>
    %168 = arith.subf %163, %167 : vector<16x16xf32>
    %cst_62 = arith.constant 0.000000e+00 : f32
    %169 = vector.broadcast %cst_62 : f32 to vector<16x16xf32>
    %170 = arith.select %20, %169, %168 : vector<16x16xi1>, vector<16x16xf32>
    %171 = arith.mulf %162, %162 : vector<16x3xf32>
    %cst_63 = arith.constant dense<0.000000e+00> : vector<16xf32>
    %172 = vector.multi_reduction <add>, %171, %cst_63 [1] : vector<16x3xf32> to vector<16xf32>
    %173 = vector.shape_cast %172 : vector<16xf32> to vector<16x1xf32>
    %cst_64 = arith.constant 1.000000e-16 : f32
    %174 = vector.broadcast %cst_64 : f32 to vector<16x1xf32>
    %175 = arith.addf %173, %174 : vector<16x1xf32>
    %176 = math.rsqrt %175 : vector<16x1xf32>
    %177 = arith.mulf %170, %35 : vector<16x16xf32>
    %178 = vector.broadcast %176 : vector<16x1xf32> to vector<16x16xf32>
    %179 = arith.mulf %177, %178 : vector<16x16xf32>
    %180 = arith.mulf %179, %179 : vector<16x16xf32>
    %cst_65 = arith.constant dense<0.000000e+00> : vector<16xf32>
    %181 = vector.multi_reduction <add>, %180, %cst_65 [1] : vector<16x16xf32> to vector<16xf32>
    %182 = vector.shape_cast %181 : vector<16xf32> to vector<16x1xf32>
    %cst_66 = arith.constant 1.000000e-24 : f32
    %183 = vector.broadcast %cst_66 : f32 to vector<16x1xf32>
    %184 = arith.maximumf %182, %183 : vector<16x1xf32>
    %185 = math.rsqrt %184 : vector<16x1xf32>
    %186 = arith.truncf %179 : vector<16x16xf32> to vector<16x16xbf16>
    %cst_67 = arith.constant dense<0.000000e+00> : vector<16x128xf32>
    %187 = tpu.matmul %186, %4, %cst_67 {dimension_numbers = #tpu.dot_dimension_numbers<[1], [0], [0], [1], [0, 0, 1, 1], [], []>} : vector<16x16xbf16>, vector<16x128xbf16>, vector<16x128xf32> -> vector<16x128xf32>
    %188 = vector.broadcast %185 : vector<16x1xf32> to vector<16x128xf32>
    %189 = arith.mulf %187, %188 : vector<16x128xf32>
    %190 = vector.broadcast %5 : vector<1x128xf32> to vector<16x128xf32>
    %191 = arith.addf %189, %190 : vector<16x128xf32>
    %cst_68 = arith.constant dense<0.000000e+00> : vector<16xf32>
    %192 = vector.multi_reduction <add>, %191, %cst_68 [1] : vector<16x128xf32> to vector<16xf32>
    %193 = vector.shape_cast %192 : vector<16xf32> to vector<16x1xf32>
    %cst_69 = arith.constant 3.125000e-02 : f32
    %194 = vector.broadcast %cst_69 : f32 to vector<16x1xf32>
    %195 = arith.mulf %193, %194 : vector<16x1xf32>
    %196 = tpu.iota {dimensions = array<i32: 1>} : vector<16x128xi32>
    %c32_i32_70 = arith.constant 32 : i32
    %197 = vector.broadcast %c32_i32_70 : i32 to vector<16x128xi32>
    %198 = arith.cmpi slt, %196, %197 : vector<16x128xi32>
    %199 = vector.broadcast %195 : vector<16x1xf32> to vector<16x128xf32>
    %200 = arith.subf %191, %199 : vector<16x128xf32>
    %cst_71 = arith.constant 0.000000e+00 : f32
    %201 = vector.broadcast %cst_71 : f32 to vector<16x128xf32>
    %202 = arith.select %198, %200, %201 : vector<16x128xi1>, vector<16x128xf32>
    %203 = arith.mulf %202, %202 : vector<16x128xf32>
    %cst_72 = arith.constant dense<0.000000e+00> : vector<16xf32>
    %204 = vector.multi_reduction <add>, %203, %cst_72 [1] : vector<16x128xf32> to vector<16xf32>
    %205 = vector.shape_cast %204 : vector<16xf32> to vector<16x1xf32>
    %cst_73 = arith.constant 3.125000e-02 : f32
    %206 = vector.broadcast %cst_73 : f32 to vector<16x1xf32>
    %207 = arith.mulf %205, %206 : vector<16x1xf32>
    %cst_74 = arith.constant 9.99999974E-6 : f32
    %208 = vector.broadcast %cst_74 : f32 to vector<16x1xf32>
    %209 = arith.addf %207, %208 : vector<16x1xf32>
    %210 = math.rsqrt %209 : vector<16x1xf32>
    %211 = vector.broadcast %210 : vector<16x1xf32> to vector<16x128xf32>
    %212 = arith.mulf %202, %211 : vector<16x128xf32>
    %213 = vector.broadcast %6 : vector<1x128xf32> to vector<16x128xf32>
    %214 = arith.mulf %212, %213 : vector<16x128xf32>
    %215 = vector.broadcast %7 : vector<1x128xf32> to vector<16x128xf32>
    %216 = arith.addf %214, %215 : vector<16x128xf32>
    %cst_75 = arith.constant 0.000000e+00 : f32
    %217 = vector.broadcast %cst_75 : f32 to vector<16x128xf32>
    %218 = arith.maximumf %216, %217 : vector<16x128xf32>
    %219 = arith.maximumf %158, %218 : vector<16x128xf32>
    %c3_i32 = arith.constant 3 : i32
    %c0_76 = arith.constant 0 : index
    %c0_77 = arith.constant 0 : index
    %c0_78 = arith.constant 0 : index
    %220 = vector.load %arg5[%c0_76, %c0_77, %c0_78] : memref<1x16x128xf32, #tpu.memory_space<vmem>>, vector<1x16x128xf32>
    %221 = vector.shape_cast %220 : vector<1x16x128xf32> to vector<16x128xf32>
    %c0_79 = arith.constant 0 : index
    %c0_80 = arith.constant 0 : index
    %222 = vector.load %arg6[%c0_79, %c0_80] : memref<1x128xf32, #tpu.memory_space<vmem>>, vector<1x128xf32>
    %223 = vector.broadcast %222 : vector<1x128xf32> to vector<16x128xf32>
    %224 = arith.mulf %221, %223 : vector<16x128xf32>
    %c0_81 = arith.constant 0 : index
    %c0_82 = arith.constant 0 : index
    %225 = vector.load %arg11[%c0_81, %c0_82] : memref<1x128xf32, #tpu.memory_space<vmem>>, vector<1x128xf32>
    %226 = vector.broadcast %225 : vector<1x128xf32> to vector<16x128xf32>
    %227 = arith.addf %224, %226 : vector<16x128xf32>
    %c0_83 = arith.constant 0 : index
    %c0_84 = arith.constant 0 : index
    %228 = vector.load %arg12[%c0_83, %c0_84] : memref<1x128xf32, #tpu.memory_space<vmem>>, vector<1x128xf32>
    %c0_85 = arith.constant 0 : index
    %c0_86 = arith.constant 0 : index
    %229 = vector.load %arg13[%c0_85, %c0_86] : memref<1x128xf32, #tpu.memory_space<vmem>>, vector<1x128xf32>
    %cst_87 = arith.constant dense<0.000000e+00> : vector<16xf32>
    %230 = vector.multi_reduction <add>, %227, %cst_87 [1] : vector<16x128xf32> to vector<16xf32>
    %231 = vector.shape_cast %230 : vector<16xf32> to vector<16x1xf32>
    %cst_88 = arith.constant 3.125000e-02 : f32
    %232 = vector.broadcast %cst_88 : f32 to vector<16x1xf32>
    %233 = arith.mulf %231, %232 : vector<16x1xf32>
    %234 = tpu.iota {dimensions = array<i32: 1>} : vector<16x128xi32>
    %c32_i32_89 = arith.constant 32 : i32
    %235 = vector.broadcast %c32_i32_89 : i32 to vector<16x128xi32>
    %236 = arith.cmpi slt, %234, %235 : vector<16x128xi32>
    %237 = vector.broadcast %233 : vector<16x1xf32> to vector<16x128xf32>
    %238 = arith.subf %227, %237 : vector<16x128xf32>
    %cst_90 = arith.constant 0.000000e+00 : f32
    %239 = vector.broadcast %cst_90 : f32 to vector<16x128xf32>
    %240 = arith.select %236, %238, %239 : vector<16x128xi1>, vector<16x128xf32>
    %241 = arith.mulf %240, %240 : vector<16x128xf32>
    %cst_91 = arith.constant dense<0.000000e+00> : vector<16xf32>
    %242 = vector.multi_reduction <add>, %241, %cst_91 [1] : vector<16x128xf32> to vector<16xf32>
    %243 = vector.shape_cast %242 : vector<16xf32> to vector<16x1xf32>
    %cst_92 = arith.constant 3.125000e-02 : f32
    %244 = vector.broadcast %cst_92 : f32 to vector<16x1xf32>
    %245 = arith.mulf %243, %244 : vector<16x1xf32>
    %cst_93 = arith.constant 9.99999974E-6 : f32
    %246 = vector.broadcast %cst_93 : f32 to vector<16x1xf32>
    %247 = arith.addf %245, %246 : vector<16x1xf32>
    %248 = math.rsqrt %247 : vector<16x1xf32>
    %249 = vector.broadcast %248 : vector<16x1xf32> to vector<16x128xf32>
    %250 = arith.mulf %240, %249 : vector<16x128xf32>
    %251 = vector.broadcast %228 : vector<1x128xf32> to vector<16x128xf32>
    %252 = arith.mulf %250, %251 : vector<16x128xf32>
    %253 = vector.broadcast %229 : vector<1x128xf32> to vector<16x128xf32>
    %254 = arith.addf %252, %253 : vector<16x128xf32>
    %cst_94 = arith.constant 0.000000e+00 : f32
    %255 = vector.broadcast %cst_94 : f32 to vector<16x128xf32>
    %256 = arith.maximumf %254, %255 : vector<16x128xf32>
    %257 = arith.addf %219, %256 : vector<16x128xf32>
    %c0_95 = arith.constant 0 : index
    %c0_96 = arith.constant 0 : index
    %c0_97 = arith.constant 0 : index
    %258 = vector.load %arg14[%c0_95, %c0_96, %c0_97] : memref<1x16x128xf32, #tpu.memory_space<vmem>>, vector<1x16x128xf32>
    %259 = vector.shape_cast %258 : vector<1x16x128xf32> to vector<16x128xf32>
    %260 = vector.shape_cast %257 : vector<16x128xf32> to vector<1x16x128xf32>
    tpu.vector_store %arg14[%c0_95, %c0_96, %c0_97], %260 {strides = array<i32>} : memref<1x16x128xf32, #tpu.memory_space<vmem>>, vector<1x16x128xf32>,
    return
  }
  func.func @transform_0(%arg0: i32, %arg1: i32) -> (i32, i32, i32) {
    %c0_i32 = arith.constant 0 : i32
    %c0_i32_0 = arith.constant 0 : i32
    %c0_i32_1 = arith.constant 0 : i32
    return %arg0, %c0_i32, %c0_i32_0 : i32, i32, i32
  }
  func.func @transform_1(%arg0: i32, %arg1: i32) -> (i32, i32, i32) {
    %c0_i32 = arith.constant 0 : i32
    %c0_i32_0 = arith.constant 0 : i32
    return %arg0, %arg1, %c0_i32 : i32, i32, i32
  }
  func.func @transform_2(%arg0: i32, %arg1: i32) -> (i32, i32, i32, i32) {
    %c0_i32 = arith.constant 0 : i32
    %c0_i32_0 = arith.constant 0 : i32
    %c0_i32_1 = arith.constant 0 : i32
    return %c0_i32, %arg0, %arg1, %c0_i32_0 : i32, i32, i32, i32
  }
  func.func @transform_3(%arg0: i32, %arg1: i32) -> (i32, i32, i32) {
    %c0_i32 = arith.constant 0 : i32
    %c0_i32_0 = arith.constant 0 : i32
    return %arg0, %arg1, %c0_i32 : i32, i32, i32
  }
  func.func @transform_4(%arg0: i32, %arg1: i32) -> (i32, i32) {
    %c0_i32 = arith.constant 0 : i32
    %c0_i32_0 = arith.constant 0 : i32
    %c0_i32_1 = arith.constant 0 : i32
    return %c0_i32, %c0_i32_0 : i32, i32
  }
  func.func @transform_5(%arg0: i32, %arg1: i32) -> (i32, i32) {
    %c0_i32 = arith.constant 0 : i32
    %c0_i32_0 = arith.constant 0 : i32
    %c0_i32_1 = arith.constant 0 : i32
    return %c0_i32, %c0_i32_0 : i32, i32
  }
  func.func @transform_6(%arg0: i32, %arg1: i32) -> (i32, i32) {
    %c0_i32 = arith.constant 0 : i32
    %c0_i32_0 = arith.constant 0 : i32
    %c0_i32_1 = arith.constant 0 : i32
    return %c0_i32, %c0_i32_0 : i32, i32
  }
  func.func @transform_7(%arg0: i32, %arg1: i32) -> (i32, i32) {
    %c0_i32 = arith.constant 0 : i32
    %c0_i32_0 = arith.constant 0 : i32
    %c0_i32_1 = arith.constant 0 : i32
    return %c0_i32, %c0_i32_0 : i32, i32
  }
  func.func @transform_8(%arg0: i32, %arg1: i32) -> (i32, i32) {
    %c0_i32 = arith.constant 0 : i32
    %c0_i32_0 = arith.constant 0 : i32
    %c0_i32_1 = arith.constant 0 : i32
    return %c0_i32, %c0_i32_0 : i32, i32
  }
  func.func @transform_9(%arg0: i32, %arg1: i32) -> (i32, i32) {
    %c0_i32 = arith.constant 0 : i32
    %c0_i32_0 = arith.constant 0 : i32
    %c0_i32_1 = arith.constant 0 : i32
    return %c0_i32, %c0_i32_0 : i32, i32
  }
  func.func @transform_10(%arg0: i32, %arg1: i32) -> (i32, i32) {
    %c0_i32 = arith.constant 0 : i32
    %c0_i32_0 = arith.constant 0 : i32
    %c0_i32_1 = arith.constant 0 : i32
    return %c0_i32, %c0_i32_0 : i32, i32
  }
  func.func @transform_11(%arg0: i32, %arg1: i32) -> (i32, i32) {
    %c0_i32 = arith.constant 0 : i32
    %c0_i32_0 = arith.constant 0 : i32
    %c0_i32_1 = arith.constant 0 : i32
    return %c0_i32, %c0_i32_0 : i32, i32
  }
  func.func @transform_12(%arg0: i32, %arg1: i32) -> (i32, i32, i32) {
    %c0_i32 = arith.constant 0 : i32
    %c0_i32_0 = arith.constant 0 : i32
    return %arg0, %arg1, %c0_i32 : i32, i32, i32
  }
}

module attributes {stable_mosaic.version = 11 : i64} {
  func.func @_pdist_fc_topk_kernel(%arg0: i32, %arg1: i32, %arg2: memref<1x16x3xf32, #tpu.memory_space<vmem>>, %arg3: memref<1x16x3xf32, #tpu.memory_space<vmem>>, %arg4: memref<16x128xbf16, #tpu.memory_space<vmem>>, %arg5: memref<1x16x128xf32, #tpu.memory_space<vmem>>, %arg6: memref<1x1x8x128xf32, #tpu.memory_space<vmem>>, %arg7: memref<1x16x3xi32, #tpu.memory_space<vmem>>) attributes {dimension_semantics = [#tpu.dimension_semantics<parallel>, #tpu.dimension_semantics<parallel>], iteration_bounds = array<i64: 2, 1>, scalar_prefetch = 0 : i64, scratch_operands = 0 : i64, tpu.core_type = #tpu.core_type<tc>, window_params = [{transform_indices = @transform_0, window_bounds = array<i64: 1, 16, 3>}, {transform_indices = @transform_1, window_bounds = array<i64: 1, 16, 3>}, {pipeline_mode = #tpu.pipeline_mode<synchronous>, transform_indices = @transform_2, window_bounds = array<i64: 16, 128>}, {transform_indices = @transform_3, window_bounds = array<i64: 1, 16, 128>}, {transform_indices = @transform_4, window_bounds = array<i64: 1, 1, 8, 128>}, {transform_indices = @transform_5, window_bounds = array<i64: 1, 16, 3>}]} {
    %c0 = arith.constant 0 : index
    %c0_0 = arith.constant 0 : index
    %c0_1 = arith.constant 0 : index
    %0 = vector.load %arg2[%c0, %c0_0, %c0_1] : memref<1x16x3xf32, #tpu.memory_space<vmem>>, vector<1x16x3xf32>
    %1 = vector.shape_cast %0 : vector<1x16x3xf32> to vector<16x3xf32>
    %c0_2 = arith.constant 0 : index
    %c0_3 = arith.constant 0 : index
    %c0_4 = arith.constant 0 : index
    %2 = vector.load %arg3[%c0_2, %c0_3, %c0_4] : memref<1x16x3xf32, #tpu.memory_space<vmem>>, vector<1x16x3xf32>
    %3 = vector.shape_cast %2 : vector<1x16x3xf32> to vector<16x3xf32>
    %c0_5 = arith.constant 0 : index
    %c0_6 = arith.constant 0 : index
    %4 = vector.load %arg4[%c0_5, %c0_6] : memref<16x128xbf16, #tpu.memory_space<vmem>>, vector<16x128xbf16>
    %5 = arith.mulf %1, %1 : vector<16x3xf32>
    %cst = arith.constant dense<0.000000e+00> : vector<16xf32>
    %6 = vector.multi_reduction <add>, %5, %cst [1] : vector<16x3xf32> to vector<16xf32>
    %7 = vector.shape_cast %6 : vector<16xf32> to vector<16x1xf32>
    %8 = arith.mulf %3, %3 : vector<16x3xf32>
    %cst_7 = arith.constant dense<0.000000e+00> : vector<16xf32>
    %9 = vector.multi_reduction <add>, %8, %cst_7 [1] : vector<16x3xf32> to vector<16xf32>
    %10 = vector.shape_cast %9 : vector<16xf32> to vector<16x1xf32>
    %cst_8 = arith.constant dense<0.000000e+00> : vector<16x16xf32>
    %11 = tpu.matmul %3, %1, %cst_8 {dimension_numbers = #tpu.dot_dimension_numbers<[1], [1], [0], [0], [0, 0, 1, 0], [], []>} : vector<16x3xf32>, vector<16x3xf32>, vector<16x16xf32> -> vector<16x16xf32>
    %c16_i32 = arith.constant 16 : i32
    %12 = arith.muli %arg1, %c16_i32 : i32
    %13 = tpu.iota {dimensions = array<i32: 0>} : vector<16x16xi32>
    %14 = vector.broadcast %12 : i32 to vector<16x16xi32>
    %15 = arith.addi %13, %14 : vector<16x16xi32>
    %16 = tpu.iota {dimensions = array<i32: 1>} : vector<16x16xi32>
    %17 = tpu.transpose %7, [1, 0] : vector<16x1xf32> -> vector<1x16xf32>
    %18 = vector.broadcast %10 : vector<16x1xf32> to vector<16x16xf32>
    %19 = vector.broadcast %17 : vector<1x16xf32> to vector<16x16xf32>
    %20 = arith.addf %18, %19 : vector<16x16xf32>
    %cst_9 = arith.constant 2.000000e+00 : f32
    %21 = vector.broadcast %cst_9 : f32 to vector<16x16xf32>
    %22 = arith.mulf %21, %11 : vector<16x16xf32>
    %23 = arith.subf %20, %22 : vector<16x16xf32>
    %cst_10 = arith.constant 0.000000e+00 : f32
    %24 = vector.broadcast %cst_10 : f32 to vector<16x16xf32>
    %25 = arith.maximumf %23, %24 : vector<16x16xf32>
    %26 = math.sqrt %25 : vector<16x16xf32>
    %27 = arith.cmpi eq, %15, %16 : vector<16x16xi32>
    %cst_11 = arith.constant 0.000000e+00 : f32
    %28 = vector.broadcast %cst_11 : f32 to vector<16x16xf32>
    %29 = arith.select %27, %28, %26 : vector<16x16xi1>, vector<16x16xf32>
    %c16_i32_12 = arith.constant 16 : i32
    %30 = vector.broadcast %c16_i32_12 : i32 to vector<16x16xi32>
    %31 = arith.cmpi slt, %15, %30 : vector<16x16xi32>
    %cst_13 = arith.constant 0.000000e+00 : f32
    %32 = vector.broadcast %cst_13 : f32 to vector<16x16xf32>
    %33 = arith.select %31, %29, %32 : vector<16x16xi1>, vector<16x16xf32>
    %34 = vector.shape_cast %33 : vector<16x16xf32> to vector<1x16x16xf32>
    %cst_14 = arith.constant dense<0xFF800000> : vector<1xf32>
    %35 = vector.multi_reduction <maximumf>, %34, %cst_14 [1, 2] : vector<1x16x16xf32> to vector<1xf32>
    %36 = vector.shape_cast %35 : vector<1xf32> to vector<1x1x1xf32>
    %37 = vector.extract %36[0, 0, 0] : f32 from vector<1x1x1xf32>
    %38 = vector.broadcast %37 : f32 to vector<8x128xf32>
    %c0_15 = arith.constant 0 : index
    %c0_16 = arith.constant 0 : index
    %c0_17 = arith.constant 0 : index
    %c0_18 = arith.constant 0 : index
    %39 = vector.load %arg6[%c0_15, %c0_16, %c0_17, %c0_18] : memref<1x1x8x128xf32, #tpu.memory_space<vmem>>, vector<1x1x8x128xf32>
    %40 = vector.shape_cast %39 : vector<1x1x8x128xf32> to vector<8x128xf32>
    %41 = vector.shape_cast %38 : vector<8x128xf32> to vector<1x1x8x128xf32>
    tpu.vector_store %arg6[%c0_15, %c0_16, %c0_17, %c0_18], %41 {strides = array<i32>} : memref<1x1x8x128xf32, #tpu.memory_space<vmem>>, vector<1x1x8x128xf32>,
    %42 = arith.truncf %29 : vector<16x16xf32> to vector<16x16xbf16>
    %cst_19 = arith.constant dense<0.000000e+00> : vector<16x128xf32>
    %43 = tpu.matmul %42, %4, %cst_19 {dimension_numbers = #tpu.dot_dimension_numbers<[1], [0], [0], [1], [0, 0, 1, 1], [], []>} : vector<16x16xbf16>, vector<16x128xbf16>, vector<16x128xf32> -> vector<16x128xf32>
    %c0_20 = arith.constant 0 : index
    %c0_21 = arith.constant 0 : index
    %c0_22 = arith.constant 0 : index
    %44 = vector.load %arg5[%c0_20, %c0_21, %c0_22] : memref<1x16x128xf32, #tpu.memory_space<vmem>>, vector<1x16x128xf32>
    %45 = vector.shape_cast %44 : vector<1x16x128xf32> to vector<16x128xf32>
    %46 = vector.shape_cast %43 : vector<16x128xf32> to vector<1x16x128xf32>
    tpu.vector_store %arg5[%c0_20, %c0_21, %c0_22], %46 {strides = array<i32>} : memref<1x16x128xf32, #tpu.memory_space<vmem>>, vector<1x16x128xf32>,
    %47 = arith.cmpi eq, %15, %16 : vector<16x16xi32>
    %cst_23 = arith.constant 0x7F800000 : f32
    %48 = vector.broadcast %cst_23 : f32 to vector<16x16xf32>
    %49 = arith.select %47, %48, %29 : vector<16x16xi1>, vector<16x16xf32>
    %cst_24 = arith.constant dense<0x7F800000> : vector<16xf32>
    %50 = vector.multi_reduction <minimumf>, %49, %cst_24 [1] : vector<16x16xf32> to vector<16xf32>
    %51 = vector.shape_cast %50 : vector<16xf32> to vector<16x1xf32>
    %52 = vector.broadcast %51 : vector<16x1xf32> to vector<16x16xf32>
    %53 = arith.cmpf oeq, %49, %52 : vector<16x16xf32>
    %c16_i32_25 = arith.constant 16 : i32
    %54 = vector.broadcast %c16_i32_25 : i32 to vector<16x16xi32>
    %55 = arith.select %53, %16, %54 : vector<16x16xi1>, vector<16x16xi32>
    %cst_26 = arith.constant dense<2147483647> : vector<16xi32>
    %56 = vector.multi_reduction <minsi>, %55, %cst_26 [1] : vector<16x16xi32> to vector<16xi32>
    %57 = vector.shape_cast %56 : vector<16xi32> to vector<16x1xi32>
    %58 = vector.broadcast %57 : vector<16x1xi32> to vector<16x16xi32>
    %59 = arith.cmpi eq, %16, %58 : vector<16x16xi32>
    %cst_27 = arith.constant 0x7F800000 : f32
    %60 = vector.broadcast %cst_27 : f32 to vector<16x16xf32>
    %61 = arith.select %59, %60, %49 : vector<16x16xi1>, vector<16x16xf32>
    %cst_28 = arith.constant dense<0x7F800000> : vector<16xf32>
    %62 = vector.multi_reduction <minimumf>, %61, %cst_28 [1] : vector<16x16xf32> to vector<16xf32>
    %63 = vector.shape_cast %62 : vector<16xf32> to vector<16x1xf32>
    %64 = vector.broadcast %63 : vector<16x1xf32> to vector<16x16xf32>
    %65 = arith.cmpf oeq, %61, %64 : vector<16x16xf32>
    %c16_i32_29 = arith.constant 16 : i32
    %66 = vector.broadcast %c16_i32_29 : i32 to vector<16x16xi32>
    %67 = arith.select %65, %16, %66 : vector<16x16xi1>, vector<16x16xi32>
    %cst_30 = arith.constant dense<2147483647> : vector<16xi32>
    %68 = vector.multi_reduction <minsi>, %67, %cst_30 [1] : vector<16x16xi32> to vector<16xi32>
    %69 = vector.shape_cast %68 : vector<16xi32> to vector<16x1xi32>
    %70 = vector.broadcast %69 : vector<16x1xi32> to vector<16x16xi32>
    %71 = arith.cmpi eq, %16, %70 : vector<16x16xi32>
    %cst_31 = arith.constant 0x7F800000 : f32
    %72 = vector.broadcast %cst_31 : f32 to vector<16x16xf32>
    %73 = arith.select %71, %72, %61 : vector<16x16xi1>, vector<16x16xf32>
    %cst_32 = arith.constant dense<0x7F800000> : vector<16xf32>
    %74 = vector.multi_reduction <minimumf>, %73, %cst_32 [1] : vector<16x16xf32> to vector<16xf32>
    %75 = vector.shape_cast %74 : vector<16xf32> to vector<16x1xf32>
    %76 = vector.broadcast %75 : vector<16x1xf32> to vector<16x16xf32>
    %77 = arith.cmpf oeq, %73, %76 : vector<16x16xf32>
    %c16_i32_33 = arith.constant 16 : i32
    %78 = vector.broadcast %c16_i32_33 : i32 to vector<16x16xi32>
    %79 = arith.select %77, %16, %78 : vector<16x16xi1>, vector<16x16xi32>
    %cst_34 = arith.constant dense<2147483647> : vector<16xi32>
    %80 = vector.multi_reduction <minsi>, %79, %cst_34 [1] : vector<16x16xi32> to vector<16xi32>
    %81 = vector.shape_cast %80 : vector<16xi32> to vector<16x1xi32>
    %82 = tpu.concatenate %57, %69, %81 in 1 : vector<16x1xi32>, vector<16x1xi32>, vector<16x1xi32> -> vector<16x3xi32>
    %c0_35 = arith.constant 0 : index
    %c0_36 = arith.constant 0 : index
    %c0_37 = arith.constant 0 : index
    %83 = vector.load %arg7[%c0_35, %c0_36, %c0_37] : memref<1x16x3xi32, #tpu.memory_space<vmem>>, vector<1x16x3xi32>
    %84 = vector.shape_cast %83 : vector<1x16x3xi32> to vector<16x3xi32>
    %85 = vector.shape_cast %82 : vector<16x3xi32> to vector<1x16x3xi32>
    tpu.vector_store %arg7[%c0_35, %c0_36, %c0_37], %85 {strides = array<i32>} : memref<1x16x3xi32, #tpu.memory_space<vmem>>, vector<1x16x3xi32>,
    return
  }
  func.func @transform_0(%arg0: i32, %arg1: i32) -> (i32, i32, i32) {
    %c0_i32 = arith.constant 0 : i32
    %c0_i32_0 = arith.constant 0 : i32
    %c0_i32_1 = arith.constant 0 : i32
    return %arg0, %c0_i32, %c0_i32_0 : i32, i32, i32
  }
  func.func @transform_1(%arg0: i32, %arg1: i32) -> (i32, i32, i32) {
    %c0_i32 = arith.constant 0 : i32
    %c0_i32_0 = arith.constant 0 : i32
    return %arg0, %arg1, %c0_i32 : i32, i32, i32
  }
  func.func @transform_2(%arg0: i32, %arg1: i32) -> (i32, i32) {
    %c0_i32 = arith.constant 0 : i32
    %c0_i32_0 = arith.constant 0 : i32
    %c0_i32_1 = arith.constant 0 : i32
    return %c0_i32, %c0_i32_0 : i32, i32
  }
  func.func @transform_3(%arg0: i32, %arg1: i32) -> (i32, i32, i32) {
    %c0_i32 = arith.constant 0 : i32
    %c0_i32_0 = arith.constant 0 : i32
    return %arg0, %arg1, %c0_i32 : i32, i32, i32
  }
  func.func @transform_4(%arg0: i32, %arg1: i32) -> (i32, i32, i32, i32) {
    %c0_i32 = arith.constant 0 : i32
    %c0_i32_0 = arith.constant 0 : i32
    %c0_i32_1 = arith.constant 0 : i32
    return %arg0, %arg1, %c0_i32, %c0_i32_0 : i32, i32, i32, i32
  }
  func.func @transform_5(%arg0: i32, %arg1: i32) -> (i32, i32, i32) {
    %c0_i32 = arith.constant 0 : i32
    %c0_i32_0 = arith.constant 0 : i32
    return %arg0, %arg1, %c0_i32 : i32, i32, i32
  }
}

</mosaic_0001>

<llo_original>
// kernel: geo_encoder_forward.3
$region0: #{geo_encoder_forward.3}
  #allocation0 [shape = 'u32[]', space=smem, size = 0x4, offset = 0x4, fixed_abs, tag = 'smem constant byte address 0x4 - core index']
  #allocation1 [shape = 'u32[144,128]{1,0:T(1,128)}', space=vmem, size = 0x12000, scoped, tag = 'internal scratch']
  %s0 = inlined_call_operand.vmem [shape: f32[2,16,3], index: 0, kind: input, shape index: {}, may-alias: {0,1}]
  %s1 = inlined_call_operand.vmem [shape: f32[2,16,3], index: 1, kind: input, shape index: {}, may-alias: {0,1}]
  %s2 = inlined_call_operand.vmem [shape: f32[3,2,16,3], index: 2, kind: input, shape index: {}]
  %s3 = inlined_call_operand.vmem [shape: f32[2,16,128], index: 3, kind: input, shape index: {}]
  %s4 = inlined_call_operand.vmem [shape: f32[1,128], index: 4, kind: input, shape index: {}]
  %s5 = inlined_call_operand.vmem [shape: bf16[16,128], index: 5, kind: input, shape index: {}]
  %s6 = inlined_call_operand.vmem [shape: f32[1,128], index: 6, kind: input, shape index: {}]
  %s7 = inlined_call_operand.vmem [shape: f32[1,128], index: 7, kind: input, shape index: {}]
  %s8 = inlined_call_operand.vmem [shape: f32[1,128], index: 8, kind: input, shape index: {}]
  %s9 = inlined_call_operand.vmem [shape: f32[1,128], index: 9, kind: input, shape index: {}]
  %s10 = inlined_call_operand.vmem [shape: f32[1,128], index: 10, kind: input, shape index: {}]
  %s11 = inlined_call_operand.vmem [shape: f32[1,128], index: 11, kind: input, shape index: {}]
  %s12 = inlined_call_operand.hbm [shape: f32[2,16,128], index: 12, kind: output, shape index: {}]
  %s13 = sld [smem:[#allocation0]]
  $region119: #{geo_encoder_forward.3} parent=0
    _
  %s15 = ssub.s32 1, %s13
  %s16 = scalar_select 0, %s15, %s13
  $region1: #{geo_encoder_forward.3} parent=0
    #allocation2 [shape = 'u8[49152]{0}', space=vmem, size = 0xc000, scoped, tag = 'input window, operand 2']
    #allocation3 [shape = 'u8[16384]{0}', space=vmem, size = 0x4000, scoped, tag = 'output window, operand 0']
    #allocation4 [shape = 's32[2]{0}', space=sflag, size = 0x8, scoped, tag = 'scoped memory for geo_encoder_forward.3']
    %17 = vsyncpa [#allocation4], 0
    %s18 = scalar_lea.sflag [#allocation4], 1
    %19 = vsyncpa %s18, 0
    loop: start=0, step=1, limit=4
    $region2: #{geo_encoder_forward.3} parent=1 // loop_pre_header
      _
    $region3: #{geo_encoder_forward.3} parent=1 // loop_header
      %s21 = sphi 0, %s25
      %p22 = scmp.ge.s32.totalorder %s21, 4
      %s28 = sphi 0, %s40
      %s29 = sphi 0, %s36
      %s30 = sphi 0, %s28
      %s31 = sphi 0, %s29
      %s32 = sphi 0, %s30
      %s33 = sphi 0, %s31
      %s43 = sphi 0, %s45
      %s46 = sphi 0, %s43
      %s47 = sphi 0, %s46
      %s63 = sphi 0, %s47
      %s71 = sphi 0, %s73
      %s74 = sphi 0, %s71
      %s75 = sphi 0, %s74
      %s91 = sphi 0, %s75
      %s99 = sphi 0, %s101
      %s102 = sphi 0, %s99
      %s103 = sphi 0, %s102
      %s119 = sphi 0, %s103
      %s127 = sphi 0, %s129
      %s130 = sphi 0, %s127
      %s131 = sphi 0, %s130
      %s147 = sphi 0, %s131
      %s151 = sphi 0, %s151
      %s153 = sphi 0, %s151
      %s154 = sphi 0, %s153
      %s168 = sphi 0, %s154
      %s172 = sphi 0, %s172
      %s174 = sphi 0, %s172
      %s175 = sphi 0, %s174
      %s189 = sphi 0, %s175
      %s193 = sphi 0, %s193
      %s195 = sphi 0, %s193
      %s196 = sphi 0, %s195
      %s210 = sphi 0, %s196
      %s214 = sphi 0, %s214
      %s216 = sphi 0, %s214
      %s217 = sphi 0, %s216
      %s231 = sphi 0, %s217
      %s235 = sphi 0, %s235
      %s237 = sphi 0, %s235
      %s238 = sphi 0, %s237
      %s252 = sphi 0, %s238
      %s256 = sphi 0, %s256
      %s258 = sphi 0, %s256
      %s259 = sphi 0, %s258
      %s273 = sphi 0, %s259
      %s277 = sphi 0, %s277
      %s279 = sphi 0, %s277
      %s280 = sphi 0, %s279
      %s294 = sphi 0, %s280
      %s298 = sphi 0, %s298
      %s300 = sphi 0, %s298
      %s301 = sphi 0, %s300
      %s315 = sphi 0, %s301
      %s323 = sphi 0, %s325
      %s326 = sphi 0, %s323
      %s327 = sphi 0, %s326
      %s343 = sphi 0, %s327
    $region4: #{geo_encoder_forward.3} parent=1 // loop_header_branch
      %24 = sbr.rel (%p22) target = $region8
    $region5: #{geo_encoder_forward.3} parent=1 // loop_body
      %s26 = ssub.s32 %s21, 1
      %s27 = ssub.s32 %s21, 2
      %s34 = sadd.s32 1, %s29
      %p35 = scmp.ge.s32.totalorder %s34, 1
      %s36 = scalar_select %p35, 0, %s34
      %s37 = sadd.s32 1, %s28
      %s38 = scalar_select %p35, %s37, %s28
      %p39 = scmp.ge.s32.totalorder %s38, 2
      %s40 = scalar_select %p39, 0, %s38
      %s41 = ssub.s32 %s28, %s40
      %p42 = scmp.eq.s32.totalorder %s41, 0
      %s44 = sadd.s32 %s43, 1
      %s45 = scalar_select %p42, %s43, %s44
      %p48 = pneg %p42
      %p49 = scmp.eq.s32.totalorder %s21, 1
      %p50 = por %p48, %p49
      %p51 = scmp.ne.s32.totalorder %s43, %s46
      %p52 = scmp.eq.s32.totalorder %s21, 0
      %p53 = por %p51, %p52
      %p54 = scmp.ne.s32.totalorder %s43, %s46
      %p55 = scmp.eq.s32.totalorder %s26, 1
      %p56 = por %p54, %p55
      %p57 = scmp.ne.s32.totalorder %s46, %s47
      %p58 = scmp.eq.s32.totalorder %s26, 0
      %p59 = por %p57, %p58
      %p60 = scmp.ne.s32.totalorder %s46, %s47
      %p61 = scmp.eq.s32.totalorder %s27, 1
      %p62 = por %p60, %p61
      %p64 = scmp.ne.s32.totalorder %s47, %s63
      %p65 = scmp.eq.s32.totalorder %s27, 0
      %p66 = por %p64, %p65
      %s67 = ssub.s32 %s28, %s40
      %s68 = ssub.s32 %s29, %s36
      %s69 = sor.u32 %s67, %s68
      %p70 = scmp.eq.s32.totalorder %s69, 0
      %s72 = sadd.s32 %s71, 1
      %s73 = scalar_select %p70, %s71, %s72
      %p76 = pneg %p70
      %p77 = scmp.eq.s32.totalorder %s21, 1
      %p78 = por %p76, %p77
      %p79 = scmp.ne.s32.totalorder %s71, %s74
      %p80 = scmp.eq.s32.totalorder %s21, 0
      %p81 = por %p79, %p80
      %p82 = scmp.ne.s32.totalorder %s71, %s74
      %p83 = scmp.eq.s32.totalorder %s26, 1
      %p84 = por %p82, %p83
      %p85 = scmp.ne.s32.totalorder %s74, %s75
      %p86 = scmp.eq.s32.totalorder %s26, 0
      %p87 = por %p85, %p86
      %p88 = scmp.ne.s32.totalorder %s74, %s75
      %p89 = scmp.eq.s32.totalorder %s27, 1
      %p90 = por %p88, %p89
      %p92 = scmp.ne.s32.totalorder %s75, %s91
      %p93 = scmp.eq.s32.totalorder %s27, 0
      %p94 = por %p92, %p93
      %s95 = ssub.s32 %s28, %s40
      %s96 = ssub.s32 %s29, %s36
      %s97 = sor.u32 %s95, %s96
      %p98 = scmp.eq.s32.totalorder %s97, 0
      %s100 = sadd.s32 %s99, 1
      %s101 = scalar_select %p98, %s99, %s100
      %p104 = pneg %p98
      %p105 = scmp.eq.s32.totalorder %s21, 1
      %p106 = por %p104, %p105
      %p107 = scmp.ne.s32.totalorder %s99, %s102
      %p108 = scmp.eq.s32.totalorder %s21, 0
      %p109 = por %p107, %p108
      %p110 = scmp.ne.s32.totalorder %s99, %s102
      %p111 = scmp.eq.s32.totalorder %s26, 1
      %p112 = por %p110, %p111
      %p113 = scmp.ne.s32.totalorder %s102, %s103
      %p114 = scmp.eq.s32.totalorder %s26, 0
      %p115 = por %p113, %p114
      %p116 = scmp.ne.s32.totalorder %s102, %s103
      %p117 = scmp.eq.s32.totalorder %s27, 1
      %p118 = por %p116, %p117
      %p120 = scmp.ne.s32.totalorder %s103, %s119
      %p121 = scmp.eq.s32.totalorder %s27, 0
      %p122 = por %p120, %p121
      %s123 = ssub.s32 %s28, %s40
      %s124 = ssub.s32 %s29, %s36
      %s125 = sor.u32 %s123, %s124
      %p126 = scmp.eq.s32.totalorder %s125, 0
      %s128 = sadd.s32 %s127, 1
      %s129 = scalar_select %p126, %s127, %s128
      %p132 = pneg %p126
      %p133 = scmp.eq.s32.totalorder %s21, 1
      %p134 = por %p132, %p133
      %p135 = scmp.ne.s32.totalorder %s127, %s130
      %p136 = scmp.eq.s32.totalorder %s21, 0
      %p137 = por %p135, %p136
      %p138 = scmp.ne.s32.totalorder %s127, %s130
      %p139 = scmp.eq.s32.totalorder %s26, 1
      %p140 = por %p138, %p139
      %p141 = scmp.ne.s32.totalorder %s130, %s131
      %p142 = scmp.eq.s32.totalorder %s26, 0
      %p143 = por %p141, %p142
      %p144 = scmp.ne.s32.totalorder %s130, %s131
      %p145 = scmp.eq.s32.totalorder %s27, 1
      %p146 = por %p144, %p145
      %p148 = scmp.ne.s32.totalorder %s131, %s147
      %p149 = scmp.eq.s32.totalorder %s27, 0
      %p150 = por %p148, %p149
      %s152 = sadd.s32 %s151, 1
      %p155 = scmp.eq.s32.totalorder %s21, 1
      %p156 = scmp.ne.s32.totalorder %s151, %s153
      %p157 = scmp.eq.s32.totalorder %s21, 0
      %p158 = por %p156, %p157
      %p159 = scmp.ne.s32.totalorder %s151, %s153
      %p160 = scmp.eq.s32.totalorder %s26, 1
      %p161 = por %p159, %p160
      %p162 = scmp.ne.s32.totalorder %s153, %s154
      %p163 = scmp.eq.s32.totalorder %s26, 0
      %p164 = por %p162, %p163
      %p165 = scmp.ne.s32.totalorder %s153, %s154
      %p166 = scmp.eq.s32.totalorder %s27, 1
      %p167 = por %p165, %p166
      %p169 = scmp.ne.s32.totalorder %s154, %s168
      %p170 = scmp.eq.s32.totalorder %s27, 0
      %p171 = por %p169, %p170
      %s173 = sadd.s32 %s172, 1
      %p176 = scmp.eq.s32.totalorder %s21, 1
      %p177 = scmp.ne.s32.totalorder %s172, %s174
      %p178 = scmp.eq.s32.totalorder %s21, 0
      %p179 = por %p177, %p178
      %p180 = scmp.ne.s32.totalorder %s172, %s174
      %p181 = scmp.eq.s32.totalorder %s26, 1
      %p182 = por %p180, %p181
      %p183 = scmp.ne.s32.totalorder %s174, %s175
      %p184 = scmp.eq.s32.totalorder %s26, 0
      %p185 = por %p183, %p184
      %p186 = scmp.ne.s32.totalorder %s174, %s175
      %p187 = scmp.eq.s32.totalorder %s27, 1
      %p188 = por %p186, %p187
      %p190 = scmp.ne.s32.totalorder %s175, %s189
      %p191 = scmp.eq.s32.totalorder %s27, 0
      %p192 = por %p190, %p191
      %s194 = sadd.s32 %s193, 1
      %p197 = scmp.eq.s32.totalorder %s21, 1
      %p198 = scmp.ne.s32.totalorder %s193, %s195
      %p199 = scmp.eq.s32.totalorder %s21, 0
      %p200 = por %p198, %p199
      %p201 = scmp.ne.s32.totalorder %s193, %s195
      %p202 = scmp.eq.s32.totalorder %s26, 1
      %p203 = por %p201, %p202
      %p204 = scmp.ne.s32.totalorder %s195, %s196
      %p205 = scmp.eq.s32.totalorder %s26, 0
      %p206 = por %p204, %p205
      %p207 = scmp.ne.s32.totalorder %s195, %s196
      %p208 = scmp.eq.s32.totalorder %s27, 1
      %p209 = por %p207, %p208
      %p211 = scmp.ne.s32.totalorder %s196, %s210
      %p212 = scmp.eq.s32.totalorder %s27, 0
      %p213 = por %p211, %p212
      %s215 = sadd.s32 %s214, 1
      %p218 = scmp.eq.s32.totalorder %s21, 1
      %p219 = scmp.ne.s32.totalorder %s214, %s216
      %p220 = scmp.eq.s32.totalorder %s21, 0
      %p221 = por %p219, %p220
      %p222 = scmp.ne.s32.totalorder %s214, %s216
      %p223 = scmp.eq.s32.totalorder %s26, 1
      %p224 = por %p222, %p223
      %p225 = scmp.ne.s32.totalorder %s216, %s217
      %p226 = scmp.eq.s32.totalorder %s26, 0
      %p227 = por %p225, %p226
      %p228 = scmp.ne.s32.totalorder %s216, %s217
      %p229 = scmp.eq.s32.totalorder %s27, 1
      %p230 = por %p228, %p229
      %p232 = scmp.ne.s32.totalorder %s217, %s231
      %p233 = scmp.eq.s32.totalorder %s27, 0
      %p234 = por %p232, %p233
      %s236 = sadd.s32 %s235, 1
      %p239 = scmp.eq.s32.totalorder %s21, 1
      %p240 = scmp.ne.s32.totalorder %s235, %s237
      %p241 = scmp.eq.s32.totalorder %s21, 0
      %p242 = por %p240, %p241
      %p243 = scmp.ne.s32.totalorder %s235, %s237
      %p244 = scmp.eq.s32.totalorder %s26, 1
      %p245 = por %p243, %p244
      %p246 = scmp.ne.s32.totalorder %s237, %s238
      %p247 = scmp.eq.s32.totalorder %s26, 0
      %p248 = por %p246, %p247
      %p249 = scmp.ne.s32.totalorder %s237, %s238
      %p250 = scmp.eq.s32.totalorder %s27, 1
      %p251 = por %p249, %p250
      %p253 = scmp.ne.s32.totalorder %s238, %s252
      %p254 = scmp.eq.s32.totalorder %s27, 0
      %p255 = por %p253, %p254
      %s257 = sadd.s32 %s256, 1
      %p260 = scmp.eq.s32.totalorder %s21, 1
      %p261 = scmp.ne.s32.totalorder %s256, %s258
      %p262 = scmp.eq.s32.totalorder %s21, 0
      %p263 = por %p261, %p262
      %p264 = scmp.ne.s32.totalorder %s256, %s258
      %p265 = scmp.eq.s32.totalorder %s26, 1
      %p266 = por %p264, %p265
      %p267 = scmp.ne.s32.totalorder %s258, %s259
      %p268 = scmp.eq.s32.totalorder %s26, 0
      %p269 = por %p267, %p268
      %p270 = scmp.ne.s32.totalorder %s258, %s259
      %p271 = scmp.eq.s32.totalorder %s27, 1
      %p272 = por %p270, %p271
      %p274 = scmp.ne.s32.totalorder %s259, %s273
      %p275 = scmp.eq.s32.totalorder %s27, 0
      %p276 = por %p274, %p275
      %s278 = sadd.s32 %s277, 1
      %p281 = scmp.eq.s32.totalorder %s21, 1
      %p282 = scmp.ne.s32.totalorder %s277, %s279
      %p283 = scmp.eq.s32.totalorder %s21, 0
      %p284 = por %p282, %p283
      %p285 = scmp.ne.s32.totalorder %s277, %s279
      %p286 = scmp.eq.s32.totalorder %s26, 1
      %p287 = por %p285, %p286
      %p288 = scmp.ne.s32.totalorder %s279, %s280
      %p289 = scmp.eq.s32.totalorder %s26, 0
      %p290 = por %p288, %p289
      %p291 = scmp.ne.s32.totalorder %s279, %s280
      %p292 = scmp.eq.s32.totalorder %s27, 1
      %p293 = por %p291, %p292
      %p295 = scmp.ne.s32.totalorder %s280, %s294
      %p296 = scmp.eq.s32.totalorder %s27, 0
      %p297 = por %p295, %p296
      %s299 = sadd.s32 %s298, 1
      %p302 = scmp.eq.s32.totalorder %s21, 1
      %p303 = scmp.ne.s32.totalorder %s298, %s300
      %p304 = scmp.eq.s32.totalorder %s21, 0
      %p305 = por %p303, %p304
      %p306 = scmp.ne.s32.totalorder %s298, %s300
      %p307 = scmp.eq.s32.totalorder %s26, 1
      %p308 = por %p306, %p307
      %p309 = scmp.ne.s32.totalorder %s300, %s301
      %p310 = scmp.eq.s32.totalorder %s26, 0
      %p311 = por %p309, %p310
      %p312 = scmp.ne.s32.totalorder %s300, %s301
      %p313 = scmp.eq.s32.totalorder %s27, 1
      %p314 = por %p312, %p313
      %p316 = scmp.ne.s32.totalorder %s301, %s315
      %p317 = scmp.eq.s32.totalorder %s27, 0
      %p318 = por %p316, %p317
      %s319 = ssub.s32 %s28, %s40
      %s320 = ssub.s32 %s29, %s36
      %s321 = sor.u32 %s319, %s320
      %p322 = scmp.eq.s32.totalorder %s321, 0
      %s324 = sadd.s32 %s323, 1
      %s325 = scalar_select %p322, %s323, %s324
      %p328 = pneg %p322
      %p329 = scmp.eq.s32.totalorder %s21, 1
      %p330 = por %p328, %p329
      %p331 = scmp.ne.s32.totalorder %s323, %s326
      %p332 = scmp.eq.s32.totalorder %s21, 0
      %p333 = por %p331, %p332
      %p334 = scmp.ne.s32.totalorder %s323, %s326
      %p335 = scmp.eq.s32.totalorder %s26, 1
      %p336 = por %p334, %p335
      %p337 = scmp.ne.s32.totalorder %s326, %s327
      %p338 = scmp.eq.s32.totalorder %s26, 0
      %p339 = por %p337, %p338
      %p340 = scmp.ne.s32.totalorder %s326, %s327
      %p341 = scmp.eq.s32.totalorder %s27, 1
      %p342 = por %p340, %p341
      %p344 = scmp.ne.s32.totalorder %s327, %s343
      %p345 = scmp.eq.s32.totalorder %s27, 0
      %p346 = por %p344, %p345
      %p347 = scmp.le.s32.totalorder 1, %s21
      %p348 = scmp.lt.s32.totalorder %s21, 3
      %p349 = pnand %p347, %p348
      %p350 = pneg %p349
      // Predicated region
      $region9: #{geo_encoder_forward.3} parent=5 // pred_check
        _
      $region10: #{geo_encoder_forward.3} parent=5 // pred_check_branch
        %352 = sbr.rel (%p349) target = $region12
      $region11: #{geo_encoder_forward.3} parent=5 // pred_region
        %s353 = ssub.s32 %s21, 1
        // Predicated region
        $region13: #{geo_encoder_forward.3} parent=11 // pred_check
          %p354 = pneg %p164
        $region14: #{geo_encoder_forward.3} parent=11 // pred_check_branch
          %356 = sbr.rel (%p354) target = $region16
        $region15: #{geo_encoder_forward.3} parent=11 // pred_region
          _
        $region16: #{geo_encoder_forward.3} parent=11 // pred_fallthru
          _
        // Predicated region
        $region17: #{geo_encoder_forward.3} parent=11 // pred_check
          %p357 = pneg %p185
        $region18: #{geo_encoder_forward.3} parent=11 // pred_check_branch
          %359 = sbr.rel (%p357) target = $region20
        $region19: #{geo_encoder_forward.3} parent=11 // pred_region
          _
        $region20: #{geo_encoder_forward.3} parent=11 // pred_fallthru
          _
        // Predicated region
        $region21: #{geo_encoder_forward.3} parent=11 // pred_check
          %p360 = pneg %p206
        $region22: #{geo_encoder_forward.3} parent=11 // pred_check_branch
          %362 = sbr.rel (%p360) target = $region24
        $region23: #{geo_encoder_forward.3} parent=11 // pred_region
          _
        $region24: #{geo_encoder_forward.3} parent=11 // pred_fallthru
          _
        // Predicated region
        $region25: #{geo_encoder_forward.3} parent=11 // pred_check
          %p363 = pneg %p227
        $region26: #{geo_encoder_forward.3} parent=11 // pred_check_branch
          %365 = sbr.rel (%p363) target = $region28
        $region27: #{geo_encoder_forward.3} parent=11 // pred_region
          _
        $region28: #{geo_encoder_forward.3} parent=11 // pred_fallthru
          _
        // Predicated region
        $region29: #{geo_encoder_forward.3} parent=11 // pred_check
          %p366 = pneg %p248
        $region30: #{geo_encoder_forward.3} parent=11 // pred_check_branch
          %368 = sbr.rel (%p366) target = $region32
        $region31: #{geo_encoder_forward.3} parent=11 // pred_region
          _
        $region32: #{geo_encoder_forward.3} parent=11 // pred_fallthru
          _
        // Predicated region
        $region33: #{geo_encoder_forward.3} parent=11 // pred_check
          %p369 = pneg %p269
        $region34: #{geo_encoder_forward.3} parent=11 // pred_check_branch
          %371 = sbr.rel (%p369) target = $region36
        $region35: #{geo_encoder_forward.3} parent=11 // pred_region
          _
        $region36: #{geo_encoder_forward.3} parent=11 // pred_fallthru
          _
        // Predicated region
        $region37: #{geo_encoder_forward.3} parent=11 // pred_check
          %p372 = pneg %p290
        $region38: #{geo_encoder_forward.3} parent=11 // pred_check_branch
          %374 = sbr.rel (%p372) target = $region40
        $region39: #{geo_encoder_forward.3} parent=11 // pred_region
          _
        $region40: #{geo_encoder_forward.3} parent=11 // pred_fallthru
          _
        // Predicated region
        $region41: #{geo_encoder_forward.3} parent=11 // pred_check
          %p375 = pneg %p311
        $region42: #{geo_encoder_forward.3} parent=11 // pred_check_branch
          %377 = sbr.rel (%p375) target = $region44
        $region43: #{geo_encoder_forward.3} parent=11 // pred_region
          _
        $region44: #{geo_encoder_forward.3} parent=11 // pred_fallthru
          _
      $region12: #{geo_encoder_forward.3} parent=5 // pred_fallthru
        _
      %p378 = scmp.lt.s32.totalorder %s21, 2
      // Predicated region
      $region45: #{geo_encoder_forward.3} parent=5 // pred_check
        %p379 = pneg %p378
      $region46: #{geo_encoder_forward.3} parent=5 // pred_check_branch
        %381 = sbr.rel (%p379) target = $region48
      $region47: #{geo_encoder_forward.3} parent=5 // pred_region
        // Predicated region
        $region49: #{geo_encoder_forward.3} parent=47 // pred_check
          %p382 = pneg %p53
        $region50: #{geo_encoder_forward.3} parent=47 // pred_check_branch
          %384 = sbr.rel (%p382) target = $region52
        $region51: #{geo_encoder_forward.3} parent=47 // pred_region
          %p385 = scmp.lt.s32.totalorder %s28, 1
          %s386 = scalar_select %p385, %s28, 1
          %s387 = smul.addr %s386, 2
          %s388 = smul.addr %s387, 8
          %s389 = scalar_lea.vmem %s0, %s388
        $region52: #{geo_encoder_forward.3} parent=47 // pred_fallthru
          _
        // Predicated region
        $region53: #{geo_encoder_forward.3} parent=47 // pred_check
          %p390 = pneg %p81
        $region54: #{geo_encoder_forward.3} parent=47 // pred_check_branch
          %392 = sbr.rel (%p390) target = $region56
        $region55: #{geo_encoder_forward.3} parent=47 // pred_region
          %s393 = smul.u32 2, %s29
          %p394 = scmp.lt.s32.totalorder %s28, 1
          %s395 = scalar_select %p394, %s28, 1
          %p396 = scmp.lt.s32.totalorder %s393, 1
          %s397 = scalar_select %p396, %s393, 1
          %s398 = smul.addr %s395, 2
          %s399 = sadd.s32 %s397, %s398
          %s400 = smul.addr %s399, 8
          %s401 = scalar_lea.vmem %s1, %s400
          %s402 = smul.u32 2, %s29
        $region56: #{geo_encoder_forward.3} parent=47 // pred_fallthru
          _
        // Predicated region
        $region57: #{geo_encoder_forward.3} parent=47 // pred_check
          %p403 = pneg %p109
        $region58: #{geo_encoder_forward.3} parent=47 // pred_check_branch
          %405 = sbr.rel (%p403) target = $region60
        $region59: #{geo_encoder_forward.3} parent=47 // pred_region
          %s406 = sand.u32 %s99, 1
          %s407 = sand.u32 %s99, 1
          %s408 = smul.addr %s407, 48
          %s409 = scalar_lea.vmem [#allocation2], %s408
          %s410 = smul.u32 2, %s29
          %s411 = smul.addr %s28, 2
          %s412 = sadd.s32 %s410, %s411
          %s413 = smul.addr %s412, 8
          %s414 = scalar_lea.vmem %s2, %s413
          // Predicated region
          $region61: #{geo_encoder_forward.3} parent=59 // pred_check
            _
          $region62: #{geo_encoder_forward.3} parent=59 // pred_check_branch
            %416 = sbr.rel (0) target = $region64
          $region63: #{geo_encoder_forward.3} parent=59 // pred_region
            // Predicated region
            $region65: #{geo_encoder_forward.3} parent=63 // pred_check
              _
            $region66: #{geo_encoder_forward.3} parent=63 // pred_check_branch
              %418 = sbr.rel (0) target = $region68
            $region67: #{geo_encoder_forward.3} parent=63 // pred_region
              // Predicated region
              $region80: #{geo_encoder_forward.3} parent=67 // pred_check
                _
              $region81: #{geo_encoder_forward.3} parent=67 // pred_check_branch
                %443 = sbr.rel (0) target = $region83
              $region82: #{geo_encoder_forward.3} parent=67 // pred_region
                loop: start=0, step=1, limit=1
                $region84: #{geo_encoder_forward.3} parent=82 // loop_pre_header
                  _
                $region85: #{geo_encoder_forward.3} parent=82 // loop_header
                  %s445 = sphi 0, %s449
                  %p446 = scmp.ge.s32.totalorder %s445, 1
                  %s450 = sphi %s414, %s414
                  %s451 = sphi %s409, %s409
                $region86: #{geo_encoder_forward.3} parent=82 // loop_header_branch
                  %448 = sbr.rel (%p446) target = $region90
                $region87: #{geo_encoder_forward.3} parent=82 // loop_body
                  %v452 = vld [vmem:[%s450] sm:$0xff]
                  %453 = vst [vmem:[%s451] sm:$0xff] %v452
                  %v454 = vld [vmem:[%s450 + $0x8] sm:$0xff]
                  %455 = vst [vmem:[%s451 + $0x8] sm:$0xff] %v454
                  %v456 = vld [vmem:[%s450 + $0x20] sm:$0xff]
                  %457 = vst [vmem:[%s451 + $0x10] sm:$0xff] %v456
                  %v458 = vld [vmem:[%s450 + $0x28] sm:$0xff]
                  %459 = vst [vmem:[%s451 + $0x18] sm:$0xff] %v458
                  %v460 = vld [vmem:[%s450 + $0x40] sm:$0xff]
                  %461 = vst [vmem:[%s451 + $0x20] sm:$0xff] %v460
                  %v462 = vld [vmem:[%s450 + $0x48] sm:$0xff]
                  %463 = vst [vmem:[%s451 + $0x28] sm:$0xff] %v462
                $region88: #{geo_encoder_forward.3} parent=82 // loop_footer
                  %s449 = sadd.s32 1, %s445
                $region89: #{geo_encoder_forward.3} parent=82 // loop_footer_branch
                  %444 = sbr.rel target = $region85
                $region90: #{geo_encoder_forward.3} parent=82 // loop_exit
                  _
              $region83: #{geo_encoder_forward.3} parent=67 // pred_fallthru
                _
              // Predicated region
              $region91: #{geo_encoder_forward.3} parent=67 // pred_check
                _
              $region92: #{geo_encoder_forward.3} parent=67 // pred_check_branch
                %465 = sbr.rel target = $region94
              $region93: #{geo_encoder_forward.3} parent=67 // pred_region
                _
              $region94: #{geo_encoder_forward.3} parent=67 // pred_fallthru
                _
            $region68: #{geo_encoder_forward.3} parent=63 // pred_fallthru
              _
            // Predicated region
            $region69: #{geo_encoder_forward.3} parent=63 // pred_check
              _
            $region70: #{geo_encoder_forward.3} parent=63 // pred_check_branch
              %420 = sbr.rel target = $region72
            $region71: #{geo_encoder_forward.3} parent=63 // pred_region
              loop: start=0, step=1, limit=1
              $region73: #{geo_encoder_forward.3} parent=71 // loop_pre_header
                _
              $region74: #{geo_encoder_forward.3} parent=71 // loop_header
                %s423 = sphi 0, %s427
                %p424 = scmp.ge.s32.totalorder %s423, 1
                %s428 = sphi %s414, %s414
                %s429 = sphi %s409, %s409
              $region75: #{geo_encoder_forward.3} parent=71 // loop_header_branch
                %426 = sbr.rel (%p424) target = $region79
              $region76: #{geo_encoder_forward.3} parent=71 // loop_body
                %v430 = vld [vmem:[%s428] sm:$0xff]
                %431 = vst [vmem:[%s429] sm:$0xff] %v430
                %v432 = vld [vmem:[%s428 + $0x8] sm:$0xff]
                %433 = vst [vmem:[%s429 + $0x8] sm:$0xff] %v432
                %v434 = vld [vmem:[%s428 + $0x20] sm:$0xff]
                %435 = vst [vmem:[%s429 + $0x10] sm:$0xff] %v434
                %v436 = vld [vmem:[%s428 + $0x28] sm:$0xff]
                %437 = vst [vmem:[%s429 + $0x18] sm:$0xff] %v436
                %v438 = vld [vmem:[%s428 + $0x40] sm:$0xff]
                %439 = vst [vmem:[%s429 + $0x20] sm:$0xff] %v438
                %v440 = vld [vmem:[%s428 + $0x48] sm:$0xff]
                %441 = vst [vmem:[%s429 + $0x28] sm:$0xff] %v440
              $region77: #{geo_encoder_forward.3} parent=71 // loop_footer
                %s427 = sadd.s32 1, %s423
              $region78: #{geo_encoder_forward.3} parent=71 // loop_footer_branch
                %422 = sbr.rel target = $region74
              $region79: #{geo_encoder_forward.3} parent=71 // loop_exit
                _
            $region72: #{geo_encoder_forward.3} parent=63 // pred_fallthru
              _
          $region64: #{geo_encoder_forward.3} parent=59 // pred_fallthru
            _
          %466 = vnop
        $region60: #{geo_encoder_forward.3} parent=47 // pred_fallthru
          _
        // Predicated region
        $region95: #{geo_encoder_forward.3} parent=47 // pred_check
          %p467 = pneg %p137
        $region96: #{geo_encoder_forward.3} parent=47 // pred_check_branch
          %469 = sbr.rel (%p467) target = $region98
        $region97: #{geo_encoder_forward.3} parent=47 // pred_region
          %s470 = smul.u32 2, %s29
          %p471 = scmp.lt.s32.totalorder %s28, 1
          %s472 = scalar_select %p471, %s28, 1
          %p473 = scmp.lt.s32.totalorder %s470, 1
          %s474 = scalar_select %p473, %s470, 1
          %s475 = smul.addr %s472, 2
          %s476 = sadd.s32 %s474, %s475
          %s477 = smul.addr %s476, 8
          %s478 = scalar_lea.vmem %s3, %s477
          %s479 = smul.u32 2, %s29
        $region98: #{geo_encoder_forward.3} parent=47 // pred_fallthru
          _
      $region48: #{geo_encoder_forward.3} parent=5 // pred_fallthru
        _
      %p480 = scmp.le.s32.totalorder 1, %s21
      %p481 = scmp.lt.s32.totalorder %s21, 3
      %p482 = pnand %p480, %p481
      %p483 = pneg %p482
      // Predicated region
      $region99: #{geo_encoder_forward.3} parent=5 // pred_check
        _
      $region100: #{geo_encoder_forward.3} parent=5 // pred_check_branch
        %485 = sbr.rel (%p482) target = $region102
      $region101: #{geo_encoder_forward.3} parent=5 // pred_region
        %s486 = ssub.s32 %s21, 1
        %s487 = sand.u32 %s102, 1
        %s488 = sand.u32 %s102, 1
        %s489 = smul.addr %s488, 48
        %s490 = scalar_lea.vmem [#allocation2], %s489
        // Predicated region
        $region103: #{geo_encoder_forward.3} parent=101 // pred_check
          %p491 = pneg %p115
        $region104: #{geo_encoder_forward.3} parent=101 // pred_check_branch
          %493 = sbr.rel (%p491) target = $region106
        $region105: #{geo_encoder_forward.3} parent=101 // pred_region
          _
        $region106: #{geo_encoder_forward.3} parent=101 // pred_fallthru
          _
        %p494 = scmp.lt.s32.totalorder %s30, 1
        %s495 = scalar_select %p494, %s30, 1
        %s496 = smul.addr %s495, 2
        %s497 = smul.addr %s496, 8
        %s498 = scalar_lea.vmem %s0, %s497
        %p499 = pneg %p59
        %p500 = pneg %p56
        %s501 = smul.u32 2, %s31
        %p502 = scmp.lt.s32.totalorder %s30, 1
        %s503 = scalar_select %p502, %s30, 1
        %p504 = scmp.lt.s32.totalorder %s501, 1
        %s505 = scalar_select %p504, %s501, 1
        %s506 = smul.addr %s503, 2
        %s507 = sadd.s32 %s505, %s506
        %s508 = smul.addr %s507, 8
        %s509 = scalar_lea.vmem %s1, %s508
        %p510 = pneg %p87
        %p511 = pneg %p84
        %s512 = sand.u32 %s102, 1
        %s513 = sand.u32 %s102, 1
        %s514 = smul.addr %s513, 48
        %s515 = scalar_lea.vmem [#allocation2], %s514
        %p516 = pneg %p115
        %p517 = pneg %p112
        %s518 = smul.u32 2, %s31
        %p519 = scmp.lt.s32.totalorder %s30, 1
        %s520 = scalar_select %p519, %s30, 1
        %p521 = scmp.lt.s32.totalorder %s518, 1
        %s522 = scalar_select %p521, %s518, 1
        %s523 = smul.addr %s520, 2
        %s524 = sadd.s32 %s522, %s523
        %s525 = smul.addr %s524, 8
        %s526 = scalar_lea.vmem %s3, %s525
        %p527 = pneg %p143
        %p528 = pneg %p140
        %p529 = pneg %p164
        %p530 = pneg %p161
        %p531 = pneg %p185
        %p532 = pneg %p182
        %p533 = pneg %p206
        %p534 = pneg %p203
        %p535 = pneg %p227
        %p536 = pneg %p224
        %p537 = pneg %p248
        %p538 = pneg %p245
        %p539 = pneg %p269
        %p540 = pneg %p266
        %p541 = pneg %p290
        %p542 = pneg %p287
        %p543 = pneg %p311
        %p544 = pneg %p308
        %p545 = pneg %p339
        %p546 = pneg %p336
        %s547 = sand.u32 %s326, 1
        %s548 = scalar_lea.sflag [#allocation4], %s547
        %s549 = sand.u32 %s326, 1
        %s550 = smul.addr %s549, 16
        %s551 = scalar_lea.vmem [#allocation3], %s550
        %p552 = scmp.lt.s32.totalorder %s30, 1
        %s553 = scalar_select %p552, %s30, 1
        %s554 = smul.addr %s553, 2
        %s555 = smul.addr %s554, 8
        %s556 = scalar_lea.vmem %s0, %s555
        %s557 = smul.u32 2, %s31
        %p558 = scmp.lt.s32.totalorder %s30, 1
        %s559 = scalar_select %p558, %s30, 1
        %p560 = scmp.lt.s32.totalorder %s557, 1
        %s561 = scalar_select %p560, %s557, 1
        %s562 = smul.addr %s559, 2
        %s563 = sadd.s32 %s561, %s562
        %s564 = smul.addr %s563, 8
        %s565 = scalar_lea.vmem %s1, %s564
        %s566 = smul.u32 2, %s31
        %s567 = smul.u32 2, %s31
        %s568 = smul.u32 2, %s31
        %p569 = scmp.lt.s32.totalorder %s30, 1
        %s570 = scalar_select %p569, %s30, 1
        %p571 = scmp.lt.s32.totalorder %s568, 1
        %s572 = scalar_select %p571, %s568, 1
        %s573 = smul.addr %s570, 2
        %s574 = sadd.s32 %s572, %s573
        %s575 = smul.addr %s574, 8
        %s576 = scalar_lea.vmem %s3, %s575
        %s577 = smul.u32 2, %s31
        %s578 = smul.u32 2, %s31
        %v580 = vld [vmem:[%s556] sm:$0xff]
        %v581 = vld [vmem:[%s556 + $0x8] sm:$0xff]
        %v582 = vld [vmem:[%s565] sm:$0xff]
        %v583 = vld [vmem:[%s565 + $0x8] sm:$0xff]
        %v584 = vld [vmem:[%s5] sm:$0xf]
        %v585 = vld [vmem:[%s5 + $0x4] sm:$0xf]
        %v586 = vld [vmem:[%s6] sm:$0x1]
        %v587 = vld [vmem:[%s7] sm:$0x1]
        %v588 = vld [vmem:[%s8] sm:$0x1]
        %v589 = vmul.f32 %v580, %v580
        %v590 = vmul.f32 %v581, %v581
        %vm591 = vcmask 23552
        %v592 = vsel %vm591, %v589, 0.0
        %593 = vadd.xlane.f32.xlu0 %v592
        %v594 = vpop.xlane.xlu0 %593
        %v595 = vsel %vm591, %v590, 0.0
        %596 = vadd.xlane.f32.xlu0 %v595
        %v597 = vpop.xlane.xlu0 %596
        %v598 = vmul.f32 %v582, %v582
        %v599 = vmul.f32 %v583, %v583
        %v600 = vsel %vm591, %v598, 0.0
        %601 = vadd.xlane.f32.xlu0 %v600
        %v602 = vpop.xlane.xlu0 %601
        %v603 = vsel %vm591, %v599, 0.0
        %604 = vadd.xlane.f32.xlu0 %v603
        %v605 = vpop.xlane.xlu0 %604
        %v607 = vsel %vm591, %v582, 0
        %v610 = vsel %vm591, %v583, 0
        %v613 = vsel %vm591, %v580, 0
        %v616 = vsel %vm591, %v581, 0
        %618 = vmatprep.subr.mxu0 0.0
        %619 = vmatpush1.xpose.msra.mxu0 %v613
        %620 = vmatprep.subr.mxu0 0.0
        %621 = vmatpush1.xpose.msra.mxu0 %v616
        %622 = vmatprep.subr.mxu0 0.0
        %623 = vmatpush1.xpose.msra.mxu0 0.0
        %624 = vmatprep.subr.mxu0 0.0
        %625 = vmatpush1.xpose.msra.mxu0 0.0
        %626 = vmatprep.subr.mxu0 0.0
        %627 = vmatpush1.xpose.msra.mxu0 0.0
        %628 = vmatprep.subr.mxu0 0.0
        %629 = vmatpush1.xpose.msra.mxu0 0.0
        %630 = vmatprep.subr.mxu0 0.0
        %631 = vmatpush1.xpose.msra.mxu0 0.0
        %632 = vmatprep.subr.mxu0 0.0
        %633 = vmatpush1.xpose.msra.mxu0 0.0
        %634 = vmatprep.subr.mxu0 0.0
        %635 = vmatpush1.xpose.msra.mxu0 0.0
        %636 = vmatprep.subr.mxu0 0.0
        %637 = vmatpush1.xpose.msra.mxu0 0.0
        %638 = vmatprep.subr.mxu0 0.0
        %639 = vmatpush1.xpose.msra.mxu0 0.0
        %640 = vmatprep.subr.mxu0 0.0
        %641 = vmatpush1.xpose.msra.mxu0 0.0
        %642 = vmatprep.subr.mxu0 0.0
        %643 = vmatpush1.xpose.msra.mxu0 0.0
        %644 = vmatprep.subr.mxu0 0.0
        %645 = vmatpush1.xpose.msra.mxu0 0.0
        %646 = vmatprep.subr.mxu0 0.0
        %647 = vmatpush1.xpose.msra.mxu0 0.0
        %648 = vmatprep.subr.mxu0 0.0
        %649 = vmatpush1.xpose.msra.mxu0 0.0
        %650 = vmatprep.subr.mxu0 0.0
        %651 = vmatpush1.xpose.msra.mxu0 0.0
        %652 = vmatprep.subr.mxu0 0.0
        %653 = vmatpush1.xpose.msra.mxu0 0.0
        %654 = vmatprep.subr.mxu0 0.0
        %655 = vmatpush1.xpose.msra.mxu0 0.0
        %656 = vmatprep.subr.mxu0 0.0
        %657 = vmatpush1.xpose.msra.mxu0 0.0
        %658 = vmatprep.subr.mxu0 0.0
        %659 = vmatpush1.xpose.msra.mxu0 0.0
        %660 = vmatprep.subr.mxu0 0.0
        %661 = vmatpush1.xpose.msra.mxu0 0.0
        %662 = vmatprep.subr.mxu0 0.0
        %663 = vmatpush1.xpose.msra.mxu0 0.0
        %664 = vmatprep.subr.mxu0 0.0
        %665 = vmatpush1.xpose.msra.mxu0 0.0
        %666 = vmatprep.subr.mxu0 0.0
        %667 = vmatpush1.xpose.msra.mxu0 0.0
        %668 = vmatprep.subr.mxu0 0.0
        %669 = vmatpush1.xpose.msra.mxu0 0.0
        %670 = vmatprep.subr.mxu0 0.0
        %671 = vmatpush1.xpose.msra.mxu0 0.0
        %672 = vmatprep.subr.mxu0 0.0
        %673 = vmatpush1.xpose.msra.mxu0 0.0
        %674 = vmatprep.subr.mxu0 0.0
        %675 = vmatpush1.xpose.msra.mxu0 0.0
        %676 = vmatprep.subr.mxu0 0.0
        %677 = vmatpush1.xpose.msra.mxu0 0.0
        %678 = vmatprep.subr.mxu0 0.0
        %679 = vmatpush1.xpose.msra.mxu0 0.0
        %680 = vmatprep.subr.mxu0 0.0
        %681 = vmatpush1.xpose.msra.mxu0 0.0
        %682 = vmatprep.mubr.f32.mxu0 0.0
        %683 = vmatmul.mubr.f32.gmra.mrb[0].mxu0 %v607
        %v684 = vpop.f32.mrb[0].mxu0
        %v685 = vadd.f32 0.0, %v684
        %v686 = vpop.f32.mrb[0].mxu0
        %687 = vmatprep.mubr.f32.mxu0 0.0
        %688 = vmatmul.mubr.f32.gmra.mrb[0].mxu0 %v610
        %v689 = vpop.f32.mrb[0].mxu0
        %v690 = vadd.f32 0.0, %v689
        %v691 = vpop.f32.mrb[0].mxu0
        %692 = vdwg.mxu0
        %s693 = smul.u32 %s31, 16
        %v694 = vlaneseq
        %v695 = vshrl.u32 %v694, 7
        %v696 = vadd.s32 %v695, 8
        %v697 = vstv %s693
        %v698 = vadd.s32 %v695, %v697
        %v699 = vadd.s32 %v696, %v697
        %v700 = vlaneseq
        %v701 = vand.u32 %v700, 127
        %vm702 = vcmp.eq.s32.totalorder %v698, %v701
        %vm703 = vcmp.eq.s32.totalorder %v699, %v701
        %704 = vxpose.xlu0.b32.start [1/16] %v594, 128
        %705 = vxpose.xlu0.b32.cont [2/16] %v597, 128
        %706 = vxpose.xlu0.b32.cont [3/16] 0.0, 128
        %707 = vxpose.xlu0.b32.cont [4/16] 0.0, 128
        %708 = vxpose.xlu0.b32.cont [5/16] 0.0, 128
        %709 = vxpose.xlu0.b32.cont [6/16] 0.0, 128
        %710 = vxpose.xlu0.b32.cont [7/16] 0.0, 128
        %711 = vxpose.xlu0.b32.cont [8/16] 0.0, 128
        %712 = vxpose.xlu0.b32.cont [9/16] 0.0, 128
        %713 = vxpose.xlu0.b32.cont [10/16] 0.0, 128
        %714 = vxpose.xlu0.b32.cont [11/16] 0.0, 128
        %715 = vxpose.xlu0.b32.cont [12/16] 0.0, 128
        %716 = vxpose.xlu0.b32.cont [13/16] 0.0, 128
        %717 = vxpose.xlu0.b32.cont [14/16] 0.0, 128
        %718 = vxpose.xlu0.b32.cont [15/16] 0.0, 128
        %719 = vxpose.xlu0.b32.end [16/16] 0.0, 128
        %v720 = vpop.trf.xlu0
        %v721 = vpop.trf.xlu0
        %v722 = vpop.trf.xlu0
        %v723 = vpop.trf.xlu0
        %v724 = vpop.trf.xlu0
        %v725 = vpop.trf.xlu0
        %v726 = vpop.trf.xlu0
        %v727 = vpop.trf.xlu0
        %v728 = vpop.trf.xlu0
        %v729 = vpop.trf.xlu0
        %v730 = vpop.trf.xlu0
        %v731 = vpop.trf.xlu0
        %v732 = vpop.trf.xlu0
        %v733 = vpop.trf.xlu0
        %v734 = vpop.trf.xlu0
        %v735 = vpop.trf.xlu0
        %v736 = vlaneseq
        %v737 = vshrl.u32 %v736, 7
        %v738 = vsub.s32 0, %v737
        %v739 = vrot.slane %v720, %v738
        %v740 = vadd.f32 %v602, %v739
        %v741 = vadd.f32 %v605, %v739
        %v742 = vmul.f32 %v685, 2.0
        %v743 = vmul.f32 %v690, 2.0
        %v744 = vsub.f32 %v740, %v742
        %v745 = vsub.f32 %v741, %v743
        %v746 = vmax.f32 %v744, 0.0
        %v747 = vmax.f32 %v745, 0.0
        %v748 = vrsqrt.pop %v746
        %v749 = vmul.f32 %v746, %v748
        %vm750 = vcmp.eq.f32.partialorder %v746, inf
        %v751 = vsel %vm750, %v746, %v749
        %vm752 = vcmp.eq.f32.partialorder %v746, 0.0
        %v753 = vand.u32 %v746, 2147483648
        %v754 = vsel %vm752, %v753, %v751
        %v755 = vrsqrt.pop %v747
        %v756 = vmul.f32 %v747, %v755
        %vm757 = vcmp.eq.f32.partialorder %v747, inf
        %v758 = vsel %vm757, %v747, %v756
        %vm759 = vcmp.eq.f32.partialorder %v747, 0.0
        %v760 = vand.u32 %v747, 2147483648
        %v761 = vsel %vm759, %v760, %v758
        %v762 = vsel %vm702, 0.0, %v754
        %v763 = vsel %vm703, 0.0, %v761
        %v764 = vadd.f32 %v762, 1e-08
        %v765 = vadd.f32 %v763, 1e-08
        %v766 = vrcp.pop %v764
        %v767 = vrcp.pop %v765
        %v768 = vld [vmem:[%s490] sm:$0xff]
        %v769 = vld [vmem:[%s490 + $0x8] sm:$0xff]
        %v771 = vsel %vm591, %v768, 0
        %v774 = vsel %vm591, %v769, 0
        %776 = vmatprep.subr.mxu0 0.0
        %777 = vmatpush1.xpose.msra.mxu0 %v613
        %778 = vmatprep.subr.mxu0 0.0
        %779 = vmatpush1.xpose.msra.mxu0 %v616
        %780 = vmatprep.subr.mxu0 0.0
        %781 = vmatpush1.xpose.msra.mxu0 0.0
        %782 = vmatprep.subr.mxu0 0.0
        %783 = vmatpush1.xpose.msra.mxu0 0.0
        %784 = vmatprep.subr.mxu0 0.0
        %785 = vmatpush1.xpose.msra.mxu0 0.0
        %786 = vmatprep.subr.mxu0 0.0
        %787 = vmatpush1.xpose.msra.mxu0 0.0
        %788 = vmatprep.subr.mxu0 0.0
        %789 = vmatpush1.xpose.msra.mxu0 0.0
        %790 = vmatprep.subr.mxu0 0.0
        %791 = vmatpush1.xpose.msra.mxu0 0.0
        %792 = vmatprep.subr.mxu0 0.0
        %793 = vmatpush1.xpose.msra.mxu0 0.0
        %794 = vmatprep.subr.mxu0 0.0
        %795 = vmatpush1.xpose.msra.mxu0 0.0
        %796 = vmatprep.subr.mxu0 0.0
        %797 = vmatpush1.xpose.msra.mxu0 0.0
        %798 = vmatprep.subr.mxu0 0.0
        %799 = vmatpush1.xpose.msra.mxu0 0.0
        %800 = vmatprep.subr.mxu0 0.0
        %801 = vmatpush1.xpose.msra.mxu0 0.0
        %802 = vmatprep.subr.mxu0 0.0
        %803 = vmatpush1.xpose.msra.mxu0 0.0
        %804 = vmatprep.subr.mxu0 0.0
        %805 = vmatpush1.xpose.msra.mxu0 0.0
        %806 = vmatprep.subr.mxu0 0.0
        %807 = vmatpush1.xpose.msra.mxu0 0.0
        %808 = vmatprep.subr.mxu0 0.0
        %809 = vmatpush1.xpose.msra.mxu0 0.0
        %810 = vmatprep.subr.mxu0 0.0
        %811 = vmatpush1.xpose.msra.mxu0 0.0
        %812 = vmatprep.subr.mxu0 0.0
        %813 = vmatpush1.xpose.msra.mxu0 0.0
        %814 = vmatprep.subr.mxu0 0.0
        %815 = vmatpush1.xpose.msra.mxu0 0.0
        %816 = vmatprep.subr.mxu0 0.0
        %817 = vmatpush1.xpose.msra.mxu0 0.0
        %818 = vmatprep.subr.mxu0 0.0
        %819 = vmatpush1.xpose.msra.mxu0 0.0
        %820 = vmatprep.subr.mxu0 0.0
        %821 = vmatpush1.xpose.msra.mxu0 0.0
        %822 = vmatprep.subr.mxu0 0.0
        %823 = vmatpush1.xpose.msra.mxu0 0.0
        %824 = vmatprep.subr.mxu0 0.0
        %825 = vmatpush1.xpose.msra.mxu0 0.0
        %826 = vmatprep.subr.mxu0 0.0
        %827 = vmatpush1.xpose.msra.mxu0 0.0
        %828 = vmatprep.subr.mxu0 0.0
        %829 = vmatpush1.xpose.msra.mxu0 0.0
        %830 = vmatprep.subr.mxu0 0.0
        %831 = vmatpush1.xpose.msra.mxu0 0.0
        %832 = vmatprep.subr.mxu0 0.0
        %833 = vmatpush1.xpose.msra.mxu0 0.0
        %834 = vmatprep.subr.mxu0 0.0
        %835 = vmatpush1.xpose.msra.mxu0 0.0
        %836 = vmatprep.subr.mxu0 0.0
        %837 = vmatpush1.xpose.msra.mxu0 0.0
        %838 = vmatprep.subr.mxu0 0.0
        %839 = vmatpush1.xpose.msra.mxu0 0.0
        %840 = vmatprep.mubr.f32.mxu0 0.0
        %841 = vmatmul.mubr.f32.gmra.mrb[0].mxu0 %v771
        %v842 = vpop.f32.mrb[0].mxu0
        %v843 = vadd.f32 0.0, %v842
        %v844 = vpop.f32.mrb[0].mxu0
        %845 = vmatprep.mubr.f32.mxu0 0.0
        %846 = vmatmul.mubr.f32.gmra.mrb[0].mxu0 %v774
        %v847 = vpop.f32.mrb[0].mxu0
        %v848 = vadd.f32 0.0, %v847
        %v849 = vpop.f32.mrb[0].mxu0
        %850 = vdwg.mxu0
        %v851 = vmul.f32 %v768, %v582
        %v852 = vmul.f32 %v769, %v583
        %v853 = vsel %vm591, %v851, 0.0
        %854 = vadd.xlane.f32.xlu0 %v853
        %v855 = vpop.xlane.xlu0 %854
        %v856 = vsel %vm591, %v852, 0.0
        %857 = vadd.xlane.f32.xlu0 %v856
        %v858 = vpop.xlane.xlu0 %857
        %v859 = vsub.f32 %v843, %v855
        %v860 = vsub.f32 %v848, %v858
        %v861 = vsel %vm702, 0.0, %v859
        %v862 = vsel %vm703, 0.0, %v860
        %v863 = vmul.f32 %v768, %v768
        %v864 = vmul.f32 %v769, %v769
        %v865 = vsel %vm591, %v863, 0.0
        %866 = vadd.xlane.f32.xlu0 %v865
        %v867 = vpop.xlane.xlu0 %866
        %v868 = vsel %vm591, %v864, 0.0
        %869 = vadd.xlane.f32.xlu0 %v868
        %v870 = vpop.xlane.xlu0 %869
        %v871 = vadd.f32 %v867, 1e-16
        %v872 = vadd.f32 %v870, 1e-16
        %v873 = vrsqrt.pop %v871
        %v874 = vrsqrt.pop %v872
        %v875 = vmul.f32 %v861, %v766
        %v876 = vmul.f32 %v862, %v767
        %v877 = vmul.f32 %v875, %v873
        %v878 = vmul.f32 %v876, %v874
        %v879 = vmul.f32 %v877, %v877
        %v880 = vmul.f32 %v878, %v878
        %vm881 = vcmask 130048
        %v882 = vsel %vm881, %v879, 0.0
        %883 = vadd.xlane.f32.xlu0 %v882
        %v884 = vpop.xlane.xlu0 %883
        %v885 = vsel %vm881, %v880, 0.0
        %886 = vadd.xlane.f32.xlu0 %v885
        %v887 = vpop.xlane.xlu0 %886
        %v888 = vmax.f32 %v884, 1e-24
        %v889 = vmax.f32 %v887, 1e-24
        %v890 = vrsqrt.pop %v888
        %v891 = vrsqrt.pop %v889
        %v892 = vpack.c.bf16 %v878, %v877
        %v895 = vunpack.c.l.b16 %v584
        %v896 = vunpack.c.l.b16 %v585
        %v897 = vpack.c.b16 %v896, %v895
        %v900 = vsel %vm881, %v892, 0
        %902 = vmatprep.subr.bf16.mxu0 0
        %903 = vmatpush1.bf16.msra.mxu0 %v897
        %904 = vmatprep.subr.bf16.mxu0 0
        %905 = vmatpush1.bf16.msra.mxu0 0
        %906 = vmatprep.subr.bf16.mxu0 0
        %907 = vmatpush1.bf16.msra.mxu0 0
        %908 = vmatprep.subr.bf16.mxu0 0
        %909 = vmatpush1.bf16.msra.mxu0 0
        %910 = vmatprep.subr.bf16.mxu0 0
        %911 = vmatpush1.bf16.msra.mxu0 0
        %912 = vmatprep.subr.bf16.mxu0 0
        %913 = vmatpush1.bf16.msra.mxu0 0
        %914 = vmatprep.subr.bf16.mxu0 0
        %915 = vmatpush1.bf16.msra.mxu0 0
        %916 = vmatprep.subr.bf16.mxu0 0
        %917 = vmatpush1.bf16.msra.mxu0 0
        %918 = vmatprep.subr.bf16.mxu0 0
        %919 = vmatpush1.bf16.msra.mxu0 0
        %920 = vmatprep.subr.bf16.mxu0 0
        %921 = vmatpush1.bf16.msra.mxu0 0
        %922 = vmatprep.subr.bf16.mxu0 0
        %923 = vmatpush1.bf16.msra.mxu0 0
        %924 = vmatprep.subr.bf16.mxu0 0
        %925 = vmatpush1.bf16.msra.mxu0 0
        %926 = vmatprep.subr.bf16.mxu0 0
        %927 = vmatpush1.bf16.msra.mxu0 0
        %928 = vmatprep.subr.bf16.mxu0 0
        %929 = vmatpush1.bf16.msra.mxu0 0
        %930 = vmatprep.subr.bf16.mxu0 0
        %931 = vmatpush1.bf16.msra.mxu0 0
        %932 = vmatprep.subr.bf16.mxu0 0
        %933 = vmatpush1.bf16.msra.mxu0 0
        %934 = vmatprep.mubr.bf16.mxu0 0
        %935 = vmatmul.mubr.bf16.gmra.mrb[0].mxu0 %v900
        %v936 = vpop.f32.mrb[0].mxu0
        %v937 = vadd.f32 0.0, %v936
        %v938 = vpop.f32.mrb[0].mxu0
        %v939 = vpop.f32.mrb[0].mxu0
        %v940 = vadd.f32 0.0, %v939
        %v941 = vpop.f32.mrb[0].mxu0
        %942 = vdwg.mxu0
        %v943 = vmul.f32 %v937, %v890
        %v944 = vmul.f32 %v940, %v891
        %v946 = vlaneseq
        %v947 = vshrl.u32 %v946, 7
        %v948 = vsub.s32 0, %v947
        %v949 = vrot.slane %v586, %v948
        %v951 = vadd.f32 %v943, %v949
        %v952 = vadd.f32 %v944, %v949
        %953 = vadd.xlane.f32.xlu0 %v951
        %v954 = vpop.xlane.xlu0 %953
        %955 = vadd.xlane.f32.xlu0 %v952
        %v956 = vpop.xlane.xlu0 %955
        %v957 = vmul.f32 %v954, 0.03125
        %v958 = vmul.f32 %v956, 0.03125
        %vm959 = vcmp.lt.s32.totalorder %v701, 32
        %v960 = vsub.f32 %v951, %v957
        %v961 = vsub.f32 %v952, %v958
        %v962 = vsel %vm959, %v960, 0.0
        %v963 = vsel %vm959, %v961, 0.0
        %v964 = vmul.f32 %v962, %v962
        %v965 = vmul.f32 %v963, %v963
        %966 = vadd.xlane.f32.xlu0 %v964
        %v967 = vpop.xlane.xlu0 %966
        %968 = vadd.xlane.f32.xlu0 %v965
        %v969 = vpop.xlane.xlu0 %968
        %v970 = vmul.f32 %v967, 0.03125
        %v971 = vmul.f32 %v969, 0.03125
        %v972 = vadd.f32 %v970, 1e-05
        %v973 = vadd.f32 %v971, 1e-05
        %v974 = vrsqrt.pop %v972
        %v975 = vrsqrt.pop %v973
        %v976 = vmul.f32 %v962, %v974
        %v977 = vmul.f32 %v963, %v975
        %v979 = vlaneseq
        %v980 = vshrl.u32 %v979, 7
        %v981 = vsub.s32 0, %v980
        %v982 = vrot.slane %v587, %v981
        %v984 = vmul.f32 %v976, %v982
        %v985 = vmul.f32 %v977, %v982
        %v987 = vlaneseq
        %v988 = vshrl.u32 %v987, 7
        %v989 = vsub.s32 0, %v988
        %v990 = vrot.slane %v588, %v989
        %v992 = vadd.f32 %v984, %v990
        %v993 = vadd.f32 %v985, %v990
        %v994 = vmax.f32 %v992, 0.0
        %v995 = vmax.f32 %v993, 0.0
        %s996 = scalar_lea.vmem %s490, 16 [#allocation2]
        %v997 = vld [vmem:[%s996] sm:$0xff]
        %v998 = vld [vmem:[%s996 + $0x8] sm:$0xff]
        %v1000 = vsel %vm591, %v997, 0
        %v1003 = vsel %vm591, %v998, 0
        %1005 = vmatprep.subr.mxu0 0.0
        %1006 = vmatpush1.xpose.msra.mxu0 %v613
        %1007 = vmatprep.subr.mxu0 0.0
        %1008 = vmatpush1.xpose.msra.mxu0 %v616
        %1009 = vmatprep.subr.mxu0 0.0
        %1010 = vmatpush1.xpose.msra.mxu0 0.0
        %1011 = vmatprep.subr.mxu0 0.0
        %1012 = vmatpush1.xpose.msra.mxu0 0.0
        %1013 = vmatprep.subr.mxu0 0.0
        %1014 = vmatpush1.xpose.msra.mxu0 0.0
        %1015 = vmatprep.subr.mxu0 0.0
        %1016 = vmatpush1.xpose.msra.mxu0 0.0
        %1017 = vmatprep.subr.mxu0 0.0
        %1018 = vmatpush1.xpose.msra.mxu0 0.0
        %1019 = vmatprep.subr.mxu0 0.0
        %1020 = vmatpush1.xpose.msra.mxu0 0.0
        %1021 = vmatprep.subr.mxu0 0.0
        %1022 = vmatpush1.xpose.msra.mxu0 0.0
        %1023 = vmatprep.subr.mxu0 0.0
        %1024 = vmatpush1.xpose.msra.mxu0 0.0
        %1025 = vmatprep.subr.mxu0 0.0
        %1026 = vmatpush1.xpose.msra.mxu0 0.0
        %1027 = vmatprep.subr.mxu0 0.0
        %1028 = vmatpush1.xpose.msra.mxu0 0.0
        %1029 = vmatprep.subr.mxu0 0.0
        %1030 = vmatpush1.xpose.msra.mxu0 0.0
        %1031 = vmatprep.subr.mxu0 0.0
        %1032 = vmatpush1.xpose.msra.mxu0 0.0
        %1033 = vmatprep.subr.mxu0 0.0
        %1034 = vmatpush1.xpose.msra.mxu0 0.0
        %1035 = vmatprep.subr.mxu0 0.0
        %1036 = vmatpush1.xpose.msra.mxu0 0.0
        %1037 = vmatprep.subr.mxu0 0.0
        %1038 = vmatpush1.xpose.msra.mxu0 0.0
        %1039 = vmatprep.subr.mxu0 0.0
        %1040 = vmatpush1.xpose.msra.mxu0 0.0
        %1041 = vmatprep.subr.mxu0 0.0
        %1042 = vmatpush1.xpose.msra.mxu0 0.0
        %1043 = vmatprep.subr.mxu0 0.0
        %1044 = vmatpush1.xpose.msra.mxu0 0.0
        %1045 = vmatprep.subr.mxu0 0.0
        %1046 = vmatpush1.xpose.msra.mxu0 0.0
        %1047 = vmatprep.subr.mxu0 0.0
        %1048 = vmatpush1.xpose.msra.mxu0 0.0
        %1049 = vmatprep.subr.mxu0 0.0
        %1050 = vmatpush1.xpose.msra.mxu0 0.0
        %1051 = vmatprep.subr.mxu0 0.0
        %1052 = vmatpush1.xpose.msra.mxu0 0.0
        %1053 = vmatprep.subr.mxu0 0.0
        %1054 = vmatpush1.xpose.msra.mxu0 0.0
        %1055 = vmatprep.subr.mxu0 0.0
        %1056 = vmatpush1.xpose.msra.mxu0 0.0
        %1057 = vmatprep.subr.mxu0 0.0
        %1058 = vmatpush1.xpose.msra.mxu0 0.0
        %1059 = vmatprep.subr.mxu0 0.0
        %1060 = vmatpush1.xpose.msra.mxu0 0.0
        %1061 = vmatprep.subr.mxu0 0.0
        %1062 = vmatpush1.xpose.msra.mxu0 0.0
        %1063 = vmatprep.subr.mxu0 0.0
        %1064 = vmatpush1.xpose.msra.mxu0 0.0
        %1065 = vmatprep.subr.mxu0 0.0
        %1066 = vmatpush1.xpose.msra.mxu0 0.0
        %1067 = vmatprep.subr.mxu0 0.0
        %1068 = vmatpush1.xpose.msra.mxu0 0.0
        %1069 = vmatprep.mubr.f32.mxu0 0.0
        %1070 = vmatmul.mubr.f32.gmra.mrb[0].mxu0 %v1000
        %v1071 = vpop.f32.mrb[0].mxu0
        %v1072 = vadd.f32 0.0, %v1071
        %v1073 = vpop.f32.mrb[0].mxu0
        %1074 = vmatprep.mubr.f32.mxu0 0.0
        %1075 = vmatmul.mubr.f32.gmra.mrb[0].mxu0 %v1003
        %v1076 = vpop.f32.mrb[0].mxu0
        %v1077 = vadd.f32 0.0, %v1076
        %v1078 = vpop.f32.mrb[0].mxu0
        %1079 = vdwg.mxu0
        %v1080 = vmul.f32 %v997, %v582
        %v1081 = vmul.f32 %v998, %v583
        %v1082 = vsel %vm591, %v1080, 0.0
        %1083 = vadd.xlane.f32.xlu0 %v1082
        %v1084 = vpop.xlane.xlu0 %1083
        %v1085 = vsel %vm591, %v1081, 0.0
        %1086 = vadd.xlane.f32.xlu0 %v1085
        %v1087 = vpop.xlane.xlu0 %1086
        %v1088 = vsub.f32 %v1072, %v1084
        %v1089 = vsub.f32 %v1077, %v1087
        %v1090 = vsel %vm702, 0.0, %v1088
        %v1091 = vsel %vm703, 0.0, %v1089
        %v1092 = vmul.f32 %v997, %v997
        %v1093 = vmul.f32 %v998, %v998
        %v1094 = vsel %vm591, %v1092, 0.0
        %1095 = vadd.xlane.f32.xlu0 %v1094
        %v1096 = vpop.xlane.xlu0 %1095
        %v1097 = vsel %vm591, %v1093, 0.0
        %1098 = vadd.xlane.f32.xlu0 %v1097
        %v1099 = vpop.xlane.xlu0 %1098
        %v1100 = vadd.f32 %v1096, 1e-16
        %v1101 = vadd.f32 %v1099, 1e-16
        %v1102 = vrsqrt.pop %v1100
        %v1103 = vrsqrt.pop %v1101
        %v1104 = vmul.f32 %v1090, %v766
        %v1105 = vmul.f32 %v1091, %v767
        %v1106 = vmul.f32 %v1104, %v1102
        %v1107 = vmul.f32 %v1105, %v1103
        %v1108 = vmul.f32 %v1106, %v1106
        %v1109 = vmul.f32 %v1107, %v1107
        %v1110 = vsel %vm881, %v1108, 0.0
        %1111 = vadd.xlane.f32.xlu0 %v1110
        %v1112 = vpop.xlane.xlu0 %1111
        %v1113 = vsel %vm881, %v1109, 0.0
        %1114 = vadd.xlane.f32.xlu0 %v1113
        %v1115 = vpop.xlane.xlu0 %1114
        %v1116 = vmax.f32 %v1112, 1e-24
        %v1117 = vmax.f32 %v1115, 1e-24
        %v1118 = vrsqrt.pop %v1116
        %v1119 = vrsqrt.pop %v1117
        %v1120 = vpack.c.bf16 %v1107, %v1106
        %v1122 = vsel %vm881, %v1120, 0
        %1124 = vmatprep.subr.bf16.mxu0 0
        %1125 = vmatpush1.bf16.msra.mxu0 %v897
        %1126 = vmatprep.subr.bf16.mxu0 0
        %1127 = vmatpush1.bf16.msra.mxu0 0
        %1128 = vmatprep.subr.bf16.mxu0 0
        %1129 = vmatpush1.bf16.msra.mxu0 0
        %1130 = vmatprep.subr.bf16.mxu0 0
        %1131 = vmatpush1.bf16.msra.mxu0 0
        %1132 = vmatprep.subr.bf16.mxu0 0
        %1133 = vmatpush1.bf16.msra.mxu0 0
        %1134 = vmatprep.subr.bf16.mxu0 0
        %1135 = vmatpush1.bf16.msra.mxu0 0
        %1136 = vmatprep.subr.bf16.mxu0 0
        %1137 = vmatpush1.bf16.msra.mxu0 0
        %1138 = vmatprep.subr.bf16.mxu0 0
        %1139 = vmatpush1.bf16.msra.mxu0 0
        %1140 = vmatprep.subr.bf16.mxu0 0
        %1141 = vmatpush1.bf16.msra.mxu0 0
        %1142 = vmatprep.subr.bf16.mxu0 0
        %1143 = vmatpush1.bf16.msra.mxu0 0
        %1144 = vmatprep.subr.bf16.mxu0 0
        %1145 = vmatpush1.bf16.msra.mxu0 0
        %1146 = vmatprep.subr.bf16.mxu0 0
        %1147 = vmatpush1.bf16.msra.mxu0 0
        %1148 = vmatprep.subr.bf16.mxu0 0
        %1149 = vmatpush1.bf16.msra.mxu0 0
        %1150 = vmatprep.subr.bf16.mxu0 0
        %1151 = vmatpush1.bf16.msra.mxu0 0
        %1152 = vmatprep.subr.bf16.mxu0 0
        %1153 = vmatpush1.bf16.msra.mxu0 0
        %1154 = vmatprep.subr.bf16.mxu0 0
        %1155 = vmatpush1.bf16.msra.mxu0 0
        %1156 = vmatprep.mubr.bf16.mxu0 0
        %1157 = vmatmul.mubr.bf16.gmra.mrb[0].mxu0 %v1122
        %v1158 = vpop.f32.mrb[0].mxu0
        %v1159 = vadd.f32 0.0, %v1158
        %v1160 = vpop.f32.mrb[0].mxu0
        %v1161 = vpop.f32.mrb[0].mxu0
        %v1162 = vadd.f32 0.0, %v1161
        %v1163 = vpop.f32.mrb[0].mxu0
        %1164 = vdwg.mxu0
        %v1165 = vmul.f32 %v1159, %v1118
        %v1166 = vmul.f32 %v1162, %v1119
        %v1167 = vadd.f32 %v1165, %v949
        %v1168 = vadd.f32 %v1166, %v949
        %1169 = vadd.xlane.f32.xlu0 %v1167
        %v1170 = vpop.xlane.xlu0 %1169
        %1171 = vadd.xlane.f32.xlu0 %v1168
        %v1172 = vpop.xlane.xlu0 %1171
        %v1173 = vmul.f32 %v1170, 0.03125
        %v1174 = vmul.f32 %v1172, 0.03125
        %v1175 = vsub.f32 %v1167, %v1173
        %v1176 = vsub.f32 %v1168, %v1174
        %v1177 = vsel %vm959, %v1175, 0.0
        %v1178 = vsel %vm959, %v1176, 0.0
        %v1179 = vmul.f32 %v1177, %v1177
        %v1180 = vmul.f32 %v1178, %v1178
        %1181 = vadd.xlane.f32.xlu0 %v1179
        %v1182 = vpop.xlane.xlu0 %1181
        %1183 = vadd.xlane.f32.xlu0 %v1180
        %v1184 = vpop.xlane.xlu0 %1183
        %v1185 = vmul.f32 %v1182, 0.03125
        %v1186 = vmul.f32 %v1184, 0.03125
        %v1187 = vadd.f32 %v1185, 1e-05
        %v1188 = vadd.f32 %v1186, 1e-05
        %v1189 = vrsqrt.pop %v1187
        %v1190 = vrsqrt.pop %v1188
        %v1191 = vmul.f32 %v1177, %v1189
        %v1192 = vmul.f32 %v1178, %v1190
        %v1193 = vmul.f32 %v1191, %v982
        %v1194 = vmul.f32 %v1192, %v982
        %v1195 = vadd.f32 %v1193, %v990
        %v1196 = vadd.f32 %v1194, %v990
        %v1197 = vmax.f32 %v1195, 0.0
        %v1198 = vmax.f32 %v1196, 0.0
        %v1199 = vmax.f32 %v994, %v1197
        %v1200 = vmax.f32 %v995, %v1198
        %s1201 = scalar_lea.vmem %s490, 32 [#allocation2]
        %v1202 = vld [vmem:[%s1201] sm:$0xff]
        %v1203 = vld [vmem:[%s1201 + $0x8] sm:$0xff]
        %v1205 = vsel %vm591, %v1202, 0
        %v1208 = vsel %vm591, %v1203, 0
        %1210 = vmatprep.subr.mxu0 0.0
        %1211 = vmatpush1.xpose.msra.mxu0 %v613
        %1212 = vmatprep.subr.mxu0 0.0
        %1213 = vmatpush1.xpose.msra.mxu0 %v616
        %1214 = vmatprep.subr.mxu0 0.0
        %1215 = vmatpush1.xpose.msra.mxu0 0.0
        %1216 = vmatprep.subr.mxu0 0.0
        %1217 = vmatpush1.xpose.msra.mxu0 0.0
        %1218 = vmatprep.subr.mxu0 0.0
        %1219 = vmatpush1.xpose.msra.mxu0 0.0
        %1220 = vmatprep.subr.mxu0 0.0
        %1221 = vmatpush1.xpose.msra.mxu0 0.0
        %1222 = vmatprep.subr.mxu0 0.0
        %1223 = vmatpush1.xpose.msra.mxu0 0.0
        %1224 = vmatprep.subr.mxu0 0.0
        %1225 = vmatpush1.xpose.msra.mxu0 0.0
        %1226 = vmatprep.subr.mxu0 0.0
        %1227 = vmatpush1.xpose.msra.mxu0 0.0
        %1228 = vmatprep.subr.mxu0 0.0
        %1229 = vmatpush1.xpose.msra.mxu0 0.0
        %1230 = vmatprep.subr.mxu0 0.0
        %1231 = vmatpush1.xpose.msra.mxu0 0.0
        %1232 = vmatprep.subr.mxu0 0.0
        %1233 = vmatpush1.xpose.msra.mxu0 0.0
        %1234 = vmatprep.subr.mxu0 0.0
        %1235 = vmatpush1.xpose.msra.mxu0 0.0
        %1236 = vmatprep.subr.mxu0 0.0
        %1237 = vmatpush1.xpose.msra.mxu0 0.0
        %1238 = vmatprep.subr.mxu0 0.0
        %1239 = vmatpush1.xpose.msra.mxu0 0.0
        %1240 = vmatprep.subr.mxu0 0.0
        %1241 = vmatpush1.xpose.msra.mxu0 0.0
        %1242 = vmatprep.subr.mxu0 0.0
        %1243 = vmatpush1.xpose.msra.mxu0 0.0
        %1244 = vmatprep.subr.mxu0 0.0
        %1245 = vmatpush1.xpose.msra.mxu0 0.0
        %1246 = vmatprep.subr.mxu0 0.0
        %1247 = vmatpush1.xpose.msra.mxu0 0.0
        %1248 = vmatprep.subr.mxu0 0.0
        %1249 = vmatpush1.xpose.msra.mxu0 0.0
        %1250 = vmatprep.subr.mxu0 0.0
        %1251 = vmatpush1.xpose.msra.mxu0 0.0
        %1252 = vmatprep.subr.mxu0 0.0
        %1253 = vmatpush1.xpose.msra.mxu0 0.0
        %1254 = vmatprep.subr.mxu0 0.0
        %1255 = vmatpush1.xpose.msra.mxu0 0.0
        %1256 = vmatprep.subr.mxu0 0.0
        %1257 = vmatpush1.xpose.msra.mxu0 0.0
        %1258 = vmatprep.subr.mxu0 0.0
        %1259 = vmatpush1.xpose.msra.mxu0 0.0
        %1260 = vmatprep.subr.mxu0 0.0
        %1261 = vmatpush1.xpose.msra.mxu0 0.0
        %1262 = vmatprep.subr.mxu0 0.0
        %1263 = vmatpush1.xpose.msra.mxu0 0.0
        %1264 = vmatprep.subr.mxu0 0.0
        %1265 = vmatpush1.xpose.msra.mxu0 0.0
        %1266 = vmatprep.subr.mxu0 0.0
        %1267 = vmatpush1.xpose.msra.mxu0 0.0
        %1268 = vmatprep.subr.mxu0 0.0
        %1269 = vmatpush1.xpose.msra.mxu0 0.0
        %1270 = vmatprep.subr.mxu0 0.0
        %1271 = vmatpush1.xpose.msra.mxu0 0.0
        %1272 = vmatprep.subr.mxu0 0.0
        %1273 = vmatpush1.xpose.msra.mxu0 0.0
        %1274 = vmatprep.mubr.f32.mxu0 0.0
        %1275 = vmatmul.mubr.f32.gmra.mrb[0].mxu0 %v1205
        %v1276 = vpop.f32.mrb[0].mxu0
        %v1277 = vadd.f32 0.0, %v1276
        %v1278 = vpop.f32.mrb[0].mxu0
        %1279 = vmatprep.mubr.f32.mxu0 0.0
        %1280 = vmatmul.mubr.f32.gmra.mrb[0].mxu0 %v1208
        %v1281 = vpop.f32.mrb[0].mxu0
        %v1282 = vadd.f32 0.0, %v1281
        %v1283 = vpop.f32.mrb[0].mxu0
        %1284 = vdwg.mxu0
        %v1285 = vmul.f32 %v1202, %v582
        %v1286 = vmul.f32 %v1203, %v583
        %v1287 = vsel %vm591, %v1285, 0.0
        %1288 = vadd.xlane.f32.xlu0 %v1287
        %v1289 = vpop.xlane.xlu0 %1288
        %v1290 = vsel %vm591, %v1286, 0.0
        %1291 = vadd.xlane.f32.xlu0 %v1290
        %v1292 = vpop.xlane.xlu0 %1291
        %v1293 = vsub.f32 %v1277, %v1289
        %v1294 = vsub.f32 %v1282, %v1292
        %v1295 = vsel %vm702, 0.0, %v1293
        %v1296 = vsel %vm703, 0.0, %v1294
        %v1297 = vmul.f32 %v1202, %v1202
        %v1298 = vmul.f32 %v1203, %v1203
        %v1299 = vsel %vm591, %v1297, 0.0
        %1300 = vadd.xlane.f32.xlu0 %v1299
        %v1301 = vpop.xlane.xlu0 %1300
        %v1302 = vsel %vm591, %v1298, 0.0
        %1303 = vadd.xlane.f32.xlu0 %v1302
        %v1304 = vpop.xlane.xlu0 %1303
        %v1305 = vadd.f32 %v1301, 1e-16
        %v1306 = vadd.f32 %v1304, 1e-16
        %v1307 = vrsqrt.pop %v1305
        %v1308 = vrsqrt.pop %v1306
        %v1309 = vmul.f32 %v1295, %v766
        %v1310 = vmul.f32 %v1296, %v767
        %v1311 = vmul.f32 %v1309, %v1307
        %v1312 = vmul.f32 %v1310, %v1308
        %v1313 = vmul.f32 %v1311, %v1311
        %v1314 = vmul.f32 %v1312, %v1312
        %v1315 = vsel %vm881, %v1313, 0.0
        %1316 = vadd.xlane.f32.xlu0 %v1315
        %v1317 = vpop.xlane.xlu0 %1316
        %v1318 = vsel %vm881, %v1314, 0.0
        %1319 = vadd.xlane.f32.xlu0 %v1318
        %v1320 = vpop.xlane.xlu0 %1319
        %v1321 = vmax.f32 %v1317, 1e-24
        %v1322 = vmax.f32 %v1320, 1e-24
        %v1323 = vrsqrt.pop %v1321
        %v1324 = vrsqrt.pop %v1322
        %v1325 = vpack.c.bf16 %v1312, %v1311
        %v1327 = vsel %vm881, %v1325, 0
        %1329 = vmatprep.subr.bf16.mxu0 0
        %1330 = vmatpush1.bf16.msra.mxu0 %v897
        %1331 = vmatprep.subr.bf16.mxu0 0
        %1332 = vmatpush1.bf16.msra.mxu0 0
        %1333 = vmatprep.subr.bf16.mxu0 0
        %1334 = vmatpush1.bf16.msra.mxu0 0
        %1335 = vmatprep.subr.bf16.mxu0 0
        %1336 = vmatpush1.bf16.msra.mxu0 0
        %1337 = vmatprep.subr.bf16.mxu0 0
        %1338 = vmatpush1.bf16.msra.mxu0 0
        %1339 = vmatprep.subr.bf16.mxu0 0
        %1340 = vmatpush1.bf16.msra.mxu0 0
        %1341 = vmatprep.subr.bf16.mxu0 0
        %1342 = vmatpush1.bf16.msra.mxu0 0
        %1343 = vmatprep.subr.bf16.mxu0 0
        %1344 = vmatpush1.bf16.msra.mxu0 0
        %1345 = vmatprep.subr.bf16.mxu0 0
        %1346 = vmatpush1.bf16.msra.mxu0 0
        %1347 = vmatprep.subr.bf16.mxu0 0
        %1348 = vmatpush1.bf16.msra.mxu0 0
        %1349 = vmatprep.subr.bf16.mxu0 0
        %1350 = vmatpush1.bf16.msra.mxu0 0
        %1351 = vmatprep.subr.bf16.mxu0 0
        %1352 = vmatpush1.bf16.msra.mxu0 0
        %1353 = vmatprep.subr.bf16.mxu0 0
        %1354 = vmatpush1.bf16.msra.mxu0 0
        %1355 = vmatprep.subr.bf16.mxu0 0
        %1356 = vmatpush1.bf16.msra.mxu0 0
        %1357 = vmatprep.subr.bf16.mxu0 0
        %1358 = vmatpush1.bf16.msra.mxu0 0
        %1359 = vmatprep.subr.bf16.mxu0 0
        %1360 = vmatpush1.bf16.msra.mxu0 0
        %1361 = vmatprep.mubr.bf16.mxu0 0
        %1362 = vmatmul.mubr.bf16.gmra.mrb[0].mxu0 %v1327
        %v1363 = vpop.f32.mrb[0].mxu0
        %v1364 = vadd.f32 0.0, %v1363
        %v1365 = vpop.f32.mrb[0].mxu0
        %v1366 = vpop.f32.mrb[0].mxu0
        %v1367 = vadd.f32 0.0, %v1366
        %v1368 = vpop.f32.mrb[0].mxu0
        %1369 = vdwg.mxu0
        %v1370 = vmul.f32 %v1364, %v1323
        %v1371 = vmul.f32 %v1367, %v1324
        %v1372 = vadd.f32 %v1370, %v949
        %v1373 = vadd.f32 %v1371, %v949
        %1374 = vadd.xlane.f32.xlu0 %v1372
        %v1375 = vpop.xlane.xlu0 %1374
        %1376 = vadd.xlane.f32.xlu0 %v1373
        %v1377 = vpop.xlane.xlu0 %1376
        %v1378 = vmul.f32 %v1375, 0.03125
        %v1379 = vmul.f32 %v1377, 0.03125
        %v1380 = vsub.f32 %v1372, %v1378
        %v1381 = vsub.f32 %v1373, %v1379
        %v1382 = vsel %vm959, %v1380, 0.0
        %v1383 = vsel %vm959, %v1381, 0.0
        %v1384 = vmul.f32 %v1382, %v1382
        %v1385 = vmul.f32 %v1383, %v1383
        %1386 = vadd.xlane.f32.xlu0 %v1384
        %v1387 = vpop.xlane.xlu0 %1386
        %1388 = vadd.xlane.f32.xlu0 %v1385
        %v1389 = vpop.xlane.xlu0 %1388
        %v1390 = vmul.f32 %v1387, 0.03125
        %v1391 = vmul.f32 %v1389, 0.03125
        %v1392 = vadd.f32 %v1390, 1e-05
        %v1393 = vadd.f32 %v1391, 1e-05
        %v1394 = vrsqrt.pop %v1392
        %v1395 = vrsqrt.pop %v1393
        %v1396 = vmul.f32 %v1382, %v1394
        %v1397 = vmul.f32 %v1383, %v1395
        %v1398 = vmul.f32 %v1396, %v982
        %v1399 = vmul.f32 %v1397, %v982
        %v1400 = vadd.f32 %v1398, %v990
        %v1401 = vadd.f32 %v1399, %v990
        %v1402 = vmax.f32 %v1400, 0.0
        %v1403 = vmax.f32 %v1401, 0.0
        %v1404 = vmax.f32 %v1199, %v1402
        %v1405 = vmax.f32 %v1200, %v1403
        %v1406 = vld [vmem:[%s576] sm:$0xff]
        %v1407 = vld [vmem:[%s576 + $0x8] sm:$0xff]
        %v1408 = vld [vmem:[%s4] sm:$0x1]
        %v1410 = vlaneseq
        %v1411 = vshrl.u32 %v1410, 7
        %v1412 = vsub.s32 0, %v1411
        %v1413 = vrot.slane %v1408, %v1412
        %v1415 = vmul.f32 %v1406, %v1413
        %v1416 = vmul.f32 %v1407, %v1413
        %v1417 = vld [vmem:[%s9] sm:$0x1]
        %v1419 = vlaneseq
        %v1420 = vshrl.u32 %v1419, 7
        %v1421 = vsub.s32 0, %v1420
        %v1422 = vrot.slane %v1417, %v1421
        %v1424 = vadd.f32 %v1415, %v1422
        %v1425 = vadd.f32 %v1416, %v1422
        %v1426 = vld [vmem:[%s10] sm:$0x1]
        %v1427 = vld [vmem:[%s11] sm:$0x1]
        %1428 = vadd.xlane.f32.xlu0 %v1424
        %v1429 = vpop.xlane.xlu0 %1428
        %1430 = vadd.xlane.f32.xlu0 %v1425
        %v1431 = vpop.xlane.xlu0 %1430
        %v1432 = vmul.f32 %v1429, 0.03125
        %v1433 = vmul.f32 %v1431, 0.03125
        %v1434 = vsub.f32 %v1424, %v1432
        %v1435 = vsub.f32 %v1425, %v1433
        %v1436 = vsel %vm959, %v1434, 0.0
        %v1437 = vsel %vm959, %v1435, 0.0
        %v1438 = vmul.f32 %v1436, %v1436
        %v1439 = vmul.f32 %v1437, %v1437
        %1440 = vadd.xlane.f32.xlu0 %v1438
        %v1441 = vpop.xlane.xlu0 %1440
        %1442 = vadd.xlane.f32.xlu0 %v1439
        %v1443 = vpop.xlane.xlu0 %1442
        %v1444 = vmul.f32 %v1441, 0.03125
        %v1445 = vmul.f32 %v1443, 0.03125
        %v1446 = vadd.f32 %v1444, 1e-05
        %v1447 = vadd.f32 %v1445, 1e-05
        %v1448 = vrsqrt.pop %v1446
        %v1449 = vrsqrt.pop %v1447
        %v1450 = vmul.f32 %v1436, %v1448
        %v1451 = vmul.f32 %v1437, %v1449
        %v1453 = vlaneseq
        %v1454 = vshrl.u32 %v1453, 7
        %v1455 = vsub.s32 0, %v1454
        %v1456 = vrot.slane %v1426, %v1455
        %v1458 = vmul.f32 %v1450, %v1456
        %v1459 = vmul.f32 %v1451, %v1456
        %v1461 = vlaneseq
        %v1462 = vshrl.u32 %v1461, 7
        %v1463 = vsub.s32 0, %v1462
        %v1464 = vrot.slane %v1427, %v1463
        %v1466 = vadd.f32 %v1458, %v1464
        %v1467 = vadd.f32 %v1459, %v1464
        %v1468 = vmax.f32 %v1466, 0.0
        %v1469 = vmax.f32 %v1467, 0.0
        %v1470 = vadd.f32 %v1404, %v1468
        %v1471 = vadd.f32 %v1405, %v1469
        %1472 = vst [vmem:[%s551] sm:$0xff] %v1470
        %1473 = vst [vmem:[%s551 + $0x8] sm:$0xff] %v1471
        %s1474 = sand.u32 %s326, 1
        %s1475 = scalar_lea.sflag [#allocation4], %s1474
        %s1476 = sand.u32 %s326, 1
        %s1477 = smul.addr %s1476, 16
        %s1478 = scalar_lea.vmem [#allocation3], %s1477
        // Predicated region
        $region107: #{geo_encoder_forward.3} parent=101 // pred_check
          %p1479 = pneg %p336
        $region108: #{geo_encoder_forward.3} parent=101 // pred_check_branch
          %1481 = sbr.rel (%p1479) target = $region110
        $region109: #{geo_encoder_forward.3} parent=101 // pred_region
          %s1482 = smul.u32 2, %s31
          %s1484 = ssub.s32 256, 256
          %1485 = vsyncadd %s1475, %s1484
          %s1486 = smul.addr %s30, 2
          %s1487 = sadd.s32 %s1482, %s1486
          %s1488 = smul.addr %s1487, 128
          %s1489 = scalar_lea.hbm %s12, %s1488
          %s1490 = sshll.u32 %s1478, 4
          %s1491 = int_to_ptr.vmem [resolvable:$true] %s1490
          %1496 = dma.vmem_to_hbm [thread:$0]  %s1491, 256, %s1489, %s1475, 128, 128, 8
        $region110: #{geo_encoder_forward.3} parent=101 // pred_fallthru
          _
      $region102: #{geo_encoder_forward.3} parent=5 // pred_fallthru
        _
      %p1497 = scmp.le.s32.totalorder 2, %s21
      // Predicated region
      $region111: #{geo_encoder_forward.3} parent=5 // pred_check
        %p1498 = pneg %p1497
      $region112: #{geo_encoder_forward.3} parent=5 // pred_check_branch
        %1500 = sbr.rel (%p1498) target = $region114
      $region113: #{geo_encoder_forward.3} parent=5 // pred_region
        %s1501 = ssub.s32 %s21, 2
        // Predicated region
        $region115: #{geo_encoder_forward.3} parent=113 // pred_check
          %p1502 = pneg %p342
        $region116: #{geo_encoder_forward.3} parent=113 // pred_check_branch
          %1504 = sbr.rel (%p1502) target = $region118
        $region117: #{geo_encoder_forward.3} parent=113 // pred_region
          %s1505 = sand.u32 %s327, 1
          %s1506 = scalar_lea.sflag [#allocation4], %s1505
          %s1507 = sand.u32 %s327, 1
          %s1508 = smul.addr %s1507, 16
          %s1509 = scalar_lea.vmem [#allocation3], %s1508
          %1510 = dma.done %s1506, 256
        $region118: #{geo_encoder_forward.3} parent=113 // pred_fallthru
          _
      $region114: #{geo_encoder_forward.3} parent=5 // pred_fallthru
        _
    $region6: #{geo_encoder_forward.3} parent=1 // loop_footer
      %s25 = sadd.s32 1, %s21
    $region7: #{geo_encoder_forward.3} parent=1 // loop_footer_branch
      %20 = sbr.rel target = $region3
    $region8: #{geo_encoder_forward.3} parent=1 // loop_exit
      _
    %1511 = vsyncpa [#allocation4], 1
    %s1512 = scalar_lea.sflag [#allocation4], 1
    %1513 = vsyncpa %s1512, 1

// kernel: geo_encoder_forward.2
$region0: #{geo_encoder_forward.2}
  #allocation0 [shape = 'u32[]', space=smem, size = 0x4, offset = 0x4, fixed_abs, tag = 'smem constant byte address 0x4 - core index']
  #allocation1 [shape = 'u32[144,128]{1,0:T(1,128)}', space=vmem, size = 0x12000, scoped, tag = 'internal scratch']
  %s0 = inlined_call_operand.vmem [shape: f32[2,16,3], index: 0, kind: input, shape index: {}, may-alias: {0,1}]
  %s1 = inlined_call_operand.vmem [shape: f32[2,16,3], index: 1, kind: input, shape index: {}, may-alias: {0,1}]
  %s2 = inlined_call_operand.vmem [shape: bf16[16,128], index: 2, kind: input, shape index: {}]
  %s3 = inlined_call_operand.vmem [shape: f32[2,16,128], index: 3, kind: output, shape index: {0}]
  %s4 = inlined_call_operand.vmem [shape: f32[2,1,8,128], index: 4, kind: output, shape index: {1}]
  %s5 = inlined_call_operand.vmem [shape: s32[2,16,3], index: 5, kind: output, shape index: {2}]
  %6 = xla_tuple %s3, %s4, %s5
  %s7 = sld [smem:[#allocation0]]
  $region61: #{geo_encoder_forward.2} parent=0
    _
  %s9 = ssub.s32 1, %s7
  %s10 = scalar_select 0, %s9, %s7
  loop: start=0, step=1, limit=4
  $region2: #{geo_encoder_forward.2} parent=0 // loop_pre_header
    _
  $region3: #{geo_encoder_forward.2} parent=0 // loop_header
    %s12 = sphi 0, %s16
    %p13 = scmp.ge.s32.totalorder %s12, 4
    %s19 = sphi 0, %s31
    %s20 = sphi 0, %s27
    %s21 = sphi 0, %s19
    %s22 = sphi 0, %s20
    %s23 = sphi 0, %s21
    %s24 = sphi 0, %s22
    %s34 = sphi 0, %s36
    %s37 = sphi 0, %s34
    %s38 = sphi 0, %s37
    %s54 = sphi 0, %s38
    %s62 = sphi 0, %s64
    %s65 = sphi 0, %s62
    %s66 = sphi 0, %s65
    %s82 = sphi 0, %s66
    %s86 = sphi 0, %s86
    %s88 = sphi 0, %s86
    %s89 = sphi 0, %s88
    %s103 = sphi 0, %s89
    %s111 = sphi 0, %s113
    %s114 = sphi 0, %s111
    %s115 = sphi 0, %s114
    %s131 = sphi 0, %s115
    %s139 = sphi 0, %s141
    %s142 = sphi 0, %s139
    %s143 = sphi 0, %s142
    %s159 = sphi 0, %s143
    %s167 = sphi 0, %s169
    %s170 = sphi 0, %s167
    %s171 = sphi 0, %s170
    %s187 = sphi 0, %s171
  $region4: #{geo_encoder_forward.2} parent=0 // loop_header_branch
    %15 = sbr.rel (%p13) target = $region8
  $region5: #{geo_encoder_forward.2} parent=0 // loop_body
    %s17 = ssub.s32 %s12, 1
    %s18 = ssub.s32 %s12, 2
    %s25 = sadd.s32 1, %s20
    %p26 = scmp.ge.s32.totalorder %s25, 1
    %s27 = scalar_select %p26, 0, %s25
    %s28 = sadd.s32 1, %s19
    %s29 = scalar_select %p26, %s28, %s19
    %p30 = scmp.ge.s32.totalorder %s29, 2
    %s31 = scalar_select %p30, 0, %s29
    %s32 = ssub.s32 %s19, %s31
    %p33 = scmp.eq.s32.totalorder %s32, 0
    %s35 = sadd.s32 %s34, 1
    %s36 = scalar_select %p33, %s34, %s35
    %p39 = pneg %p33
    %p40 = scmp.eq.s32.totalorder %s12, 1
    %p41 = por %p39, %p40
    %p42 = scmp.ne.s32.totalorder %s34, %s37
    %p43 = scmp.eq.s32.totalorder %s12, 0
    %p44 = por %p42, %p43
    %p45 = scmp.ne.s32.totalorder %s34, %s37
    %p46 = scmp.eq.s32.totalorder %s17, 1
    %p47 = por %p45, %p46
    %p48 = scmp.ne.s32.totalorder %s37, %s38
    %p49 = scmp.eq.s32.totalorder %s17, 0
    %p50 = por %p48, %p49
    %p51 = scmp.ne.s32.totalorder %s37, %s38
    %p52 = scmp.eq.s32.totalorder %s18, 1
    %p53 = por %p51, %p52
    %p55 = scmp.ne.s32.totalorder %s38, %s54
    %p56 = scmp.eq.s32.totalorder %s18, 0
    %p57 = por %p55, %p56
    %s58 = ssub.s32 %s19, %s31
    %s59 = ssub.s32 %s20, %s27
    %s60 = sor.u32 %s58, %s59
    %p61 = scmp.eq.s32.totalorder %s60, 0
    %s63 = sadd.s32 %s62, 1
    %s64 = scalar_select %p61, %s62, %s63
    %p67 = pneg %p61
    %p68 = scmp.eq.s32.totalorder %s12, 1
    %p69 = por %p67, %p68
    %p70 = scmp.ne.s32.totalorder %s62, %s65
    %p71 = scmp.eq.s32.totalorder %s12, 0
    %p72 = por %p70, %p71
    %p73 = scmp.ne.s32.totalorder %s62, %s65
    %p74 = scmp.eq.s32.totalorder %s17, 1
    %p75 = por %p73, %p74
    %p76 = scmp.ne.s32.totalorder %s65, %s66
    %p77 = scmp.eq.s32.totalorder %s17, 0
    %p78 = por %p76, %p77
    %p79 = scmp.ne.s32.totalorder %s65, %s66
    %p80 = scmp.eq.s32.totalorder %s18, 1
    %p81 = por %p79, %p80
    %p83 = scmp.ne.s32.totalorder %s66, %s82
    %p84 = scmp.eq.s32.totalorder %s18, 0
    %p85 = por %p83, %p84
    %s87 = sadd.s32 %s86, 1
    %p90 = scmp.eq.s32.totalorder %s12, 1
    %p91 = scmp.ne.s32.totalorder %s86, %s88
    %p92 = scmp.eq.s32.totalorder %s12, 0
    %p93 = por %p91, %p92
    %p94 = scmp.ne.s32.totalorder %s86, %s88
    %p95 = scmp.eq.s32.totalorder %s17, 1
    %p96 = por %p94, %p95
    %p97 = scmp.ne.s32.totalorder %s88, %s89
    %p98 = scmp.eq.s32.totalorder %s17, 0
    %p99 = por %p97, %p98
    %p100 = scmp.ne.s32.totalorder %s88, %s89
    %p101 = scmp.eq.s32.totalorder %s18, 1
    %p102 = por %p100, %p101
    %p104 = scmp.ne.s32.totalorder %s89, %s103
    %p105 = scmp.eq.s32.totalorder %s18, 0
    %p106 = por %p104, %p105
    %s107 = ssub.s32 %s19, %s31
    %s108 = ssub.s32 %s20, %s27
    %s109 = sor.u32 %s107, %s108
    %p110 = scmp.eq.s32.totalorder %s109, 0
    %s112 = sadd.s32 %s111, 1
    %s113 = scalar_select %p110, %s111, %s112
    %p116 = pneg %p110
    %p117 = scmp.eq.s32.totalorder %s12, 1
    %p118 = por %p116, %p117
    %p119 = scmp.ne.s32.totalorder %s111, %s114
    %p120 = scmp.eq.s32.totalorder %s12, 0
    %p121 = por %p119, %p120
    %p122 = scmp.ne.s32.totalorder %s111, %s114
    %p123 = scmp.eq.s32.totalorder %s17, 1
    %p124 = por %p122, %p123
    %p125 = scmp.ne.s32.totalorder %s114, %s115
    %p126 = scmp.eq.s32.totalorder %s17, 0
    %p127 = por %p125, %p126
    %p128 = scmp.ne.s32.totalorder %s114, %s115
    %p129 = scmp.eq.s32.totalorder %s18, 1
    %p130 = por %p128, %p129
    %p132 = scmp.ne.s32.totalorder %s115, %s131
    %p133 = scmp.eq.s32.totalorder %s18, 0
    %p134 = por %p132, %p133
    %s135 = ssub.s32 %s19, %s31
    %s136 = ssub.s32 %s20, %s27
    %s137 = sor.u32 %s135, %s136
    %p138 = scmp.eq.s32.totalorder %s137, 0
    %s140 = sadd.s32 %s139, 1
    %s141 = scalar_select %p138, %s139, %s140
    %p144 = pneg %p138
    %p145 = scmp.eq.s32.totalorder %s12, 1
    %p146 = por %p144, %p145
    %p147 = scmp.ne.s32.totalorder %s139, %s142
    %p148 = scmp.eq.s32.totalorder %s12, 0
    %p149 = por %p147, %p148
    %p150 = scmp.ne.s32.totalorder %s139, %s142
    %p151 = scmp.eq.s32.totalorder %s17, 1
    %p152 = por %p150, %p151
    %p153 = scmp.ne.s32.totalorder %s142, %s143
    %p154 = scmp.eq.s32.totalorder %s17, 0
    %p155 = por %p153, %p154
    %p156 = scmp.ne.s32.totalorder %s142, %s143
    %p157 = scmp.eq.s32.totalorder %s18, 1
    %p158 = por %p156, %p157
    %p160 = scmp.ne.s32.totalorder %s143, %s159
    %p161 = scmp.eq.s32.totalorder %s18, 0
    %p162 = por %p160, %p161
    %s163 = ssub.s32 %s19, %s31
    %s164 = ssub.s32 %s20, %s27
    %s165 = sor.u32 %s163, %s164
    %p166 = scmp.eq.s32.totalorder %s165, 0
    %s168 = sadd.s32 %s167, 1
    %s169 = scalar_select %p166, %s167, %s168
    %p172 = pneg %p166
    %p173 = scmp.eq.s32.totalorder %s12, 1
    %p174 = por %p172, %p173
    %p175 = scmp.ne.s32.totalorder %s167, %s170
    %p176 = scmp.eq.s32.totalorder %s12, 0
    %p177 = por %p175, %p176
    %p178 = scmp.ne.s32.totalorder %s167, %s170
    %p179 = scmp.eq.s32.totalorder %s17, 1
    %p180 = por %p178, %p179
    %p181 = scmp.ne.s32.totalorder %s170, %s171
    %p182 = scmp.eq.s32.totalorder %s17, 0
    %p183 = por %p181, %p182
    %p184 = scmp.ne.s32.totalorder %s170, %s171
    %p185 = scmp.eq.s32.totalorder %s18, 1
    %p186 = por %p184, %p185
    %p188 = scmp.ne.s32.totalorder %s171, %s187
    %p189 = scmp.eq.s32.totalorder %s18, 0
    %p190 = por %p188, %p189
    %p191 = scmp.le.s32.totalorder 1, %s12
    %p192 = scmp.lt.s32.totalorder %s12, 3
    %p193 = pnand %p191, %p192
    %p194 = pneg %p193
    // Predicated region
    $region9: #{geo_encoder_forward.2} parent=5 // pred_check
      _
    $region10: #{geo_encoder_forward.2} parent=5 // pred_check_branch
      %196 = sbr.rel (%p193) target = $region12
    $region11: #{geo_encoder_forward.2} parent=5 // pred_region
      %s197 = ssub.s32 %s12, 1
      // Predicated region
      $region13: #{geo_encoder_forward.2} parent=11 // pred_check
        %p198 = pneg %p99
      $region14: #{geo_encoder_forward.2} parent=11 // pred_check_branch
        %200 = sbr.rel (%p198) target = $region16
      $region15: #{geo_encoder_forward.2} parent=11 // pred_region
        _
      $region16: #{geo_encoder_forward.2} parent=11 // pred_fallthru
        _
    $region12: #{geo_encoder_forward.2} parent=5 // pred_fallthru
      _
    %p201 = scmp.lt.s32.totalorder %s12, 2
    // Predicated region
    $region17: #{geo_encoder_forward.2} parent=5 // pred_check
      %p202 = pneg %p201
    $region18: #{geo_encoder_forward.2} parent=5 // pred_check_branch
      %204 = sbr.rel (%p202) target = $region20
    $region19: #{geo_encoder_forward.2} parent=5 // pred_region
      // Predicated region
      $region21: #{geo_encoder_forward.2} parent=19 // pred_check
        %p205 = pneg %p44
      $region22: #{geo_encoder_forward.2} parent=19 // pred_check_branch
        %207 = sbr.rel (%p205) target = $region24
      $region23: #{geo_encoder_forward.2} parent=19 // pred_region
        %p208 = scmp.lt.s32.totalorder %s19, 1
        %s209 = scalar_select %p208, %s19, 1
        %s210 = smul.addr %s209, 2
        %s211 = smul.addr %s210, 8
        %s212 = scalar_lea.vmem %s0, %s211
      $region24: #{geo_encoder_forward.2} parent=19 // pred_fallthru
        _
      // Predicated region
      $region25: #{geo_encoder_forward.2} parent=19 // pred_check
        %p213 = pneg %p72
      $region26: #{geo_encoder_forward.2} parent=19 // pred_check_branch
        %215 = sbr.rel (%p213) target = $region28
      $region27: #{geo_encoder_forward.2} parent=19 // pred_region
        %s216 = smul.u32 2, %s20
        %p217 = scmp.lt.s32.totalorder %s19, 1
        %s218 = scalar_select %p217, %s19, 1
        %p219 = scmp.lt.s32.totalorder %s216, 1
        %s220 = scalar_select %p219, %s216, 1
        %s221 = smul.addr %s218, 2
        %s222 = sadd.s32 %s220, %s221
        %s223 = smul.addr %s222, 8
        %s224 = scalar_lea.vmem %s1, %s223
        %s225 = smul.u32 2, %s20
      $region28: #{geo_encoder_forward.2} parent=19 // pred_fallthru
        _
    $region20: #{geo_encoder_forward.2} parent=5 // pred_fallthru
      _
    %p226 = scmp.le.s32.totalorder 1, %s12
    %p227 = scmp.lt.s32.totalorder %s12, 3
    %p228 = pnand %p226, %p227
    %p229 = pneg %p228
    // Predicated region
    $region29: #{geo_encoder_forward.2} parent=5 // pred_check
      _
    $region30: #{geo_encoder_forward.2} parent=5 // pred_check_branch
      %231 = sbr.rel (%p228) target = $region32
    $region31: #{geo_encoder_forward.2} parent=5 // pred_region
      %s232 = ssub.s32 %s12, 1
      %p233 = scmp.lt.s32.totalorder %s21, 1
      %s234 = scalar_select %p233, %s21, 1
      %s235 = smul.addr %s234, 2
      %s236 = smul.addr %s235, 8
      %s237 = scalar_lea.vmem %s0, %s236
      %p238 = pneg %p50
      %p239 = pneg %p47
      %s240 = smul.u32 2, %s22
      %p241 = scmp.lt.s32.totalorder %s21, 1
      %s242 = scalar_select %p241, %s21, 1
      %p243 = scmp.lt.s32.totalorder %s240, 1
      %s244 = scalar_select %p243, %s240, 1
      %s245 = smul.addr %s242, 2
      %s246 = sadd.s32 %s244, %s245
      %s247 = smul.addr %s246, 8
      %s248 = scalar_lea.vmem %s1, %s247
      %p249 = pneg %p78
      %p250 = pneg %p75
      %p251 = pneg %p99
      %p252 = pneg %p96
      %p253 = pneg %p127
      %p254 = pneg %p124
      %s255 = smul.u32 2, %s22
      %p256 = scmp.lt.s32.totalorder %s21, 1
      %s257 = scalar_select %p256, %s21, 1
      %p258 = scmp.lt.s32.totalorder %s255, 1
      %s259 = scalar_select %p258, %s255, 1
      %s260 = smul.addr %s257, 2
      %s261 = sadd.s32 %s259, %s260
      %s262 = smul.addr %s261, 8
      %s263 = scalar_lea.vmem %s3, %s262
      %p264 = pneg %p155
      %p265 = pneg %p152
      %p266 = scmp.lt.s32.totalorder %s21, 1
      %s267 = scalar_select %p266, %s21, 1
      %p268 = scmp.lt.s32.totalorder %s22, 0
      %s269 = scalar_select %p268, %s22, 0
      %s270 = sadd.s32 %s269, %s267
      %s271 = smul.addr %s270, 8
      %s272 = scalar_lea.vmem %s4, %s271
      %p273 = pneg %p183
      %p274 = pneg %p180
      %s275 = smul.u32 2, %s22
      %p276 = scmp.lt.s32.totalorder %s21, 1
      %s277 = scalar_select %p276, %s21, 1
      %p278 = scmp.lt.s32.totalorder %s275, 1
      %s279 = scalar_select %p278, %s275, 1
      %s280 = smul.addr %s277, 2
      %s281 = sadd.s32 %s279, %s280
      %s282 = smul.addr %s281, 8
      %s283 = scalar_lea.vmem %s5, %s282
      %p284 = scmp.lt.s32.totalorder %s21, 1
      %s285 = scalar_select %p284, %s21, 1
      %s286 = smul.addr %s285, 2
      %s287 = smul.addr %s286, 8
      %s288 = scalar_lea.vmem %s0, %s287
      %s289 = smul.u32 2, %s22
      %p290 = scmp.lt.s32.totalorder %s21, 1
      %s291 = scalar_select %p290, %s21, 1
      %p292 = scmp.lt.s32.totalorder %s289, 1
      %s293 = scalar_select %p292, %s289, 1
      %s294 = smul.addr %s291, 2
      %s295 = sadd.s32 %s293, %s294
      %s296 = smul.addr %s295, 8
      %s297 = scalar_lea.vmem %s1, %s296
      %s298 = smul.u32 2, %s22
      %s299 = smul.u32 2, %s22
      %p300 = scmp.lt.s32.totalorder %s21, 1
      %s301 = scalar_select %p300, %s21, 1
      %p302 = scmp.lt.s32.totalorder %s299, 1
      %s303 = scalar_select %p302, %s299, 1
      %s304 = smul.addr %s301, 2
      %s305 = sadd.s32 %s303, %s304
      %s306 = smul.addr %s305, 8
      %s307 = scalar_lea.vmem %s3, %s306
      %s308 = smul.u32 2, %s22
      %p309 = scmp.lt.s32.totalorder %s21, 1
      %s310 = scalar_select %p309, %s21, 1
      %p311 = scmp.lt.s32.totalorder %s22, 0
      %s312 = scalar_select %p311, %s22, 0
      %s313 = sadd.s32 %s312, %s310
      %s314 = smul.addr %s313, 8
      %s315 = scalar_lea.vmem %s4, %s314
      %s316 = smul.u32 2, %s22
      %p317 = scmp.lt.s32.totalorder %s21, 1
      %s318 = scalar_select %p317, %s21, 1
      %p319 = scmp.lt.s32.totalorder %s316, 1
      %s320 = scalar_select %p319, %s316, 1
      %s321 = smul.addr %s318, 2
      %s322 = sadd.s32 %s320, %s321
      %s323 = smul.addr %s322, 8
      %s324 = scalar_lea.vmem %s5, %s323
      %s325 = smul.u32 2, %s22
      %v327 = vld [vmem:[%s288] sm:$0xff]
      %v328 = vld [vmem:[%s288 + $0x8] sm:$0xff]
      %v329 = vld [vmem:[%s297] sm:$0xff]
      %v330 = vld [vmem:[%s297 + $0x8] sm:$0xff]
      %v331 = vld [vmem:[%s2] sm:$0xf]
      %v332 = vld [vmem:[%s2 + $0x4] sm:$0xf]
      %v333 = vmul.f32 %v327, %v327
      %v334 = vmul.f32 %v328, %v328
      %vm335 = vcmask 23552
      %v336 = vsel %vm335, %v333, 0.0
      %337 = vadd.xlane.f32.xlu0 %v336
      %v338 = vpop.xlane.xlu0 %337
      %v339 = vsel %vm335, %v334, 0.0
      %340 = vadd.xlane.f32.xlu0 %v339
      %v341 = vpop.xlane.xlu0 %340
      %v342 = vmul.f32 %v329, %v329
      %v343 = vmul.f32 %v330, %v330
      %v344 = vsel %vm335, %v342, 0.0
      %345 = vadd.xlane.f32.xlu0 %v344
      %v346 = vpop.xlane.xlu0 %345
      %v347 = vsel %vm335, %v343, 0.0
      %348 = vadd.xlane.f32.xlu0 %v347
      %v349 = vpop.xlane.xlu0 %348
      %v351 = vsel %vm335, %v329, 0
      %v354 = vsel %vm335, %v330, 0
      %v357 = vsel %vm335, %v327, 0
      %v360 = vsel %vm335, %v328, 0
      %362 = vmatprep.subr.mxu0 0.0
      %363 = vmatpush1.xpose.msra.mxu0 %v357
      %364 = vmatprep.subr.mxu0 0.0
      %365 = vmatpush1.xpose.msra.mxu0 %v360
      %366 = vmatprep.subr.mxu0 0.0
      %367 = vmatpush1.xpose.msra.mxu0 0.0
      %368 = vmatprep.subr.mxu0 0.0
      %369 = vmatpush1.xpose.msra.mxu0 0.0
      %370 = vmatprep.subr.mxu0 0.0
      %371 = vmatpush1.xpose.msra.mxu0 0.0
      %372 = vmatprep.subr.mxu0 0.0
      %373 = vmatpush1.xpose.msra.mxu0 0.0
      %374 = vmatprep.subr.mxu0 0.0
      %375 = vmatpush1.xpose.msra.mxu0 0.0
      %376 = vmatprep.subr.mxu0 0.0
      %377 = vmatpush1.xpose.msra.mxu0 0.0
      %378 = vmatprep.subr.mxu0 0.0
      %379 = vmatpush1.xpose.msra.mxu0 0.0
      %380 = vmatprep.subr.mxu0 0.0
      %381 = vmatpush1.xpose.msra.mxu0 0.0
      %382 = vmatprep.subr.mxu0 0.0
      %383 = vmatpush1.xpose.msra.mxu0 0.0
      %384 = vmatprep.subr.mxu0 0.0
      %385 = vmatpush1.xpose.msra.mxu0 0.0
      %386 = vmatprep.subr.mxu0 0.0
      %387 = vmatpush1.xpose.msra.mxu0 0.0
      %388 = vmatprep.subr.mxu0 0.0
      %389 = vmatpush1.xpose.msra.mxu0 0.0
      %390 = vmatprep.subr.mxu0 0.0
      %391 = vmatpush1.xpose.msra.mxu0 0.0
      %392 = vmatprep.subr.mxu0 0.0
      %393 = vmatpush1.xpose.msra.mxu0 0.0
      %394 = vmatprep.subr.mxu0 0.0
      %395 = vmatpush1.xpose.msra.mxu0 0.0
      %396 = vmatprep.subr.mxu0 0.0
      %397 = vmatpush1.xpose.msra.mxu0 0.0
      %398 = vmatprep.subr.mxu0 0.0
      %399 = vmatpush1.xpose.msra.mxu0 0.0
      %400 = vmatprep.subr.mxu0 0.0
      %401 = vmatpush1.xpose.msra.mxu0 0.0
      %402 = vmatprep.subr.mxu0 0.0
      %403 = vmatpush1.xpose.msra.mxu0 0.0
      %404 = vmatprep.subr.mxu0 0.0
      %405 = vmatpush1.xpose.msra.mxu0 0.0
      %406 = vmatprep.subr.mxu0 0.0
      %407 = vmatpush1.xpose.msra.mxu0 0.0
      %408 = vmatprep.subr.mxu0 0.0
      %409 = vmatpush1.xpose.msra.mxu0 0.0
      %410 = vmatprep.subr.mxu0 0.0
      %411 = vmatpush1.xpose.msra.mxu0 0.0
      %412 = vmatprep.subr.mxu0 0.0
      %413 = vmatpush1.xpose.msra.mxu0 0.0
      %414 = vmatprep.subr.mxu0 0.0
      %415 = vmatpush1.xpose.msra.mxu0 0.0
      %416 = vmatprep.subr.mxu0 0.0
      %417 = vmatpush1.xpose.msra.mxu0 0.0
      %418 = vmatprep.subr.mxu0 0.0
      %419 = vmatpush1.xpose.msra.mxu0 0.0
      %420 = vmatprep.subr.mxu0 0.0
      %421 = vmatpush1.xpose.msra.mxu0 0.0
      %422 = vmatprep.subr.mxu0 0.0
      %423 = vmatpush1.xpose.msra.mxu0 0.0
      %424 = vmatprep.subr.mxu0 0.0
      %425 = vmatpush1.xpose.msra.mxu0 0.0
      %426 = vmatprep.mubr.f32.mxu0 0.0
      %427 = vmatmul.mubr.f32.gmra.mrb[0].mxu0 %v351
      %v428 = vpop.f32.mrb[0].mxu0
      %v429 = vadd.f32 0.0, %v428
      %v430 = vpop.f32.mrb[0].mxu0
      %431 = vmatprep.mubr.f32.mxu0 0.0
      %432 = vmatmul.mubr.f32.gmra.mrb[0].mxu0 %v354
      %v433 = vpop.f32.mrb[0].mxu0
      %v434 = vadd.f32 0.0, %v433
      %v435 = vpop.f32.mrb[0].mxu0
      %436 = vdwg.mxu0
      %s437 = smul.u32 %s22, 16
      %v438 = vlaneseq
      %v439 = vshrl.u32 %v438, 7
      %v440 = vadd.s32 %v439, 8
      %v441 = vstv %s437
      %v442 = vadd.s32 %v439, %v441
      %v443 = vadd.s32 %v440, %v441
      %v444 = vlaneseq
      %v445 = vand.u32 %v444, 127
      %446 = vxpose.xlu0.b32.start [1/16] %v338, 128
      %447 = vxpose.xlu0.b32.cont [2/16] %v341, 128
      %448 = vxpose.xlu0.b32.cont [3/16] 0.0, 128
      %449 = vxpose.xlu0.b32.cont [4/16] 0.0, 128
      %450 = vxpose.xlu0.b32.cont [5/16] 0.0, 128
      %451 = vxpose.xlu0.b32.cont [6/16] 0.0, 128
      %452 = vxpose.xlu0.b32.cont [7/16] 0.0, 128
      %453 = vxpose.xlu0.b32.cont [8/16] 0.0, 128
      %454 = vxpose.xlu0.b32.cont [9/16] 0.0, 128
      %455 = vxpose.xlu0.b32.cont [10/16] 0.0, 128
      %456 = vxpose.xlu0.b32.cont [11/16] 0.0, 128
      %457 = vxpose.xlu0.b32.cont [12/16] 0.0, 128
      %458 = vxpose.xlu0.b32.cont [13/16] 0.0, 128
      %459 = vxpose.xlu0.b32.cont [14/16] 0.0, 128
      %460 = vxpose.xlu0.b32.cont [15/16] 0.0, 128
      %461 = vxpose.xlu0.b32.end [16/16] 0.0, 128
      %v462 = vpop.trf.xlu0
      %v463 = vpop.trf.xlu0
      %v464 = vpop.trf.xlu0
      %v465 = vpop.trf.xlu0
      %v466 = vpop.trf.xlu0
      %v467 = vpop.trf.xlu0
      %v468 = vpop.trf.xlu0
      %v469 = vpop.trf.xlu0
      %v470 = vpop.trf.xlu0
      %v471 = vpop.trf.xlu0
      %v472 = vpop.trf.xlu0
      %v473 = vpop.trf.xlu0
      %v474 = vpop.trf.xlu0
      %v475 = vpop.trf.xlu0
      %v476 = vpop.trf.xlu0
      %v477 = vpop.trf.xlu0
      %v478 = vlaneseq
      %v479 = vshrl.u32 %v478, 7
      %v480 = vsub.s32 0, %v479
      %v481 = vrot.slane %v462, %v480
      %v482 = vadd.f32 %v346, %v481
      %v483 = vadd.f32 %v349, %v481
      %v484 = vmul.f32 %v429, 2.0
      %v485 = vmul.f32 %v434, 2.0
      %v486 = vsub.f32 %v482, %v484
      %v487 = vsub.f32 %v483, %v485
      %v488 = vmax.f32 %v486, 0.0
      %v489 = vmax.f32 %v487, 0.0
      %v490 = vrsqrt.pop %v488
      %v491 = vmul.f32 %v488, %v490
      %vm492 = vcmp.eq.f32.partialorder %v488, inf
      %v493 = vsel %vm492, %v488, %v491
      %vm494 = vcmp.eq.f32.partialorder %v488, 0.0
      %v495 = vand.u32 %v488, 2147483648
      %v496 = vsel %vm494, %v495, %v493
      %v497 = vrsqrt.pop %v489
      %v498 = vmul.f32 %v489, %v497
      %vm499 = vcmp.eq.f32.partialorder %v489, inf
      %v500 = vsel %vm499, %v489, %v498
      %vm501 = vcmp.eq.f32.partialorder %v489, 0.0
      %v502 = vand.u32 %v489, 2147483648
      %v503 = vsel %vm501, %v502, %v500
      %vm504 = vcmp.eq.s32.totalorder %v442, %v445
      %vm505 = vcmp.eq.s32.totalorder %v443, %v445
      %v506 = vsel %vm504, 0.0, %v496
      %v507 = vsel %vm505, 0.0, %v503
      %vm508 = vcmp.lt.s32.totalorder %v442, 16
      %vm509 = vcmp.lt.s32.totalorder %v443, 16
      %v510 = vsel %vm508, %v506, 0.0
      %v511 = vsel %vm509, %v507, 0.0
      %vm512 = vcmask 130048
      %v513 = vsel %vm512, %v510, -inf
      %v514 = vsel %vm512, %v511, -inf
      %v515 = vmax.f32 %v513, %v514
      %516 = vmax.xlane.f32.xlu0 %v515
      %v517 = vpop.xlane.xlu0 %516
      %v518 = vrot.slane %v517, 4
      %v519 = vmax.f32 %v517, %v518
      %v520 = vrot.slane %v519, 2
      %v521 = vmax.f32 %v519, %v520
      %v522 = vrot.slane %v521, 1
      %v523 = vmax.f32 %v521, %v522
      %s524 = vtos %v523
      %v525 = vstv %s524
      %526 = vst [vmem:[%s315] sm:$0xff] %v525
      %v527 = vpack.c.bf16 %v507, %v506
      %v530 = vunpack.c.l.b16 %v331
      %v531 = vunpack.c.l.b16 %v332
      %v532 = vpack.c.b16 %v531, %v530
      %v535 = vsel %vm512, %v527, 0
      %537 = vmatprep.subr.bf16.mxu0 0
      %538 = vmatpush1.bf16.msra.mxu0 %v532
      %539 = vmatprep.subr.bf16.mxu0 0
      %540 = vmatpush1.bf16.msra.mxu0 0
      %541 = vmatprep.subr.bf16.mxu0 0
      %542 = vmatpush1.bf16.msra.mxu0 0
      %543 = vmatprep.subr.bf16.mxu0 0
      %544 = vmatpush1.bf16.msra.mxu0 0
      %545 = vmatprep.subr.bf16.mxu0 0
      %546 = vmatpush1.bf16.msra.mxu0 0
      %547 = vmatprep.subr.bf16.mxu0 0
      %548 = vmatpush1.bf16.msra.mxu0 0
      %549 = vmatprep.subr.bf16.mxu0 0
      %550 = vmatpush1.bf16.msra.mxu0 0
      %551 = vmatprep.subr.bf16.mxu0 0
      %552 = vmatpush1.bf16.msra.mxu0 0
      %553 = vmatprep.subr.bf16.mxu0 0
      %554 = vmatpush1.bf16.msra.mxu0 0
      %555 = vmatprep.subr.bf16.mxu0 0
      %556 = vmatpush1.bf16.msra.mxu0 0
      %557 = vmatprep.subr.bf16.mxu0 0
      %558 = vmatpush1.bf16.msra.mxu0 0
      %559 = vmatprep.subr.bf16.mxu0 0
      %560 = vmatpush1.bf16.msra.mxu0 0
      %561 = vmatprep.subr.bf16.mxu0 0
      %562 = vmatpush1.bf16.msra.mxu0 0
      %563 = vmatprep.subr.bf16.mxu0 0
      %564 = vmatpush1.bf16.msra.mxu0 0
      %565 = vmatprep.subr.bf16.mxu0 0
      %566 = vmatpush1.bf16.msra.mxu0 0
      %567 = vmatprep.subr.bf16.mxu0 0
      %568 = vmatpush1.bf16.msra.mxu0 0
      %569 = vmatprep.mubr.bf16.mxu0 0
      %570 = vmatmul.mubr.bf16.gmra.mrb[0].mxu0 %v535
      %v571 = vpop.f32.mrb[0].mxu0
      %v572 = vadd.f32 0.0, %v571
      %v573 = vpop.f32.mrb[0].mxu0
      %v574 = vpop.f32.mrb[0].mxu0
      %v575 = vadd.f32 0.0, %v574
      %v576 = vpop.f32.mrb[0].mxu0
      %577 = vdwg.mxu0
      %578 = vst [vmem:[%s307] sm:$0xff] %v572
      %579 = vst [vmem:[%s307 + $0x8] sm:$0xff] %v575
      %v580 = vsel %vm504, inf, %v496
      %v581 = vsel %vm505, inf, %v503
      %v582 = vsel %vm512, %v580, inf
      %583 = vmin.xlane.f32.xlu0 %v582
      %v584 = vpop.xlane.xlu0 %583
      %v585 = vsel %vm512, %v581, inf
      %586 = vmin.xlane.f32.xlu0 %v585
      %v587 = vpop.xlane.xlu0 %586
      %vm588 = vcmp.eq.f32.partialorder %v580, %v584
      %vm589 = vcmp.eq.f32.partialorder %v581, %v587
      %v590 = vsel %vm588, %v445, 16
      %v591 = vsel %vm589, %v445, 16
      %v592 = vsel %vm512, %v590, 2147483647
      %v593 = vand.u32 %v592, 65535
      %v594 = vshra.s32 %v592, 16
      %v595 = vcvt.s32.f32 %v593
      %v596 = vcvt.s32.f32 %v594
      %597 = vmin.xlane.f32.xlu0 %v596
      %v598 = vpop.xlane.xlu0 %597
      %vm599 = vcmp.eq.f32.partialorder %v596, %v598
      %v600 = vsel %vm599, %v595, inf
      %601 = vmin.xlane.f32.xlu0 %v600
      %v602 = vpop.xlane.xlu0 %601
      %v603 = vcvt.f32.s32 %v602
      %v604 = vcvt.f32.s32 %v598
      %v605 = vshll.u32 %v604, 16
      %v606 = vadd.s32 %v605, %v603
      %v607 = vsel %vm512, %v591, 2147483647
      %v608 = vand.u32 %v607, 65535
      %v609 = vshra.s32 %v607, 16
      %v610 = vcvt.s32.f32 %v608
      %v611 = vcvt.s32.f32 %v609
      %612 = vmin.xlane.f32.xlu0 %v611
      %v613 = vpop.xlane.xlu0 %612
      %vm614 = vcmp.eq.f32.partialorder %v611, %v613
      %v615 = vsel %vm614, %v610, inf
      %616 = vmin.xlane.f32.xlu0 %v615
      %v617 = vpop.xlane.xlu0 %616
      %v618 = vcvt.f32.s32 %v617
      %v619 = vcvt.f32.s32 %v613
      %v620 = vshll.u32 %v619, 16
      %v621 = vadd.s32 %v620, %v618
      %vm622 = vcmp.eq.s32.totalorder %v445, %v606
      %vm623 = vcmp.eq.s32.totalorder %v445, %v621
      %v624 = vsel %vm622, inf, %v580
      %v625 = vsel %vm623, inf, %v581
      %v626 = vsel %vm512, %v624, inf
      %627 = vmin.xlane.f32.xlu0 %v626
      %v628 = vpop.xlane.xlu0 %627
      %v629 = vsel %vm512, %v625, inf
      %630 = vmin.xlane.f32.xlu0 %v629
      %v631 = vpop.xlane.xlu0 %630
      %vm632 = vcmp.eq.f32.partialorder %v624, %v628
      %vm633 = vcmp.eq.f32.partialorder %v625, %v631
      %v634 = vsel %vm632, %v445, 16
      %v635 = vsel %vm633, %v445, 16
      %v636 = vsel %vm512, %v634, 2147483647
      %v637 = vand.u32 %v636, 65535
      %v638 = vshra.s32 %v636, 16
      %v639 = vcvt.s32.f32 %v637
      %v640 = vcvt.s32.f32 %v638
      %641 = vmin.xlane.f32.xlu0 %v640
      %v642 = vpop.xlane.xlu0 %641
      %vm643 = vcmp.eq.f32.partialorder %v640, %v642
      %v644 = vsel %vm643, %v639, inf
      %645 = vmin.xlane.f32.xlu0 %v644
      %v646 = vpop.xlane.xlu0 %645
      %v647 = vcvt.f32.s32 %v646
      %v648 = vcvt.f32.s32 %v642
      %v649 = vshll.u32 %v648, 16
      %v650 = vadd.s32 %v649, %v647
      %v651 = vsel %vm512, %v635, 2147483647
      %v652 = vand.u32 %v651, 65535
      %v653 = vshra.s32 %v651, 16
      %v654 = vcvt.s32.f32 %v652
      %v655 = vcvt.s32.f32 %v653
      %656 = vmin.xlane.f32.xlu0 %v655
      %v657 = vpop.xlane.xlu0 %656
      %vm658 = vcmp.eq.f32.partialorder %v655, %v657
      %v659 = vsel %vm658, %v654, inf
      %660 = vmin.xlane.f32.xlu0 %v659
      %v661 = vpop.xlane.xlu0 %660
      %v662 = vcvt.f32.s32 %v661
      %v663 = vcvt.f32.s32 %v657
      %v664 = vshll.u32 %v663, 16
      %v665 = vadd.s32 %v664, %v662
      %vm666 = vcmp.eq.s32.totalorder %v445, %v650
      %vm667 = vcmp.eq.s32.totalorder %v445, %v665
      %v668 = vsel %vm666, inf, %v624
      %v669 = vsel %vm667, inf, %v625
      %v670 = vsel %vm512, %v668, inf
      %671 = vmin.xlane.f32.xlu0 %v670
      %v672 = vpop.xlane.xlu0 %671
      %v673 = vsel %vm512, %v669, inf
      %674 = vmin.xlane.f32.xlu0 %v673
      %v675 = vpop.xlane.xlu0 %674
      %vm676 = vcmp.eq.f32.partialorder %v668, %v672
      %vm677 = vcmp.eq.f32.partialorder %v669, %v675
      %v678 = vsel %vm676, %v445, 16
      %v679 = vsel %vm677, %v445, 16
      %v680 = vsel %vm512, %v678, 2147483647
      %v681 = vand.u32 %v680, 65535
      %v682 = vshra.s32 %v680, 16
      %v683 = vcvt.s32.f32 %v681
      %v684 = vcvt.s32.f32 %v682
      %685 = vmin.xlane.f32.xlu0 %v684
      %v686 = vpop.xlane.xlu0 %685
      %vm687 = vcmp.eq.f32.partialorder %v684, %v686
      %v688 = vsel %vm687, %v683, inf
      %689 = vmin.xlane.f32.xlu0 %v688
      %v690 = vpop.xlane.xlu0 %689
      %v691 = vcvt.f32.s32 %v690
      %v692 = vcvt.f32.s32 %v686
      %v693 = vshll.u32 %v692, 16
      %v694 = vadd.s32 %v693, %v691
      %v695 = vsel %vm512, %v679, 2147483647
      %v696 = vand.u32 %v695, 65535
      %v697 = vshra.s32 %v695, 16
      %v698 = vcvt.s32.f32 %v696
      %v699 = vcvt.s32.f32 %v697
      %700 = vmin.xlane.f32.xlu0 %v699
      %v701 = vpop.xlane.xlu0 %700
      %vm702 = vcmp.eq.f32.partialorder %v699, %v701
      %v703 = vsel %vm702, %v698, inf
      %704 = vmin.xlane.f32.xlu0 %v703
      %v705 = vpop.xlane.xlu0 %704
      %v706 = vcvt.f32.s32 %v705
      %v707 = vcvt.f32.s32 %v701
      %v708 = vshll.u32 %v707, 16
      %v709 = vadd.s32 %v708, %v706
      %vm710 = vcmask 7168
      %v711 = vsel %vm710, %v606, %v650
      %v712 = vsel %vm710, %v621, %v665
      %vm713 = vcmask 15360
      %v714 = vsel %vm713, %v711, %v694
      %v715 = vsel %vm713, %v712, %v709
      %716 = vst.msk [vmem:[%s324] sm:$0xff] %vm335, %v714
      %717 = vst.msk [vmem:[%s324 + $0x8] sm:$0xff] %vm335, %v715
      %s718 = smul.u32 2, %s22
      %p719 = scmp.lt.s32.totalorder %s21, 1
      %s720 = scalar_select %p719, %s21, 1
      %p721 = scmp.lt.s32.totalorder %s718, 1
      %s722 = scalar_select %p721, %s718, 1
      %s723 = smul.addr %s720, 2
      %s724 = sadd.s32 %s722, %s723
      %s725 = smul.addr %s724, 8
      %s726 = scalar_lea.vmem %s3, %s725
      %p727 = scmp.lt.s32.totalorder %s21, 1
      %s728 = scalar_select %p727, %s21, 1
      %p729 = scmp.lt.s32.totalorder %s22, 0
      %s730 = scalar_select %p729, %s22, 0
      %s731 = sadd.s32 %s730, %s728
      %s732 = smul.addr %s731, 8
      %s733 = scalar_lea.vmem %s4, %s732
      %s734 = smul.u32 2, %s22
      %p735 = scmp.lt.s32.totalorder %s21, 1
      %s736 = scalar_select %p735, %s21, 1
      %p737 = scmp.lt.s32.totalorder %s734, 1
      %s738 = scalar_select %p737, %s734, 1
      %s739 = smul.addr %s736, 2
      %s740 = sadd.s32 %s738, %s739
      %s741 = smul.addr %s740, 8
      %s742 = scalar_lea.vmem %s5, %s741
      // Predicated region
      $region33: #{geo_encoder_forward.2} parent=31 // pred_check
        %p743 = pneg %p124
      $region34: #{geo_encoder_forward.2} parent=31 // pred_check_branch
        %745 = sbr.rel (%p743) target = $region36
      $region35: #{geo_encoder_forward.2} parent=31 // pred_region
        %s746 = smul.u32 2, %s22
      $region36: #{geo_encoder_forward.2} parent=31 // pred_fallthru
        _
      // Predicated region
      $region37: #{geo_encoder_forward.2} parent=31 // pred_check
        %p747 = pneg %p152
      $region38: #{geo_encoder_forward.2} parent=31 // pred_check_branch
        %749 = sbr.rel (%p747) target = $region40
      $region39: #{geo_encoder_forward.2} parent=31 // pred_region
        _
      $region40: #{geo_encoder_forward.2} parent=31 // pred_fallthru
        _
      // Predicated region
      $region41: #{geo_encoder_forward.2} parent=31 // pred_check
        %p750 = pneg %p180
      $region42: #{geo_encoder_forward.2} parent=31 // pred_check_branch
        %752 = sbr.rel (%p750) target = $region44
      $region43: #{geo_encoder_forward.2} parent=31 // pred_region
        %s753 = smul.u32 2, %s22
      $region44: #{geo_encoder_forward.2} parent=31 // pred_fallthru
        _
    $region32: #{geo_encoder_forward.2} parent=5 // pred_fallthru
      _
    %p754 = scmp.le.s32.totalorder 2, %s12
    // Predicated region
    $region45: #{geo_encoder_forward.2} parent=5 // pred_check
      %p755 = pneg %p754
    $region46: #{geo_encoder_forward.2} parent=5 // pred_check_branch
      %757 = sbr.rel (%p755) target = $region48
    $region47: #{geo_encoder_forward.2} parent=5 // pred_region
      %s758 = ssub.s32 %s12, 2
      // Predicated region
      $region49: #{geo_encoder_forward.2} parent=47 // pred_check
        %p759 = pneg %p130
      $region50: #{geo_encoder_forward.2} parent=47 // pred_check_branch
        %761 = sbr.rel (%p759) target = $region52
      $region51: #{geo_encoder_forward.2} parent=47 // pred_region
        %s762 = smul.u32 2, %s24
        %p763 = scmp.lt.s32.totalorder %s23, 1
        %s764 = scalar_select %p763, %s23, 1
        %p765 = scmp.lt.s32.totalorder %s762, 1
        %s766 = scalar_select %p765, %s762, 1
        %s767 = smul.addr %s764, 2
        %s768 = sadd.s32 %s766, %s767
        %s769 = smul.addr %s768, 8
        %s770 = scalar_lea.vmem %s3, %s769
      $region52: #{geo_encoder_forward.2} parent=47 // pred_fallthru
        _
      // Predicated region
      $region53: #{geo_encoder_forward.2} parent=47 // pred_check
        %p771 = pneg %p158
      $region54: #{geo_encoder_forward.2} parent=47 // pred_check_branch
        %773 = sbr.rel (%p771) target = $region56
      $region55: #{geo_encoder_forward.2} parent=47 // pred_region
        %p774 = scmp.lt.s32.totalorder %s23, 1
        %s775 = scalar_select %p774, %s23, 1
        %p776 = scmp.lt.s32.totalorder %s24, 0
        %s777 = scalar_select %p776, %s24, 0
        %s778 = sadd.s32 %s777, %s775
        %s779 = smul.addr %s778, 8
        %s780 = scalar_lea.vmem %s4, %s779
      $region56: #{geo_encoder_forward.2} parent=47 // pred_fallthru
        _
      // Predicated region
      $region57: #{geo_encoder_forward.2} parent=47 // pred_check
        %p781 = pneg %p186
      $region58: #{geo_encoder_forward.2} parent=47 // pred_check_branch
        %783 = sbr.rel (%p781) target = $region60
      $region59: #{geo_encoder_forward.2} parent=47 // pred_region
        %s784 = smul.u32 2, %s24
        %p785 = scmp.lt.s32.totalorder %s23, 1
        %s786 = scalar_select %p785, %s23, 1
        %p787 = scmp.lt.s32.totalorder %s784, 1
        %s788 = scalar_select %p787, %s784, 1
        %s789 = smul.addr %s786, 2
        %s790 = sadd.s32 %s788, %s789
        %s791 = smul.addr %s790, 8
        %s792 = scalar_lea.vmem %s5, %s791
      $region60: #{geo_encoder_forward.2} parent=47 // pred_fallthru
        _
    $region48: #{geo_encoder_forward.2} parent=5 // pred_fallthru
      _
  $region6: #{geo_encoder_forward.2} parent=0 // loop_footer
    %s16 = sadd.s32 1, %s12
  $region7: #{geo_encoder_forward.2} parent=0 // loop_footer_branch
    %11 = sbr.rel target = $region3
  $region8: #{geo_encoder_forward.2} parent=0 // loop_exit
    _

</llo_original>
